<compile_context>
chip_gen: v5e
topology: v5e:2x2
jax: 0.10.0
libtpu: 0.0.40
codegen_flags: <defaults>
</compile_context>

<pallas_src>
import jax
import jax.numpy as jnp
from jax.experimental import pallas as pl
from jax.experimental.pallas import tpu as pltpu


_MAX_ROWS = 1024  # row-tile cap: 2 bufs x 1024 x 150 x 4B ~= 1.2 MiB per input


def _silu(y):
    # SiLU(y) = y * sigmoid(y); approx reciprocal runs on the (otherwise idle) EUP slot.
    return y * pl.reciprocal(1.0 + jnp.exp(-y), approx=True)


# ---------------- Pallas kernels ----------------

def conv_silu_pool_kernel(p00_ref, p01_ref, p10_ref, p11_ref, w_ref, b_ref, o_ref):
    """conv (im2col matmul) + bias + SiLU, then 2x2 maxpool as the elementwise
    max over the four pool-offset row sets."""
    def branch(p_ref):
        y = jnp.dot(p_ref[...], w_ref[...], preferred_element_type=jnp.float32)
        return _silu(y + b_ref[...])
    o_ref[...] = jnp.maximum(jnp.maximum(branch(p00_ref), branch(p01_ref)),
                             jnp.maximum(branch(p10_ref), branch(p11_ref)))


def conv23_silu_pool_add_kernel(p00_ref, p01_ref, p10_ref, p11_ref, w_ref, b_ref, o_ref):
    """conv2+conv3 as ONE matmul (RHS = concat of both weight matrices), SiLU,
    2x2 maxpool, then add the two 16-channel halves (x_1 + x_2)."""
    def branch(p_ref):
        y = jnp.dot(p_ref[...], w_ref[...], preferred_element_type=jnp.float32)
        return _silu(y + b_ref[...])
    pooled = jnp.maximum(jnp.maximum(branch(p00_ref), branch(p01_ref)),
                         jnp.maximum(branch(p10_ref), branch(p11_ref)))
    n = pooled.shape[-1] // 2
    o_ref[...] = pooled[:, :n] + pooled[:, n:]


def head_kernel(x_ref, w4_ref, b4_ref, w5_ref, b5_ref, w6_ref, b6_ref, o_ref):
    """conv4 (1x1 spatial output -> plain matmul) + SiLU + FC1 + SiLU + FC2 + log-softmax,
    all chained on-chip; only the (B, 10) log-probs go back to HBM."""
    h = _silu(jnp.dot(x_ref[...], w4_ref[...], preferred_element_type=jnp.float32) + b4_ref[...])
    h = _silu(jnp.dot(h, w5_ref[...], preferred_element_type=jnp.float32) + b5_ref[...])
    y = jnp.dot(h, w6_ref[...], preferred_element_type=jnp.float32) + b6_ref[...]
    z = y - jnp.max(y, axis=-1, keepdims=True)
    o_ref[...] = z - jnp.log(jnp.sum(jnp.exp(z), axis=-1, keepdims=True))


# ---------------- pallas_call wrapper (row-tiled grid) ----------------

def _row_tiled_call(kernel, row_arrays, full_arrays, out_cols):
    """Grid over the shared row dim of `row_arrays`; `full_arrays` (2-D
    weights/biases, ~234 KB total for the whole net) ride along as full blocks."""
    m = row_arrays[0].shape[0]
    tm = m if m <= _MAX_ROWS else _MAX_ROWS   # full extent, or an 8-aligned tile
    grid = (pl.cdiv(m, tm),)
    row_specs = [pl.BlockSpec((tm, a.shape[1]), lambda i: (i, 0)) for a in row_arrays]
    full_specs = [pl.BlockSpec(a.shape, lambda i: (0, 0)) for a in full_arrays]
    return pl.pallas_call(
        kernel,
        out_shape=jax.ShapeDtypeStruct((m, out_cols), jnp.float32),
        grid=grid,
        in_specs=row_specs + full_specs,
        out_specs=pl.BlockSpec((tm, out_cols), lambda i: (i, 0)),
        compiler_params=pltpu.CompilerParams(dimension_semantics=("parallel",)),
    )(*row_arrays, *full_arrays)


# ---------------- host-side glue (im2col / pool-offset row sets) ----------------
# TODO(synk): move patch extraction fully on-chip (k*k shifted matmuls on a
# VMEM-resident NHWC tile) to drop the remaining XLA slice/concat relayouts.

def _im2col_nhwc(x, k):
    # x: (B, H, W, C) -> (B, Ho, Wo, k*k*C); feature order (dy, dx, c) matches
    # the HWIO-flattened weight layout produced by prepare_params().
    _, h, w, _ = x.shape
    ho, wo = h - k + 1, w - k + 1
    cols = [x[:, dy:dy + ho, dx:dx + wo, :] for dy in range(k) for dx in range(k)]
    return jnp.concatenate(cols, axis=-1), ho, wo


def _pool_offset_rows(pat, ho, wo):
    # pat: (B, Ho, Wo, F) conv-output-aligned patches. Returns four
    # (B*(Ho//2)*(Wo//2), F) row sets (the 2x2 pool offsets), sharing the same
    # (b, i, j) row order so the pool is an elementwise max in the kernel.
    b, f = pat.shape[0], pat.shape[-1]
    hq, wq = ho // 2, wo // 2
    return [pat[:, py:py + 2 * hq:2, px:px + 2 * wq:2, :].reshape(b * hq * wq, f)
            for py in range(2) for px in range(2)]


# ---------------- parameters ----------------

def init_params(key):
    """Deterministic torch-style uniform init, in PyTorch weight layout."""
    def conv_p(k, o, c, ksz):
        k1, k2 = jax.random.split(k)
        bound = 1.0 / jnp.sqrt(c * ksz * ksz)
        return (jax.random.uniform(k1, (o, c, ksz, ksz), jnp.float32, -bound, bound),
                jax.random.uniform(k2, (o,), jnp.float32, -bound, bound))

    def lin_p(k, o, i):
        k1, k2 = jax.random.split(k)
        bound = 1.0 / jnp.sqrt(i)
        return (jax.random.uniform(k1, (o, i), jnp.float32, -bound, bound),
                jax.random.uniform(k2, (o,), jnp.float32, -bound, bound))

    ks = jax.random.split(key, 6)
    return dict(conv1=conv_p(ks[0], 6, 1, 5), conv2=conv_p(ks[1], 16, 6, 5),
                conv3=conv_p(ks[2], 16, 6, 5), conv4=conv_p(ks[3], 120, 16, 5),
                fc1=lin_p(ks[4], 84, 120), fc2=lin_p(ks[5], 10, 84))


def prepare_params(p):
    """One-time weight re-layout (runs once, outside the jitted forward):
    conv weights -> HWIO-flattened (k*k*C, O), FC weights -> (in, out),
    biases -> (1, O) rows, conv2/conv3 concatenated into a single (150, 32) RHS."""
    def conv_w(w):  # (O, C, k, k) -> (k*k*C, O), row order (dy, dx, c)
        o = w.shape[0]
        return w.transpose(2, 3, 1, 0).reshape(-1, o)

    (w1, b1), (w2, b2) = p["conv1"], p["conv2"]
    (w3, b3), (w4, b4) = p["conv3"], p["conv4"]
    (f1, g1), (f2, g2) = p["fc1"], p["fc2"]
    return dict(
        w1=conv_w(w1), b1=b1.reshape(1, -1),
        w23=jnp.concatenate([conv_w(w2), conv_w(w3)], axis=1),
        b23=jnp.concatenate([b2, b3]).reshape(1, -1),
        w4=conv_w(w4), b4=b4.reshape(1, -1),
        w5=f1.T, b5=g1.reshape(1, -1),
        w6=f2.T, b6=g2.reshape(1, -1),
    )


# ---------------- forward ----------------

def lenet5_forward(params, x):
    # x: (B, 1, 28, 28) float32  (28x28 is forced by the architecture)
    b = x.shape[0]

    # stage 1: conv1(pad=2) + SiLU + maxpool -> (B, 14, 14, 6) NHWC
    xn = jnp.pad(x.transpose(0, 2, 3, 1), ((0, 0), (2, 2), (2, 2), (0, 0)))
    pat, ho, wo = _im2col_nhwc(xn, 5)                        # (B, 28, 28, 25)
    quads = _pool_offset_rows(pat, ho, wo)                   # 4 x (B*196, 25)
    a1 = _row_tiled_call(conv_silu_pool_kernel, quads,
                         [params["w1"], params["b1"]], 6)
    a1 = a1.reshape(b, 14, 14, 6)

    # stage 2: conv2 & conv3 + SiLU + maxpool + add -> (B*25, 16)
    pat, ho, wo = _im2col_nhwc(a1, 5)                        # (B, 10, 10, 150)
    quads = _pool_offset_rows(pat, ho, wo)                   # 4 x (B*25, 150)
    a2 = _row_tiled_call(conv23_silu_pool_add_kernel, quads,
                         [params["w23"], params["b23"]], 16)

    # stage 3: conv4 + SiLU + FC1 + SiLU + FC2 + log-softmax -> (B, 10)
    xf = a2.reshape(b, 5 * 5 * 16)                           # feature order (dy, dx, c)
    out = _row_tiled_call(
        head_kernel, [xf],
        [params["w4"], params["b4"], params["w5"], params["b5"],
         params["w6"], params["b6"]], 10)
    return out


if __name__ == "__main__":
    key = jax.random.PRNGKey(0)
    pkey, xkey = jax.random.split(key)
    params = prepare_params(init_params(pkey))
    x = jax.random.normal(xkey, (2, 1, 28, 28), dtype=jnp.float32)
    out = jax.jit(lenet5_forward)(params, x)
    jax.block_until_ready(out)
    assert out.shape == (2, 10)
    assert bool(jnp.all(jnp.isfinite(out)))
    print("KERNEL_OK")
</pallas_src>

<mosaic_0001>
module attributes {stable_mosaic.version = 11 : i64} {
  func.func @conv_silu_pool_kernel(%arg0: i32, %arg1: memref<392x25xf32, #tpu.memory_space<vmem>>, %arg2: memref<392x25xf32, #tpu.memory_space<vmem>>, %arg3: memref<392x25xf32, #tpu.memory_space<vmem>>, %arg4: memref<392x25xf32, #tpu.memory_space<vmem>>, %arg5: memref<25x6xf32, #tpu.memory_space<vmem>>, %arg6: memref<1x6xf32, #tpu.memory_space<vmem>>, %arg7: memref<392x6xf32, #tpu.memory_space<vmem>>) attributes {dimension_semantics = [#tpu.dimension_semantics<parallel>], iteration_bounds = array<i64: 1>, scalar_prefetch = 0 : i64, scratch_operands = 0 : i64, tpu.core_type = #tpu.core_type<tc>, window_params = [{transform_indices = @transform_0, window_bounds = array<i64: 392, 25>}, {transform_indices = @transform_1, window_bounds = array<i64: 392, 25>}, {transform_indices = @transform_2, window_bounds = array<i64: 392, 25>}, {transform_indices = @transform_3, window_bounds = array<i64: 392, 25>}, {pipeline_mode = #tpu.pipeline_mode<synchronous>, transform_indices = @transform_4, window_bounds = array<i64: 25, 6>}, {pipeline_mode = #tpu.pipeline_mode<synchronous>, transform_indices = @transform_5, window_bounds = array<i64: 1, 6>}, {transform_indices = @transform_6, window_bounds = array<i64: 392, 6>}]} {
    %c0 = arith.constant 0 : index
    %c0_0 = arith.constant 0 : index
    %0 = vector.load %arg1[%c0, %c0_0] : memref<392x25xf32, #tpu.memory_space<vmem>>, vector<392x25xf32>
    %c0_1 = arith.constant 0 : index
    %c0_2 = arith.constant 0 : index
    %1 = vector.load %arg5[%c0_1, %c0_2] : memref<25x6xf32, #tpu.memory_space<vmem>>, vector<25x6xf32>
    %cst = arith.constant dense<0.000000e+00> : vector<392x6xf32>
    %2 = tpu.matmul %0, %1, %cst {dimension_numbers = #tpu.dot_dimension_numbers<[1], [0], [0], [1], [0, 0, 1, 1], [], []>} : vector<392x25xf32>, vector<25x6xf32>, vector<392x6xf32> -> vector<392x6xf32>
    %c0_3 = arith.constant 0 : index
    %c0_4 = arith.constant 0 : index
    %3 = vector.load %arg6[%c0_3, %c0_4] : memref<1x6xf32, #tpu.memory_space<vmem>>, vector<1x6xf32>
    %4 = vector.broadcast %3 : vector<1x6xf32> to vector<392x6xf32>
    %5 = arith.addf %2, %4 : vector<392x6xf32>
    %cst_5 = arith.constant 0.000000e+00 : f32
    %6 = vector.broadcast %cst_5 : f32 to vector<392x6xf32>
    %7 = arith.subf %6, %5 : vector<392x6xf32>
    %8 = math.exp %7 : vector<392x6xf32>
    %cst_6 = arith.constant 1.000000e+00 : f32
    %9 = vector.broadcast %cst_6 : f32 to vector<392x6xf32>
    %10 = arith.addf %9, %8 : vector<392x6xf32>
    %11 = tpu.reciprocal %10 {approx = true} : vector<392x6xf32> -> vector<392x6xf32>
    %12 = arith.mulf %5, %11 : vector<392x6xf32>
    %c0_7 = arith.constant 0 : index
    %c0_8 = arith.constant 0 : index
    %13 = vector.load %arg2[%c0_7, %c0_8] : memref<392x25xf32, #tpu.memory_space<vmem>>, vector<392x25xf32>
    %c0_9 = arith.constant 0 : index
    %c0_10 = arith.constant 0 : index
    %14 = vector.load %arg5[%c0_9, %c0_10] : memref<25x6xf32, #tpu.memory_space<vmem>>, vector<25x6xf32>
    %cst_11 = arith.constant dense<0.000000e+00> : vector<392x6xf32>
    %15 = tpu.matmul %13, %14, %cst_11 {dimension_numbers = #tpu.dot_dimension_numbers<[1], [0], [0], [1], [0, 0, 1, 1], [], []>} : vector<392x25xf32>, vector<25x6xf32>, vector<392x6xf32> -> vector<392x6xf32>
    %c0_12 = arith.constant 0 : index
    %c0_13 = arith.constant 0 : index
    %16 = vector.load %arg6[%c0_12, %c0_13] : memref<1x6xf32, #tpu.memory_space<vmem>>, vector<1x6xf32>
    %17 = vector.broadcast %16 : vector<1x6xf32> to vector<392x6xf32>
    %18 = arith.addf %15, %17 : vector<392x6xf32>
    %cst_14 = arith.constant 0.000000e+00 : f32
    %19 = vector.broadcast %cst_14 : f32 to vector<392x6xf32>
    %20 = arith.subf %19, %18 : vector<392x6xf32>
    %21 = math.exp %20 : vector<392x6xf32>
    %cst_15 = arith.constant 1.000000e+00 : f32
    %22 = vector.broadcast %cst_15 : f32 to vector<392x6xf32>
    %23 = arith.addf %22, %21 : vector<392x6xf32>
    %24 = tpu.reciprocal %23 {approx = true} : vector<392x6xf32> -> vector<392x6xf32>
    %25 = arith.mulf %18, %24 : vector<392x6xf32>
    %26 = arith.maximumf %12, %25 : vector<392x6xf32>
    %c0_16 = arith.constant 0 : index
    %c0_17 = arith.constant 0 : index
    %27 = vector.load %arg3[%c0_16, %c0_17] : memref<392x25xf32, #tpu.memory_space<vmem>>, vector<392x25xf32>
    %c0_18 = arith.constant 0 : index
    %c0_19 = arith.constant 0 : index
    %28 = vector.load %arg5[%c0_18, %c0_19] : memref<25x6xf32, #tpu.memory_space<vmem>>, vector<25x6xf32>
    %cst_20 = arith.constant dense<0.000000e+00> : vector<392x6xf32>
    %29 = tpu.matmul %27, %28, %cst_20 {dimension_numbers = #tpu.dot_dimension_numbers<[1], [0], [0], [1], [0, 0, 1, 1], [], []>} : vector<392x25xf32>, vector<25x6xf32>, vector<392x6xf32> -> vector<392x6xf32>
    %c0_21 = arith.constant 0 : index
    %c0_22 = arith.constant 0 : index
    %30 = vector.load %arg6[%c0_21, %c0_22] : memref<1x6xf32, #tpu.memory_space<vmem>>, vector<1x6xf32>
    %31 = vector.broadcast %30 : vector<1x6xf32> to vector<392x6xf32>
    %32 = arith.addf %29, %31 : vector<392x6xf32>
    %cst_23 = arith.constant 0.000000e+00 : f32
    %33 = vector.broadcast %cst_23 : f32 to vector<392x6xf32>
    %34 = arith.subf %33, %32 : vector<392x6xf32>
    %35 = math.exp %34 : vector<392x6xf32>
    %cst_24 = arith.constant 1.000000e+00 : f32
    %36 = vector.broadcast %cst_24 : f32 to vector<392x6xf32>
    %37 = arith.addf %36, %35 : vector<392x6xf32>
    %38 = tpu.reciprocal %37 {approx = true} : vector<392x6xf32> -> vector<392x6xf32>
    %39 = arith.mulf %32, %38 : vector<392x6xf32>
    %c0_25 = arith.constant 0 : index
    %c0_26 = arith.constant 0 : index
    %40 = vector.load %arg4[%c0_25, %c0_26] : memref<392x25xf32, #tpu.memory_space<vmem>>, vector<392x25xf32>
    %c0_27 = arith.constant 0 : index
    %c0_28 = arith.constant 0 : index
    %41 = vector.load %arg5[%c0_27, %c0_28] : memref<25x6xf32, #tpu.memory_space<vmem>>, vector<25x6xf32>
    %cst_29 = arith.constant dense<0.000000e+00> : vector<392x6xf32>
    %42 = tpu.matmul %40, %41, %cst_29 {dimension_numbers = #tpu.dot_dimension_numbers<[1], [0], [0], [1], [0, 0, 1, 1], [], []>} : vector<392x25xf32>, vector<25x6xf32>, vector<392x6xf32> -> vector<392x6xf32>
    %c0_30 = arith.constant 0 : index
    %c0_31 = arith.constant 0 : index
    %43 = vector.load %arg6[%c0_30, %c0_31] : memref<1x6xf32, #tpu.memory_space<vmem>>, vector<1x6xf32>
    %44 = vector.broadcast %43 : vector<1x6xf32> to vector<392x6xf32>
    %45 = arith.addf %42, %44 : vector<392x6xf32>
    %cst_32 = arith.constant 0.000000e+00 : f32
    %46 = vector.broadcast %cst_32 : f32 to vector<392x6xf32>
    %47 = arith.subf %46, %45 : vector<392x6xf32>
    %48 = math.exp %47 : vector<392x6xf32>
    %cst_33 = arith.constant 1.000000e+00 : f32
    %49 = vector.broadcast %cst_33 : f32 to vector<392x6xf32>
    %50 = arith.addf %49, %48 : vector<392x6xf32>
    %51 = tpu.reciprocal %50 {approx = true} : vector<392x6xf32> -> vector<392x6xf32>
    %52 = arith.mulf %45, %51 : vector<392x6xf32>
    %53 = arith.maximumf %39, %52 : vector<392x6xf32>
    %54 = arith.maximumf %26, %53 : vector<392x6xf32>
    %c0_34 = arith.constant 0 : index
    %c0_35 = arith.constant 0 : index
    %55 = vector.load %arg7[%c0_34, %c0_35] : memref<392x6xf32, #tpu.memory_space<vmem>>, vector<392x6xf32>
    tpu.vector_store %arg7[%c0_34, %c0_35], %54 {strides = array<i32>} : memref<392x6xf32, #tpu.memory_space<vmem>>, vector<392x6xf32>,
    return
  }
  func.func @transform_0(%arg0: i32) -> (i32, i32) {
    %c0_i32 = arith.constant 0 : i32
    %c0_i32_0 = arith.constant 0 : i32
    return %arg0, %c0_i32 : i32, i32
  }
  func.func @transform_1(%arg0: i32) -> (i32, i32) {
    %c0_i32 = arith.constant 0 : i32
    %c0_i32_0 = arith.constant 0 : i32
    return %arg0, %c0_i32 : i32, i32
  }
  func.func @transform_2(%arg0: i32) -> (i32, i32) {
    %c0_i32 = arith.constant 0 : i32
    %c0_i32_0 = arith.constant 0 : i32
    return %arg0, %c0_i32 : i32, i32
  }
  func.func @transform_3(%arg0: i32) -> (i32, i32) {
    %c0_i32 = arith.constant 0 : i32
    %c0_i32_0 = arith.constant 0 : i32
    return %arg0, %c0_i32 : i32, i32
  }
  func.func @transform_4(%arg0: i32) -> (i32, i32) {
    %c0_i32 = arith.constant 0 : i32
    %c0_i32_0 = arith.constant 0 : i32
    %c0_i32_1 = arith.constant 0 : i32
    return %c0_i32, %c0_i32_0 : i32, i32
  }
  func.func @transform_5(%arg0: i32) -> (i32, i32) {
    %c0_i32 = arith.constant 0 : i32
    %c0_i32_0 = arith.constant 0 : i32
    %c0_i32_1 = arith.constant 0 : i32
    return %c0_i32, %c0_i32_0 : i32, i32
  }
  func.func @transform_6(%arg0: i32) -> (i32, i32) {
    %c0_i32 = arith.constant 0 : i32
    %c0_i32_0 = arith.constant 0 : i32
    return %arg0, %c0_i32 : i32, i32
  }
}

module attributes {stable_mosaic.version = 11 : i64} {
  func.func @conv23_silu_pool_add_kernel(%arg0: i32, %arg1: memref<50x150xf32, #tpu.memory_space<vmem>>, %arg2: memref<50x150xf32, #tpu.memory_space<vmem>>, %arg3: memref<50x150xf32, #tpu.memory_space<vmem>>, %arg4: memref<50x150xf32, #tpu.memory_space<vmem>>, %arg5: memref<150x32xf32, #tpu.memory_space<vmem>>, %arg6: memref<1x32xf32, #tpu.memory_space<vmem>>, %arg7: memref<50x16xf32, #tpu.memory_space<vmem>>) attributes {dimension_semantics = [#tpu.dimension_semantics<parallel>], iteration_bounds = array<i64: 1>, scalar_prefetch = 0 : i64, scratch_operands = 0 : i64, tpu.core_type = #tpu.core_type<tc>, window_params = [{transform_indices = @transform_0, window_bounds = array<i64: 50, 150>}, {transform_indices = @transform_1, window_bounds = array<i64: 50, 150>}, {transform_indices = @transform_2, window_bounds = array<i64: 50, 150>}, {transform_indices = @transform_3, window_bounds = array<i64: 50, 150>}, {pipeline_mode = #tpu.pipeline_mode<synchronous>, transform_indices = @transform_4, window_bounds = array<i64: 150, 32>}, {pipeline_mode = #tpu.pipeline_mode<synchronous>, transform_indices = @transform_5, window_bounds = array<i64: 1, 32>}, {transform_indices = @transform_6, window_bounds = array<i64: 50, 16>}]} {
    %c0 = arith.constant 0 : index
    %c0_0 = arith.constant 0 : index
    %0 = vector.load %arg1[%c0, %c0_0] : memref<50x150xf32, #tpu.memory_space<vmem>>, vector<50x150xf32>
    %c0_1 = arith.constant 0 : index
    %c0_2 = arith.constant 0 : index
    %1 = vector.load %arg5[%c0_1, %c0_2] : memref<150x32xf32, #tpu.memory_space<vmem>>, vector<150x32xf32>
    %cst = arith.constant dense<0.000000e+00> : vector<50x32xf32>
    %2 = tpu.matmul %0, %1, %cst {dimension_numbers = #tpu.dot_dimension_numbers<[1], [0], [0], [1], [0, 0, 1, 1], [], []>} : vector<50x150xf32>, vector<150x32xf32>, vector<50x32xf32> -> vector<50x32xf32>
    %c0_3 = arith.constant 0 : index
    %c0_4 = arith.constant 0 : index
    %3 = vector.load %arg6[%c0_3, %c0_4] : memref<1x32xf32, #tpu.memory_space<vmem>>, vector<1x32xf32>
    %4 = vector.broadcast %3 : vector<1x32xf32> to vector<50x32xf32>
    %5 = arith.addf %2, %4 : vector<50x32xf32>
    %cst_5 = arith.constant 0.000000e+00 : f32
    %6 = vector.broadcast %cst_5 : f32 to vector<50x32xf32>
    %7 = arith.subf %6, %5 : vector<50x32xf32>
    %8 = math.exp %7 : vector<50x32xf32>
    %cst_6 = arith.constant 1.000000e+00 : f32
    %9 = vector.broadcast %cst_6 : f32 to vector<50x32xf32>
    %10 = arith.addf %9, %8 : vector<50x32xf32>
    %11 = tpu.reciprocal %10 {approx = true} : vector<50x32xf32> -> vector<50x32xf32>
    %12 = arith.mulf %5, %11 : vector<50x32xf32>
    %c0_7 = arith.constant 0 : index
    %c0_8 = arith.constant 0 : index
    %13 = vector.load %arg2[%c0_7, %c0_8] : memref<50x150xf32, #tpu.memory_space<vmem>>, vector<50x150xf32>
    %c0_9 = arith.constant 0 : index
    %c0_10 = arith.constant 0 : index
    %14 = vector.load %arg5[%c0_9, %c0_10] : memref<150x32xf32, #tpu.memory_space<vmem>>, vector<150x32xf32>
    %cst_11 = arith.constant dense<0.000000e+00> : vector<50x32xf32>
    %15 = tpu.matmul %13, %14, %cst_11 {dimension_numbers = #tpu.dot_dimension_numbers<[1], [0], [0], [1], [0, 0, 1, 1], [], []>} : vector<50x150xf32>, vector<150x32xf32>, vector<50x32xf32> -> vector<50x32xf32>
    %c0_12 = arith.constant 0 : index
    %c0_13 = arith.constant 0 : index
    %16 = vector.load %arg6[%c0_12, %c0_13] : memref<1x32xf32, #tpu.memory_space<vmem>>, vector<1x32xf32>
    %17 = vector.broadcast %16 : vector<1x32xf32> to vector<50x32xf32>
    %18 = arith.addf %15, %17 : vector<50x32xf32>
    %cst_14 = arith.constant 0.000000e+00 : f32
    %19 = vector.broadcast %cst_14 : f32 to vector<50x32xf32>
    %20 = arith.subf %19, %18 : vector<50x32xf32>
    %21 = math.exp %20 : vector<50x32xf32>
    %cst_15 = arith.constant 1.000000e+00 : f32
    %22 = vector.broadcast %cst_15 : f32 to vector<50x32xf32>
    %23 = arith.addf %22, %21 : vector<50x32xf32>
    %24 = tpu.reciprocal %23 {approx = true} : vector<50x32xf32> -> vector<50x32xf32>
    %25 = arith.mulf %18, %24 : vector<50x32xf32>
    %26 = arith.maximumf %12, %25 : vector<50x32xf32>
    %c0_16 = arith.constant 0 : index
    %c0_17 = arith.constant 0 : index
    %27 = vector.load %arg3[%c0_16, %c0_17] : memref<50x150xf32, #tpu.memory_space<vmem>>, vector<50x150xf32>
    %c0_18 = arith.constant 0 : index
    %c0_19 = arith.constant 0 : index
    %28 = vector.load %arg5[%c0_18, %c0_19] : memref<150x32xf32, #tpu.memory_space<vmem>>, vector<150x32xf32>
    %cst_20 = arith.constant dense<0.000000e+00> : vector<50x32xf32>
    %29 = tpu.matmul %27, %28, %cst_20 {dimension_numbers = #tpu.dot_dimension_numbers<[1], [0], [0], [1], [0, 0, 1, 1], [], []>} : vector<50x150xf32>, vector<150x32xf32>, vector<50x32xf32> -> vector<50x32xf32>
    %c0_21 = arith.constant 0 : index
    %c0_22 = arith.constant 0 : index
    %30 = vector.load %arg6[%c0_21, %c0_22] : memref<1x32xf32, #tpu.memory_space<vmem>>, vector<1x32xf32>
    %31 = vector.broadcast %30 : vector<1x32xf32> to vector<50x32xf32>
    %32 = arith.addf %29, %31 : vector<50x32xf32>
    %cst_23 = arith.constant 0.000000e+00 : f32
    %33 = vector.broadcast %cst_23 : f32 to vector<50x32xf32>
    %34 = arith.subf %33, %32 : vector<50x32xf32>
    %35 = math.exp %34 : vector<50x32xf32>
    %cst_24 = arith.constant 1.000000e+00 : f32
    %36 = vector.broadcast %cst_24 : f32 to vector<50x32xf32>
    %37 = arith.addf %36, %35 : vector<50x32xf32>
    %38 = tpu.reciprocal %37 {approx = true} : vector<50x32xf32> -> vector<50x32xf32>
    %39 = arith.mulf %32, %38 : vector<50x32xf32>
    %c0_25 = arith.constant 0 : index
    %c0_26 = arith.constant 0 : index
    %40 = vector.load %arg4[%c0_25, %c0_26] : memref<50x150xf32, #tpu.memory_space<vmem>>, vector<50x150xf32>
    %c0_27 = arith.constant 0 : index
    %c0_28 = arith.constant 0 : index
    %41 = vector.load %arg5[%c0_27, %c0_28] : memref<150x32xf32, #tpu.memory_space<vmem>>, vector<150x32xf32>
    %cst_29 = arith.constant dense<0.000000e+00> : vector<50x32xf32>
    %42 = tpu.matmul %40, %41, %cst_29 {dimension_numbers = #tpu.dot_dimension_numbers<[1], [0], [0], [1], [0, 0, 1, 1], [], []>} : vector<50x150xf32>, vector<150x32xf32>, vector<50x32xf32> -> vector<50x32xf32>
    %c0_30 = arith.constant 0 : index
    %c0_31 = arith.constant 0 : index
    %43 = vector.load %arg6[%c0_30, %c0_31] : memref<1x32xf32, #tpu.memory_space<vmem>>, vector<1x32xf32>
    %44 = vector.broadcast %43 : vector<1x32xf32> to vector<50x32xf32>
    %45 = arith.addf %42, %44 : vector<50x32xf32>
    %cst_32 = arith.constant 0.000000e+00 : f32
    %46 = vector.broadcast %cst_32 : f32 to vector<50x32xf32>
    %47 = arith.subf %46, %45 : vector<50x32xf32>
    %48 = math.exp %47 : vector<50x32xf32>
    %cst_33 = arith.constant 1.000000e+00 : f32
    %49 = vector.broadcast %cst_33 : f32 to vector<50x32xf32>
    %50 = arith.addf %49, %48 : vector<50x32xf32>
    %51 = tpu.reciprocal %50 {approx = true} : vector<50x32xf32> -> vector<50x32xf32>
    %52 = arith.mulf %45, %51 : vector<50x32xf32>
    %53 = arith.maximumf %39, %52 : vector<50x32xf32>
    %54 = arith.maximumf %26, %53 : vector<50x32xf32>
    %55 = vector.extract_strided_slice %54 {offsets = [0, 0], sizes = [50, 16], strides = [1, 1]} : vector<50x32xf32> to vector<50x16xf32>
    %56 = vector.extract_strided_slice %54 {offsets = [0, 16], sizes = [50, 16], strides = [1, 1]} : vector<50x32xf32> to vector<50x16xf32>
    %57 = arith.addf %55, %56 : vector<50x16xf32>
    %c0_34 = arith.constant 0 : index
    %c0_35 = arith.constant 0 : index
    %58 = vector.load %arg7[%c0_34, %c0_35] : memref<50x16xf32, #tpu.memory_space<vmem>>, vector<50x16xf32>
    tpu.vector_store %arg7[%c0_34, %c0_35], %57 {strides = array<i32>} : memref<50x16xf32, #tpu.memory_space<vmem>>, vector<50x16xf32>,
    return
  }
  func.func @transform_0(%arg0: i32) -> (i32, i32) {
    %c0_i32 = arith.constant 0 : i32
    %c0_i32_0 = arith.constant 0 : i32
    return %arg0, %c0_i32 : i32, i32
  }
  func.func @transform_1(%arg0: i32) -> (i32, i32) {
    %c0_i32 = arith.constant 0 : i32
    %c0_i32_0 = arith.constant 0 : i32
    return %arg0, %c0_i32 : i32, i32
  }
  func.func @transform_2(%arg0: i32) -> (i32, i32) {
    %c0_i32 = arith.constant 0 : i32
    %c0_i32_0 = arith.constant 0 : i32
    return %arg0, %c0_i32 : i32, i32
  }
  func.func @transform_3(%arg0: i32) -> (i32, i32) {
    %c0_i32 = arith.constant 0 : i32
    %c0_i32_0 = arith.constant 0 : i32
    return %arg0, %c0_i32 : i32, i32
  }
  func.func @transform_4(%arg0: i32) -> (i32, i32) {
    %c0_i32 = arith.constant 0 : i32
    %c0_i32_0 = arith.constant 0 : i32
    %c0_i32_1 = arith.constant 0 : i32
    return %c0_i32, %c0_i32_0 : i32, i32
  }
  func.func @transform_5(%arg0: i32) -> (i32, i32) {
    %c0_i32 = arith.constant 0 : i32
    %c0_i32_0 = arith.constant 0 : i32
    %c0_i32_1 = arith.constant 0 : i32
    return %c0_i32, %c0_i32_0 : i32, i32
  }
  func.func @transform_6(%arg0: i32) -> (i32, i32) {
    %c0_i32 = arith.constant 0 : i32
    %c0_i32_0 = arith.constant 0 : i32
    return %arg0, %c0_i32 : i32, i32
  }
}

module attributes {stable_mosaic.version = 11 : i64} {
  func.func @head_kernel(%arg0: i32, %arg1: memref<2x400xf32, #tpu.memory_space<vmem>>, %arg2: memref<400x120xf32, #tpu.memory_space<vmem>>, %arg3: memref<1x120xf32, #tpu.memory_space<vmem>>, %arg4: memref<120x84xf32, #tpu.memory_space<vmem>>, %arg5: memref<1x84xf32, #tpu.memory_space<vmem>>, %arg6: memref<84x10xf32, #tpu.memory_space<vmem>>, %arg7: memref<1x10xf32, #tpu.memory_space<vmem>>, %arg8: memref<2x10xf32, #tpu.memory_space<vmem>>) attributes {dimension_semantics = [#tpu.dimension_semantics<parallel>], iteration_bounds = array<i64: 1>, scalar_prefetch = 0 : i64, scratch_operands = 0 : i64, tpu.core_type = #tpu.core_type<tc>, window_params = [{transform_indices = @transform_0, window_bounds = array<i64: 2, 400>}, {pipeline_mode = #tpu.pipeline_mode<synchronous>, transform_indices = @transform_1, window_bounds = array<i64: 400, 120>}, {pipeline_mode = #tpu.pipeline_mode<synchronous>, transform_indices = @transform_2, window_bounds = array<i64: 1, 120>}, {pipeline_mode = #tpu.pipeline_mode<synchronous>, transform_indices = @transform_3, window_bounds = array<i64: 120, 84>}, {pipeline_mode = #tpu.pipeline_mode<synchronous>, transform_indices = @transform_4, window_bounds = array<i64: 1, 84>}, {pipeline_mode = #tpu.pipeline_mode<synchronous>, transform_indices = @transform_5, window_bounds = array<i64: 84, 10>}, {pipeline_mode = #tpu.pipeline_mode<synchronous>, transform_indices = @transform_6, window_bounds = array<i64: 1, 10>}, {transform_indices = @transform_7, window_bounds = array<i64: 2, 10>}]} {
    %c0 = arith.constant 0 : index
    %c0_0 = arith.constant 0 : index
    %0 = vector.load %arg1[%c0, %c0_0] : memref<2x400xf32, #tpu.memory_space<vmem>>, vector<2x400xf32>
    %c0_1 = arith.constant 0 : index
    %c0_2 = arith.constant 0 : index
    %1 = vector.load %arg2[%c0_1, %c0_2] : memref<400x120xf32, #tpu.memory_space<vmem>>, vector<400x120xf32>
    %cst = arith.constant dense<0.000000e+00> : vector<2x120xf32>
    %2 = tpu.matmul %0, %1, %cst {dimension_numbers = #tpu.dot_dimension_numbers<[1], [0], [0], [1], [0, 0, 1, 1], [], []>} : vector<2x400xf32>, vector<400x120xf32>, vector<2x120xf32> -> vector<2x120xf32>
    %c0_3 = arith.constant 0 : index
    %c0_4 = arith.constant 0 : index
    %3 = vector.load %arg3[%c0_3, %c0_4] : memref<1x120xf32, #tpu.memory_space<vmem>>, vector<1x120xf32>
    %4 = vector.broadcast %3 : vector<1x120xf32> to vector<2x120xf32>
    %5 = arith.addf %2, %4 : vector<2x120xf32>
    %cst_5 = arith.constant 0.000000e+00 : f32
    %6 = vector.broadcast %cst_5 : f32 to vector<2x120xf32>
    %7 = arith.subf %6, %5 : vector<2x120xf32>
    %8 = math.exp %7 : vector<2x120xf32>
    %cst_6 = arith.constant 1.000000e+00 : f32
    %9 = vector.broadcast %cst_6 : f32 to vector<2x120xf32>
    %10 = arith.addf %9, %8 : vector<2x120xf32>
    %11 = tpu.reciprocal %10 {approx = true} : vector<2x120xf32> -> vector<2x120xf32>
    %12 = arith.mulf %5, %11 : vector<2x120xf32>
    %c0_7 = arith.constant 0 : index
    %c0_8 = arith.constant 0 : index
    %13 = vector.load %arg4[%c0_7, %c0_8] : memref<120x84xf32, #tpu.memory_space<vmem>>, vector<120x84xf32>
    %cst_9 = arith.constant dense<0.000000e+00> : vector<2x84xf32>
    %14 = tpu.matmul %12, %13, %cst_9 {dimension_numbers = #tpu.dot_dimension_numbers<[1], [0], [0], [1], [0, 0, 1, 1], [], []>} : vector<2x120xf32>, vector<120x84xf32>, vector<2x84xf32> -> vector<2x84xf32>
    %c0_10 = arith.constant 0 : index
    %c0_11 = arith.constant 0 : index
    %15 = vector.load %arg5[%c0_10, %c0_11] : memref<1x84xf32, #tpu.memory_space<vmem>>, vector<1x84xf32>
    %16 = vector.broadcast %15 : vector<1x84xf32> to vector<2x84xf32>
    %17 = arith.addf %14, %16 : vector<2x84xf32>
    %cst_12 = arith.constant 0.000000e+00 : f32
    %18 = vector.broadcast %cst_12 : f32 to vector<2x84xf32>
    %19 = arith.subf %18, %17 : vector<2x84xf32>
    %20 = math.exp %19 : vector<2x84xf32>
    %cst_13 = arith.constant 1.000000e+00 : f32
    %21 = vector.broadcast %cst_13 : f32 to vector<2x84xf32>
    %22 = arith.addf %21, %20 : vector<2x84xf32>
    %23 = tpu.reciprocal %22 {approx = true} : vector<2x84xf32> -> vector<2x84xf32>
    %24 = arith.mulf %17, %23 : vector<2x84xf32>
    %c0_14 = arith.constant 0 : index
    %c0_15 = arith.constant 0 : index
    %25 = vector.load %arg6[%c0_14, %c0_15] : memref<84x10xf32, #tpu.memory_space<vmem>>, vector<84x10xf32>
    %cst_16 = arith.constant dense<0.000000e+00> : vector<2x10xf32>
    %26 = tpu.matmul %24, %25, %cst_16 {dimension_numbers = #tpu.dot_dimension_numbers<[1], [0], [0], [1], [0, 0, 1, 1], [], []>} : vector<2x84xf32>, vector<84x10xf32>, vector<2x10xf32> -> vector<2x10xf32>
    %c0_17 = arith.constant 0 : index
    %c0_18 = arith.constant 0 : index
    %27 = vector.load %arg7[%c0_17, %c0_18] : memref<1x10xf32, #tpu.memory_space<vmem>>, vector<1x10xf32>
    %28 = vector.broadcast %27 : vector<1x10xf32> to vector<2x10xf32>
    %29 = arith.addf %26, %28 : vector<2x10xf32>
    %cst_19 = arith.constant dense<0xFF800000> : vector<2xf32>
    %30 = vector.multi_reduction <maximumf>, %29, %cst_19 [1] : vector<2x10xf32> to vector<2xf32>
    %31 = vector.shape_cast %30 : vector<2xf32> to vector<2x1xf32>
    %32 = vector.broadcast %31 : vector<2x1xf32> to vector<2x10xf32>
    %33 = arith.subf %29, %32 : vector<2x10xf32>
    %34 = math.exp %33 : vector<2x10xf32>
    %cst_20 = arith.constant dense<0.000000e+00> : vector<2xf32>
    %35 = vector.multi_reduction <add>, %34, %cst_20 [1] : vector<2x10xf32> to vector<2xf32>
    %36 = vector.shape_cast %35 : vector<2xf32> to vector<2x1xf32>
    %37 = math.log %36 : vector<2x1xf32>
    %38 = vector.broadcast %37 : vector<2x1xf32> to vector<2x10xf32>
    %39 = arith.subf %33, %38 : vector<2x10xf32>
    %c0_21 = arith.constant 0 : index
    %c0_22 = arith.constant 0 : index
    %40 = vector.load %arg8[%c0_21, %c0_22] : memref<2x10xf32, #tpu.memory_space<vmem>>, vector<2x10xf32>
    tpu.vector_store %arg8[%c0_21, %c0_22], %39 {strides = array<i32>} : memref<2x10xf32, #tpu.memory_space<vmem>>, vector<2x10xf32>,
    return
  }
  func.func @transform_0(%arg0: i32) -> (i32, i32) {
    %c0_i32 = arith.constant 0 : i32
    %c0_i32_0 = arith.constant 0 : i32
    return %arg0, %c0_i32 : i32, i32
  }
  func.func @transform_1(%arg0: i32) -> (i32, i32) {
    %c0_i32 = arith.constant 0 : i32
    %c0_i32_0 = arith.constant 0 : i32
    %c0_i32_1 = arith.constant 0 : i32
    return %c0_i32, %c0_i32_0 : i32, i32
  }
  func.func @transform_2(%arg0: i32) -> (i32, i32) {
    %c0_i32 = arith.constant 0 : i32
    %c0_i32_0 = arith.constant 0 : i32
    %c0_i32_1 = arith.constant 0 : i32
    return %c0_i32, %c0_i32_0 : i32, i32
  }
  func.func @transform_3(%arg0: i32) -> (i32, i32) {
    %c0_i32 = arith.constant 0 : i32
    %c0_i32_0 = arith.constant 0 : i32
    %c0_i32_1 = arith.constant 0 : i32
    return %c0_i32, %c0_i32_0 : i32, i32
  }
  func.func @transform_4(%arg0: i32) -> (i32, i32) {
    %c0_i32 = arith.constant 0 : i32
    %c0_i32_0 = arith.constant 0 : i32
    %c0_i32_1 = arith.constant 0 : i32
    return %c0_i32, %c0_i32_0 : i32, i32
  }
  func.func @transform_5(%arg0: i32) -> (i32, i32) {
    %c0_i32 = arith.constant 0 : i32
    %c0_i32_0 = arith.constant 0 : i32
    %c0_i32_1 = arith.constant 0 : i32
    return %c0_i32, %c0_i32_0 : i32, i32
  }
  func.func @transform_6(%arg0: i32) -> (i32, i32) {
    %c0_i32 = arith.constant 0 : i32
    %c0_i32_0 = arith.constant 0 : i32
    %c0_i32_1 = arith.constant 0 : i32
    return %c0_i32, %c0_i32_0 : i32, i32
  }
  func.func @transform_7(%arg0: i32) -> (i32, i32) {
    %c0_i32 = arith.constant 0 : i32
    %c0_i32_0 = arith.constant 0 : i32
    return %arg0, %c0_i32 : i32, i32
  }
}

</mosaic_0001>

<llo_original>
// kernel: lenet5_forward.3
$region0: #{lenet5_forward.3}
  #allocation0 [shape = 'u32[]', space=smem, size = 0x4, offset = 0x4, fixed_abs, tag = 'smem constant byte address 0x4 - core index']
  #allocation1 [shape = 'u32[72,128]{1,0:T(1,128)}', space=vmem, size = 0x9000, scoped, tag = 'internal scratch']
  %s0 = inlined_call_operand.vmem [shape: f32[392,25], index: 0, kind: input, shape index: {}]
  %s1 = inlined_call_operand.vmem [shape: f32[392,25], index: 1, kind: input, shape index: {}]
  %s2 = inlined_call_operand.vmem [shape: f32[392,25], index: 2, kind: input, shape index: {}]
  %s3 = inlined_call_operand.vmem [shape: f32[392,25], index: 3, kind: input, shape index: {}]
  %s4 = inlined_call_operand.vmem [shape: f32[25,6], index: 4, kind: input, shape index: {}]
  %s5 = inlined_call_operand.vmem [shape: f32[1,6], index: 5, kind: input, shape index: {}]
  %s6 = inlined_call_operand.vmem [shape: f32[392,6], index: 6, kind: output, shape index: {}]
  %s7 = sld [smem:[#allocation0]]
  $region34: #{lenet5_forward.3} parent=0
    _
  %s9 = ssub.s32 1, %s7
  %s10 = scalar_select 0, %s9, %s7
  // Predicated region
  $region2: #{lenet5_forward.3} parent=0 // pred_check
    _
  $region3: #{lenet5_forward.3} parent=0 // pred_check_branch
    %12 = sbr.rel (0) target = $region5
  $region4: #{lenet5_forward.3} parent=0 // pred_region
    _
  $region5: #{lenet5_forward.3} parent=0 // pred_fallthru
    _
  // Predicated region
  $region6: #{lenet5_forward.3} parent=0 // pred_check
    _
  $region7: #{lenet5_forward.3} parent=0 // pred_check_branch
    %14 = sbr.rel (0) target = $region9
  $region8: #{lenet5_forward.3} parent=0 // pred_region
    _
  $region9: #{lenet5_forward.3} parent=0 // pred_fallthru
    _
  // Predicated region
  $region10: #{lenet5_forward.3} parent=0 // pred_check
    _
  $region11: #{lenet5_forward.3} parent=0 // pred_check_branch
    %16 = sbr.rel (0) target = $region13
  $region12: #{lenet5_forward.3} parent=0 // pred_region
    _
  $region13: #{lenet5_forward.3} parent=0 // pred_fallthru
    _
  // Predicated region
  $region14: #{lenet5_forward.3} parent=0 // pred_check
    _
  $region15: #{lenet5_forward.3} parent=0 // pred_check_branch
    %18 = sbr.rel (0) target = $region17
  $region16: #{lenet5_forward.3} parent=0 // pred_region
    _
  $region17: #{lenet5_forward.3} parent=0 // pred_fallthru
    _
  // Predicated region
  $region18: #{lenet5_forward.3} parent=0 // pred_check
    _
  $region19: #{lenet5_forward.3} parent=0 // pred_check_branch
    %20 = sbr.rel (0) target = $region21
  $region20: #{lenet5_forward.3} parent=0 // pred_region
    _
  $region21: #{lenet5_forward.3} parent=0 // pred_fallthru
    _
  // Predicated region
  $region22: #{lenet5_forward.3} parent=0 // pred_check
    _
  $region23: #{lenet5_forward.3} parent=0 // pred_check_branch
    %22 = sbr.rel (0) target = $region25
  $region24: #{lenet5_forward.3} parent=0 // pred_region
    _
  $region25: #{lenet5_forward.3} parent=0 // pred_fallthru
    _
  %v23 = vld [vmem:[%s0] sm:$0xff]
  %v24 = vld [vmem:[%s0 + $0x8] sm:$0xff]
  %v25 = vld [vmem:[%s0 + $0x10] sm:$0xff]
  %v26 = vld [vmem:[%s0 + $0x18] sm:$0xff]
  %v27 = vld [vmem:[%s0 + $0x20] sm:$0xff]
  %v28 = vld [vmem:[%s0 + $0x28] sm:$0xff]
  %v29 = vld [vmem:[%s0 + $0x30] sm:$0xff]
  %v30 = vld [vmem:[%s0 + $0x38] sm:$0xff]
  %v31 = vld [vmem:[%s0 + $0x40] sm:$0xff]
  %v32 = vld [vmem:[%s0 + $0x48] sm:$0xff]
  %v33 = vld [vmem:[%s0 + $0x50] sm:$0xff]
  %v34 = vld [vmem:[%s0 + $0x58] sm:$0xff]
  %v35 = vld [vmem:[%s0 + $0x60] sm:$0xff]
  %v36 = vld [vmem:[%s0 + $0x68] sm:$0xff]
  %v37 = vld [vmem:[%s0 + $0x70] sm:$0xff]
  %v38 = vld [vmem:[%s0 + $0x78] sm:$0xff]
  %v39 = vld [vmem:[%s0 + $0x80] sm:$0xff]
  %v40 = vld [vmem:[%s0 + $0x88] sm:$0xff]
  %v41 = vld [vmem:[%s0 + $0x90] sm:$0xff]
  %v42 = vld [vmem:[%s0 + $0x98] sm:$0xff]
  %v43 = vld [vmem:[%s0 + $0xa0] sm:$0xff]
  %v44 = vld [vmem:[%s0 + $0xa8] sm:$0xff]
  %v45 = vld [vmem:[%s0 + $0xb0] sm:$0xff]
  %v46 = vld [vmem:[%s0 + $0xb8] sm:$0xff]
  %v47 = vld [vmem:[%s0 + $0xc0] sm:$0xff]
  %v48 = vld [vmem:[%s0 + $0xc8] sm:$0xff]
  %v49 = vld [vmem:[%s0 + $0xd0] sm:$0xff]
  %v50 = vld [vmem:[%s0 + $0xd8] sm:$0xff]
  %v51 = vld [vmem:[%s0 + $0xe0] sm:$0xff]
  %v52 = vld [vmem:[%s0 + $0xe8] sm:$0xff]
  %v53 = vld [vmem:[%s0 + $0xf0] sm:$0xff]
  %v54 = vld [vmem:[%s0 + $0xf8] sm:$0xff]
  %v55 = vld [vmem:[%s0 + $0x100] sm:$0xff]
  %v56 = vld [vmem:[%s0 + $0x108] sm:$0xff]
  %v57 = vld [vmem:[%s0 + $0x110] sm:$0xff]
  %v58 = vld [vmem:[%s0 + $0x118] sm:$0xff]
  %v59 = vld [vmem:[%s0 + $0x120] sm:$0xff]
  %v60 = vld [vmem:[%s0 + $0x128] sm:$0xff]
  %v61 = vld [vmem:[%s0 + $0x130] sm:$0xff]
  %v62 = vld [vmem:[%s0 + $0x138] sm:$0xff]
  %v63 = vld [vmem:[%s0 + $0x140] sm:$0xff]
  %v64 = vld [vmem:[%s0 + $0x148] sm:$0xff]
  %v65 = vld [vmem:[%s0 + $0x150] sm:$0xff]
  %v66 = vld [vmem:[%s0 + $0x158] sm:$0xff]
  %v67 = vld [vmem:[%s0 + $0x160] sm:$0xff]
  %v68 = vld [vmem:[%s0 + $0x168] sm:$0xff]
  %v69 = vld [vmem:[%s0 + $0x170] sm:$0xff]
  %v70 = vld [vmem:[%s0 + $0x178] sm:$0xff]
  %v71 = vld [vmem:[%s0 + $0x180] sm:$0xff]
  %v72 = vld [vmem:[%s4] sm:$0xff]
  %v73 = vld [vmem:[%s4 + $0x8] sm:$0xff]
  %v74 = vld [vmem:[%s4 + $0x10] sm:$0xff]
  %v75 = vld [vmem:[%s4 + $0x18] sm:$0x1]
  %v76 = vld [vmem:[%s5] sm:$0x1]
  %v78 = vperm.slane %v76, 0
  %vm80 = vcmask 203776
  %v82 = vsel %vm80, %v23, 0
  %v85 = vsel %vm80, %v24, 0
  %v88 = vsel %vm80, %v25, 0
  %v91 = vsel %vm80, %v26, 0
  %v94 = vsel %vm80, %v27, 0
  %v97 = vsel %vm80, %v28, 0
  %v100 = vsel %vm80, %v29, 0
  %v103 = vsel %vm80, %v30, 0
  %v106 = vsel %vm80, %v31, 0
  %v109 = vsel %vm80, %v32, 0
  %v112 = vsel %vm80, %v33, 0
  %v115 = vsel %vm80, %v34, 0
  %v118 = vsel %vm80, %v35, 0
  %v121 = vsel %vm80, %v36, 0
  %v124 = vsel %vm80, %v37, 0
  %v127 = vsel %vm80, %v38, 0
  %v130 = vsel %vm80, %v39, 0
  %v133 = vsel %vm80, %v40, 0
  %v136 = vsel %vm80, %v41, 0
  %v139 = vsel %vm80, %v42, 0
  %v142 = vsel %vm80, %v43, 0
  %v145 = vsel %vm80, %v44, 0
  %v148 = vsel %vm80, %v45, 0
  %v151 = vsel %vm80, %v46, 0
  %v154 = vsel %vm80, %v47, 0
  %v157 = vsel %vm80, %v48, 0
  %v160 = vsel %vm80, %v49, 0
  %v163 = vsel %vm80, %v50, 0
  %v166 = vsel %vm80, %v51, 0
  %v169 = vsel %vm80, %v52, 0
  %v172 = vsel %vm80, %v53, 0
  %v175 = vsel %vm80, %v54, 0
  %v178 = vsel %vm80, %v55, 0
  %v181 = vsel %vm80, %v56, 0
  %v184 = vsel %vm80, %v57, 0
  %v187 = vsel %vm80, %v58, 0
  %v190 = vsel %vm80, %v59, 0
  %v193 = vsel %vm80, %v60, 0
  %v196 = vsel %vm80, %v61, 0
  %v199 = vsel %vm80, %v62, 0
  %v202 = vsel %vm80, %v63, 0
  %v205 = vsel %vm80, %v64, 0
  %v208 = vsel %vm80, %v65, 0
  %v211 = vsel %vm80, %v66, 0
  %v214 = vsel %vm80, %v67, 0
  %v217 = vsel %vm80, %v68, 0
  %v220 = vsel %vm80, %v69, 0
  %v223 = vsel %vm80, %v70, 0
  %v226 = vsel %vm80, %v71, 0
  %vm228 = vcmask 1040384
  %v230 = vsel %vm228, %v75, 0
  %232 = vmatpush.msra.mxu0 0.0
  %233 = vmatpush.msra.mxu0 0.0
  %234 = vmatpush.msra.mxu0 0.0
  %235 = vmatpush.msra.mxu0 0.0
  %236 = vmatpush.msra.mxu0 0.0
  %237 = vmatpush.msra.mxu0 0.0
  %238 = vmatpush.msra.mxu0 0.0
  %239 = vmatpush.msra.mxu0 0.0
  %240 = vmatpush.msra.mxu0 0.0
  %241 = vmatpush.msra.mxu0 0.0
  %242 = vmatpush.msra.mxu0 0.0
  %243 = vmatpush.msra.mxu0 0.0
  %244 = vmatpush.msra.mxu0 %v230
  %245 = vmatpush.msra.mxu0 %v74
  %246 = vmatpush.msra.mxu0 %v73
  %247 = vmatpush.msra.mxu0 %v72
  %248 = vmatmul.f32.gmra.mxu0 %v82
  %v249 = vpop.f32.mrf.mxu0
  %v250 = vadd.f32 %v78, %v249
  %251 = vmatmul.f32.gmra.mxu0 %v85
  %v252 = vpop.f32.mrf.mxu0
  %v253 = vadd.f32 %v78, %v252
  %254 = vmatmul.f32.gmra.mxu0 %v88
  %v255 = vpop.f32.mrf.mxu0
  %v256 = vadd.f32 %v78, %v255
  %257 = vmatmul.f32.gmra.mxu0 %v91
  %v258 = vpop.f32.mrf.mxu0
  %v259 = vadd.f32 %v78, %v258
  %260 = vmatmul.f32.gmra.mxu0 %v94
  %v261 = vpop.f32.mrf.mxu0
  %v262 = vadd.f32 %v78, %v261
  %263 = vmatmul.f32.gmra.mxu0 %v97
  %v264 = vpop.f32.mrf.mxu0
  %v265 = vadd.f32 %v78, %v264
  %266 = vmatmul.f32.gmra.mxu0 %v100
  %v267 = vpop.f32.mrf.mxu0
  %v268 = vadd.f32 %v78, %v267
  %269 = vmatmul.f32.gmra.mxu0 %v103
  %v270 = vpop.f32.mrf.mxu0
  %v271 = vadd.f32 %v78, %v270
  %272 = vmatmul.f32.gmra.mxu0 %v106
  %v273 = vpop.f32.mrf.mxu0
  %v274 = vadd.f32 %v78, %v273
  %275 = vmatmul.f32.gmra.mxu0 %v109
  %v276 = vpop.f32.mrf.mxu0
  %v277 = vadd.f32 %v78, %v276
  %278 = vmatmul.f32.gmra.mxu0 %v112
  %v279 = vpop.f32.mrf.mxu0
  %v280 = vadd.f32 %v78, %v279
  %281 = vmatmul.f32.gmra.mxu0 %v115
  %v282 = vpop.f32.mrf.mxu0
  %v283 = vadd.f32 %v78, %v282
  %284 = vmatmul.f32.gmra.mxu0 %v118
  %v285 = vpop.f32.mrf.mxu0
  %v286 = vadd.f32 %v78, %v285
  %287 = vmatmul.f32.gmra.mxu0 %v121
  %v288 = vpop.f32.mrf.mxu0
  %v289 = vadd.f32 %v78, %v288
  %290 = vmatmul.f32.gmra.mxu0 %v124
  %v291 = vpop.f32.mrf.mxu0
  %v292 = vadd.f32 %v78, %v291
  %293 = vmatmul.f32.gmra.mxu0 %v127
  %v294 = vpop.f32.mrf.mxu0
  %v295 = vadd.f32 %v78, %v294
  %296 = vmatmul.f32.gmra.mxu0 %v130
  %v297 = vpop.f32.mrf.mxu0
  %v298 = vadd.f32 %v78, %v297
  %299 = vmatmul.f32.gmra.mxu0 %v133
  %v300 = vpop.f32.mrf.mxu0
  %v301 = vadd.f32 %v78, %v300
  %302 = vmatmul.f32.gmra.mxu0 %v136
  %v303 = vpop.f32.mrf.mxu0
  %v304 = vadd.f32 %v78, %v303
  %305 = vmatmul.f32.gmra.mxu0 %v139
  %v306 = vpop.f32.mrf.mxu0
  %v307 = vadd.f32 %v78, %v306
  %308 = vmatmul.f32.gmra.mxu0 %v142
  %v309 = vpop.f32.mrf.mxu0
  %v310 = vadd.f32 %v78, %v309
  %311 = vmatmul.f32.gmra.mxu0 %v145
  %v312 = vpop.f32.mrf.mxu0
  %v313 = vadd.f32 %v78, %v312
  %314 = vmatmul.f32.gmra.mxu0 %v148
  %v315 = vpop.f32.mrf.mxu0
  %v316 = vadd.f32 %v78, %v315
  %317 = vmatmul.f32.gmra.mxu0 %v151
  %v318 = vpop.f32.mrf.mxu0
  %v319 = vadd.f32 %v78, %v318
  %320 = vmatmul.f32.gmra.mxu0 %v154
  %v321 = vpop.f32.mrf.mxu0
  %v322 = vadd.f32 %v78, %v321
  %323 = vmatmul.f32.gmra.mxu0 %v157
  %v324 = vpop.f32.mrf.mxu0
  %v325 = vadd.f32 %v78, %v324
  %326 = vmatmul.f32.gmra.mxu0 %v160
  %v327 = vpop.f32.mrf.mxu0
  %v328 = vadd.f32 %v78, %v327
  %329 = vmatmul.f32.gmra.mxu0 %v163
  %v330 = vpop.f32.mrf.mxu0
  %v331 = vadd.f32 %v78, %v330
  %332 = vmatmul.f32.gmra.mxu0 %v166
  %v333 = vpop.f32.mrf.mxu0
  %v334 = vadd.f32 %v78, %v333
  %335 = vmatmul.f32.gmra.mxu0 %v169
  %v336 = vpop.f32.mrf.mxu0
  %v337 = vadd.f32 %v78, %v336
  %338 = vmatmul.f32.gmra.mxu0 %v172
  %v339 = vpop.f32.mrf.mxu0
  %v340 = vadd.f32 %v78, %v339
  %341 = vmatmul.f32.gmra.mxu0 %v175
  %v342 = vpop.f32.mrf.mxu0
  %v343 = vadd.f32 %v78, %v342
  %344 = vmatmul.f32.gmra.mxu0 %v178
  %v345 = vpop.f32.mrf.mxu0
  %v346 = vadd.f32 %v78, %v345
  %347 = vmatmul.f32.gmra.mxu0 %v181
  %v348 = vpop.f32.mrf.mxu0
  %v349 = vadd.f32 %v78, %v348
  %350 = vmatmul.f32.gmra.mxu0 %v184
  %v351 = vpop.f32.mrf.mxu0
  %v352 = vadd.f32 %v78, %v351
  %353 = vmatmul.f32.gmra.mxu0 %v187
  %v354 = vpop.f32.mrf.mxu0
  %v355 = vadd.f32 %v78, %v354
  %356 = vmatmul.f32.gmra.mxu0 %v190
  %v357 = vpop.f32.mrf.mxu0
  %v358 = vadd.f32 %v78, %v357
  %359 = vmatmul.f32.gmra.mxu0 %v193
  %v360 = vpop.f32.mrf.mxu0
  %v361 = vadd.f32 %v78, %v360
  %362 = vmatmul.f32.gmra.mxu0 %v196
  %v363 = vpop.f32.mrf.mxu0
  %v364 = vadd.f32 %v78, %v363
  %365 = vmatmul.f32.gmra.mxu0 %v199
  %v366 = vpop.f32.mrf.mxu0
  %v367 = vadd.f32 %v78, %v366
  %368 = vmatmul.f32.gmra.mxu0 %v202
  %v369 = vpop.f32.mrf.mxu0
  %v370 = vadd.f32 %v78, %v369
  %371 = vmatmul.f32.gmra.mxu0 %v205
  %v372 = vpop.f32.mrf.mxu0
  %v373 = vadd.f32 %v78, %v372
  %374 = vmatmul.f32.gmra.mxu0 %v208
  %v375 = vpop.f32.mrf.mxu0
  %v376 = vadd.f32 %v78, %v375
  %377 = vmatmul.f32.gmra.mxu0 %v211
  %v378 = vpop.f32.mrf.mxu0
  %v379 = vadd.f32 %v78, %v378
  %380 = vmatmul.f32.gmra.mxu0 %v214
  %v381 = vpop.f32.mrf.mxu0
  %v382 = vadd.f32 %v78, %v381
  %383 = vmatmul.f32.gmra.mxu0 %v217
  %v384 = vpop.f32.mrf.mxu0
  %v385 = vadd.f32 %v78, %v384
  %386 = vmatmul.f32.gmra.mxu0 %v220
  %v387 = vpop.f32.mrf.mxu0
  %v388 = vadd.f32 %v78, %v387
  %389 = vmatmul.f32.gmra.mxu0 %v223
  %v390 = vpop.f32.mrf.mxu0
  %v391 = vadd.f32 %v78, %v390
  %392 = vmatmul.f32.gmra.mxu0 %v226
  %v393 = vpop.f32.mrf.mxu0
  %v394 = vadd.f32 %v78, %v393
  %395 = vdwg.mxu0
  %v396 = vsub.f32 0.0, %v250
  %v397 = vsub.f32 0.0, %v253
  %v398 = vsub.f32 0.0, %v256
  %v399 = vsub.f32 0.0, %v259
  %v400 = vsub.f32 0.0, %v262
  %v401 = vsub.f32 0.0, %v265
  %v402 = vsub.f32 0.0, %v268
  %v403 = vsub.f32 0.0, %v271
  %v404 = vsub.f32 0.0, %v274
  %v405 = vsub.f32 0.0, %v277
  %v406 = vsub.f32 0.0, %v280
  %v407 = vsub.f32 0.0, %v283
  %v408 = vsub.f32 0.0, %v286
  %v409 = vsub.f32 0.0, %v289
  %v410 = vsub.f32 0.0, %v292
  %v411 = vsub.f32 0.0, %v295
  %v412 = vsub.f32 0.0, %v298
  %v413 = vsub.f32 0.0, %v301
  %v414 = vsub.f32 0.0, %v304
  %v415 = vsub.f32 0.0, %v307
  %v416 = vsub.f32 0.0, %v310
  %v417 = vsub.f32 0.0, %v313
  %v418 = vsub.f32 0.0, %v316
  %v419 = vsub.f32 0.0, %v319
  %v420 = vsub.f32 0.0, %v322
  %v421 = vsub.f32 0.0, %v325
  %v422 = vsub.f32 0.0, %v328
  %v423 = vsub.f32 0.0, %v331
  %v424 = vsub.f32 0.0, %v334
  %v425 = vsub.f32 0.0, %v337
  %v426 = vsub.f32 0.0, %v340
  %v427 = vsub.f32 0.0, %v343
  %v428 = vsub.f32 0.0, %v346
  %v429 = vsub.f32 0.0, %v349
  %v430 = vsub.f32 0.0, %v352
  %v431 = vsub.f32 0.0, %v355
  %v432 = vsub.f32 0.0, %v358
  %v433 = vsub.f32 0.0, %v361
  %v434 = vsub.f32 0.0, %v364
  %v435 = vsub.f32 0.0, %v367
  %v436 = vsub.f32 0.0, %v370
  %v437 = vsub.f32 0.0, %v373
  %v438 = vsub.f32 0.0, %v376
  %v439 = vsub.f32 0.0, %v379
  %v440 = vsub.f32 0.0, %v382
  %v441 = vsub.f32 0.0, %v385
  %v442 = vsub.f32 0.0, %v388
  %v443 = vsub.f32 0.0, %v391
  %v444 = vsub.f32 0.0, %v394
  %v445 = vmul.f32 %v396, 1.442695
  %v446 = vpow.pop %v445
  %v447 = vmul.f32 %v397, 1.442695
  %v448 = vpow.pop %v447
  %v449 = vmul.f32 %v398, 1.442695
  %v450 = vpow.pop %v449
  %v451 = vmul.f32 %v399, 1.442695
  %v452 = vpow.pop %v451
  %v453 = vmul.f32 %v400, 1.442695
  %v454 = vpow.pop %v453
  %v455 = vmul.f32 %v401, 1.442695
  %v456 = vpow.pop %v455
  %v457 = vmul.f32 %v402, 1.442695
  %v458 = vpow.pop %v457
  %v459 = vmul.f32 %v403, 1.442695
  %v460 = vpow.pop %v459
  %v461 = vmul.f32 %v404, 1.442695
  %v462 = vpow.pop %v461
  %v463 = vmul.f32 %v405, 1.442695
  %v464 = vpow.pop %v463
  %v465 = vmul.f32 %v406, 1.442695
  %v466 = vpow.pop %v465
  %v467 = vmul.f32 %v407, 1.442695
  %v468 = vpow.pop %v467
  %v469 = vmul.f32 %v408, 1.442695
  %v470 = vpow.pop %v469
  %v471 = vmul.f32 %v409, 1.442695
  %v472 = vpow.pop %v471
  %v473 = vmul.f32 %v410, 1.442695
  %v474 = vpow.pop %v473
  %v475 = vmul.f32 %v411, 1.442695
  %v476 = vpow.pop %v475
  %v477 = vmul.f32 %v412, 1.442695
  %v478 = vpow.pop %v477
  %v479 = vmul.f32 %v413, 1.442695
  %v480 = vpow.pop %v479
  %v481 = vmul.f32 %v414, 1.442695
  %v482 = vpow.pop %v481
  %v483 = vmul.f32 %v415, 1.442695
  %v484 = vpow.pop %v483
  %v485 = vmul.f32 %v416, 1.442695
  %v486 = vpow.pop %v485
  %v487 = vmul.f32 %v417, 1.442695
  %v488 = vpow.pop %v487
  %v489 = vmul.f32 %v418, 1.442695
  %v490 = vpow.pop %v489
  %v491 = vmul.f32 %v419, 1.442695
  %v492 = vpow.pop %v491
  %v493 = vmul.f32 %v420, 1.442695
  %v494 = vpow.pop %v493
  %v495 = vmul.f32 %v421, 1.442695
  %v496 = vpow.pop %v495
  %v497 = vmul.f32 %v422, 1.442695
  %v498 = vpow.pop %v497
  %v499 = vmul.f32 %v423, 1.442695
  %v500 = vpow.pop %v499
  %v501 = vmul.f32 %v424, 1.442695
  %v502 = vpow.pop %v501
  %v503 = vmul.f32 %v425, 1.442695
  %v504 = vpow.pop %v503
  %v505 = vmul.f32 %v426, 1.442695
  %v506 = vpow.pop %v505
  %v507 = vmul.f32 %v427, 1.442695
  %v508 = vpow.pop %v507
  %v509 = vmul.f32 %v428, 1.442695
  %v510 = vpow.pop %v509
  %v511 = vmul.f32 %v429, 1.442695
  %v512 = vpow.pop %v511
  %v513 = vmul.f32 %v430, 1.442695
  %v514 = vpow.pop %v513
  %v515 = vmul.f32 %v431, 1.442695
  %v516 = vpow.pop %v515
  %v517 = vmul.f32 %v432, 1.442695
  %v518 = vpow.pop %v517
  %v519 = vmul.f32 %v433, 1.442695
  %v520 = vpow.pop %v519
  %v521 = vmul.f32 %v434, 1.442695
  %v522 = vpow.pop %v521
  %v523 = vmul.f32 %v435, 1.442695
  %v524 = vpow.pop %v523
  %v525 = vmul.f32 %v436, 1.442695
  %v526 = vpow.pop %v525
  %v527 = vmul.f32 %v437, 1.442695
  %v528 = vpow.pop %v527
  %v529 = vmul.f32 %v438, 1.442695
  %v530 = vpow.pop %v529
  %v531 = vmul.f32 %v439, 1.442695
  %v532 = vpow.pop %v531
  %v533 = vmul.f32 %v440, 1.442695
  %v534 = vpow.pop %v533
  %v535 = vmul.f32 %v441, 1.442695
  %v536 = vpow.pop %v535
  %v537 = vmul.f32 %v442, 1.442695
  %v538 = vpow.pop %v537
  %v539 = vmul.f32 %v443, 1.442695
  %v540 = vpow.pop %v539
  %v541 = vmul.f32 %v444, 1.442695
  %v542 = vpow.pop %v541
  %v543 = vadd.f32 %v446, 1.0
  %v544 = vadd.f32 %v448, 1.0
  %v545 = vadd.f32 %v450, 1.0
  %v546 = vadd.f32 %v452, 1.0
  %v547 = vadd.f32 %v454, 1.0
  %v548 = vadd.f32 %v456, 1.0
  %v549 = vadd.f32 %v458, 1.0
  %v550 = vadd.f32 %v460, 1.0
  %v551 = vadd.f32 %v462, 1.0
  %v552 = vadd.f32 %v464, 1.0
  %v553 = vadd.f32 %v466, 1.0
  %v554 = vadd.f32 %v468, 1.0
  %v555 = vadd.f32 %v470, 1.0
  %v556 = vadd.f32 %v472, 1.0
  %v557 = vadd.f32 %v474, 1.0
  %v558 = vadd.f32 %v476, 1.0
  %v559 = vadd.f32 %v478, 1.0
  %v560 = vadd.f32 %v480, 1.0
  %v561 = vadd.f32 %v482, 1.0
  %v562 = vadd.f32 %v484, 1.0
  %v563 = vadd.f32 %v486, 1.0
  %v564 = vadd.f32 %v488, 1.0
  %v565 = vadd.f32 %v490, 1.0
  %v566 = vadd.f32 %v492, 1.0
  %v567 = vadd.f32 %v494, 1.0
  %v568 = vadd.f32 %v496, 1.0
  %v569 = vadd.f32 %v498, 1.0
  %v570 = vadd.f32 %v500, 1.0
  %v571 = vadd.f32 %v502, 1.0
  %v572 = vadd.f32 %v504, 1.0
  %v573 = vadd.f32 %v506, 1.0
  %v574 = vadd.f32 %v508, 1.0
  %v575 = vadd.f32 %v510, 1.0
  %v576 = vadd.f32 %v512, 1.0
  %v577 = vadd.f32 %v514, 1.0
  %v578 = vadd.f32 %v516, 1.0
  %v579 = vadd.f32 %v518, 1.0
  %v580 = vadd.f32 %v520, 1.0
  %v581 = vadd.f32 %v522, 1.0
  %v582 = vadd.f32 %v524, 1.0
  %v583 = vadd.f32 %v526, 1.0
  %v584 = vadd.f32 %v528, 1.0
  %v585 = vadd.f32 %v530, 1.0
  %v586 = vadd.f32 %v532, 1.0
  %v587 = vadd.f32 %v534, 1.0
  %v588 = vadd.f32 %v536, 1.0
  %v589 = vadd.f32 %v538, 1.0
  %v590 = vadd.f32 %v540, 1.0
  %v591 = vadd.f32 %v542, 1.0
  %v592 = vrcp.pop %v543
  %v593 = vrcp.pop %v544
  %v594 = vrcp.pop %v545
  %v595 = vrcp.pop %v546
  %v596 = vrcp.pop %v547
  %v597 = vrcp.pop %v548
  %v598 = vrcp.pop %v549
  %v599 = vrcp.pop %v550
  %v600 = vrcp.pop %v551
  %v601 = vrcp.pop %v552
  %v602 = vrcp.pop %v553
  %v603 = vrcp.pop %v554
  %v604 = vrcp.pop %v555
  %v605 = vrcp.pop %v556
  %v606 = vrcp.pop %v557
  %v607 = vrcp.pop %v558
  %v608 = vrcp.pop %v559
  %v609 = vrcp.pop %v560
  %v610 = vrcp.pop %v561
  %v611 = vrcp.pop %v562
  %v612 = vrcp.pop %v563
  %v613 = vrcp.pop %v564
  %v614 = vrcp.pop %v565
  %v615 = vrcp.pop %v566
  %v616 = vrcp.pop %v567
  %v617 = vrcp.pop %v568
  %v618 = vrcp.pop %v569
  %v619 = vrcp.pop %v570
  %v620 = vrcp.pop %v571
  %v621 = vrcp.pop %v572
  %v622 = vrcp.pop %v573
  %v623 = vrcp.pop %v574
  %v624 = vrcp.pop %v575
  %v625 = vrcp.pop %v576
  %v626 = vrcp.pop %v577
  %v627 = vrcp.pop %v578
  %v628 = vrcp.pop %v579
  %v629 = vrcp.pop %v580
  %v630 = vrcp.pop %v581
  %v631 = vrcp.pop %v582
  %v632 = vrcp.pop %v583
  %v633 = vrcp.pop %v584
  %v634 = vrcp.pop %v585
  %v635 = vrcp.pop %v586
  %v636 = vrcp.pop %v587
  %v637 = vrcp.pop %v588
  %v638 = vrcp.pop %v589
  %v639 = vrcp.pop %v590
  %v640 = vrcp.pop %v591
  %v641 = vmul.f32 %v250, %v592
  %v642 = vmul.f32 %v253, %v593
  %v643 = vmul.f32 %v256, %v594
  %v644 = vmul.f32 %v259, %v595
  %v645 = vmul.f32 %v262, %v596
  %v646 = vmul.f32 %v265, %v597
  %v647 = vmul.f32 %v268, %v598
  %v648 = vmul.f32 %v271, %v599
  %v649 = vmul.f32 %v274, %v600
  %v650 = vmul.f32 %v277, %v601
  %v651 = vmul.f32 %v280, %v602
  %v652 = vmul.f32 %v283, %v603
  %v653 = vmul.f32 %v286, %v604
  %v654 = vmul.f32 %v289, %v605
  %v655 = vmul.f32 %v292, %v606
  %v656 = vmul.f32 %v295, %v607
  %v657 = vmul.f32 %v298, %v608
  %v658 = vmul.f32 %v301, %v609
  %v659 = vmul.f32 %v304, %v610
  %v660 = vmul.f32 %v307, %v611
  %v661 = vmul.f32 %v310, %v612
  %v662 = vmul.f32 %v313, %v613
  %v663 = vmul.f32 %v316, %v614
  %v664 = vmul.f32 %v319, %v615
  %v665 = vmul.f32 %v322, %v616
  %v666 = vmul.f32 %v325, %v617
  %v667 = vmul.f32 %v328, %v618
  %v668 = vmul.f32 %v331, %v619
  %v669 = vmul.f32 %v334, %v620
  %v670 = vmul.f32 %v337, %v621
  %v671 = vmul.f32 %v340, %v622
  %v672 = vmul.f32 %v343, %v623
  %v673 = vmul.f32 %v346, %v624
  %v674 = vmul.f32 %v349, %v625
  %v675 = vmul.f32 %v352, %v626
  %v676 = vmul.f32 %v355, %v627
  %v677 = vmul.f32 %v358, %v628
  %v678 = vmul.f32 %v361, %v629
  %v679 = vmul.f32 %v364, %v630
  %v680 = vmul.f32 %v367, %v631
  %v681 = vmul.f32 %v370, %v632
  %v682 = vmul.f32 %v373, %v633
  %v683 = vmul.f32 %v376, %v634
  %v684 = vmul.f32 %v379, %v635
  %v685 = vmul.f32 %v382, %v636
  %v686 = vmul.f32 %v385, %v637
  %v687 = vmul.f32 %v388, %v638
  %v688 = vmul.f32 %v391, %v639
  %v689 = vmul.f32 %v394, %v640
  %v690 = vld [vmem:[%s1] sm:$0xff]
  %v691 = vld [vmem:[%s1 + $0x8] sm:$0xff]
  %v692 = vld [vmem:[%s1 + $0x10] sm:$0xff]
  %v693 = vld [vmem:[%s1 + $0x18] sm:$0xff]
  %v694 = vld [vmem:[%s1 + $0x20] sm:$0xff]
  %v695 = vld [vmem:[%s1 + $0x28] sm:$0xff]
  %v696 = vld [vmem:[%s1 + $0x30] sm:$0xff]
  %v697 = vld [vmem:[%s1 + $0x38] sm:$0xff]
  %v698 = vld [vmem:[%s1 + $0x40] sm:$0xff]
  %v699 = vld [vmem:[%s1 + $0x48] sm:$0xff]
  %v700 = vld [vmem:[%s1 + $0x50] sm:$0xff]
  %v701 = vld [vmem:[%s1 + $0x58] sm:$0xff]
  %v702 = vld [vmem:[%s1 + $0x60] sm:$0xff]
  %v703 = vld [vmem:[%s1 + $0x68] sm:$0xff]
  %v704 = vld [vmem:[%s1 + $0x70] sm:$0xff]
  %v705 = vld [vmem:[%s1 + $0x78] sm:$0xff]
  %v706 = vld [vmem:[%s1 + $0x80] sm:$0xff]
  %v707 = vld [vmem:[%s1 + $0x88] sm:$0xff]
  %v708 = vld [vmem:[%s1 + $0x90] sm:$0xff]
  %v709 = vld [vmem:[%s1 + $0x98] sm:$0xff]
  %v710 = vld [vmem:[%s1 + $0xa0] sm:$0xff]
  %v711 = vld [vmem:[%s1 + $0xa8] sm:$0xff]
  %v712 = vld [vmem:[%s1 + $0xb0] sm:$0xff]
  %v713 = vld [vmem:[%s1 + $0xb8] sm:$0xff]
  %v714 = vld [vmem:[%s1 + $0xc0] sm:$0xff]
  %v715 = vld [vmem:[%s1 + $0xc8] sm:$0xff]
  %v716 = vld [vmem:[%s1 + $0xd0] sm:$0xff]
  %v717 = vld [vmem:[%s1 + $0xd8] sm:$0xff]
  %v718 = vld [vmem:[%s1 + $0xe0] sm:$0xff]
  %v719 = vld [vmem:[%s1 + $0xe8] sm:$0xff]
  %v720 = vld [vmem:[%s1 + $0xf0] sm:$0xff]
  %v721 = vld [vmem:[%s1 + $0xf8] sm:$0xff]
  %v722 = vld [vmem:[%s1 + $0x100] sm:$0xff]
  %v723 = vld [vmem:[%s1 + $0x108] sm:$0xff]
  %v724 = vld [vmem:[%s1 + $0x110] sm:$0xff]
  %v725 = vld [vmem:[%s1 + $0x118] sm:$0xff]
  %v726 = vld [vmem:[%s1 + $0x120] sm:$0xff]
  %v727 = vld [vmem:[%s1 + $0x128] sm:$0xff]
  %v728 = vld [vmem:[%s1 + $0x130] sm:$0xff]
  %v729 = vld [vmem:[%s1 + $0x138] sm:$0xff]
  %v730 = vld [vmem:[%s1 + $0x140] sm:$0xff]
  %v731 = vld [vmem:[%s1 + $0x148] sm:$0xff]
  %v732 = vld [vmem:[%s1 + $0x150] sm:$0xff]
  %v733 = vld [vmem:[%s1 + $0x158] sm:$0xff]
  %v734 = vld [vmem:[%s1 + $0x160] sm:$0xff]
  %v735 = vld [vmem:[%s1 + $0x168] sm:$0xff]
  %v736 = vld [vmem:[%s1 + $0x170] sm:$0xff]
  %v737 = vld [vmem:[%s1 + $0x178] sm:$0xff]
  %v738 = vld [vmem:[%s1 + $0x180] sm:$0xff]
  %v740 = vsel %vm80, %v690, 0
  %v743 = vsel %vm80, %v691, 0
  %v746 = vsel %vm80, %v692, 0
  %v749 = vsel %vm80, %v693, 0
  %v752 = vsel %vm80, %v694, 0
  %v755 = vsel %vm80, %v695, 0
  %v758 = vsel %vm80, %v696, 0
  %v761 = vsel %vm80, %v697, 0
  %v764 = vsel %vm80, %v698, 0
  %v767 = vsel %vm80, %v699, 0
  %v770 = vsel %vm80, %v700, 0
  %v773 = vsel %vm80, %v701, 0
  %v776 = vsel %vm80, %v702, 0
  %v779 = vsel %vm80, %v703, 0
  %v782 = vsel %vm80, %v704, 0
  %v785 = vsel %vm80, %v705, 0
  %v788 = vsel %vm80, %v706, 0
  %v791 = vsel %vm80, %v707, 0
  %v794 = vsel %vm80, %v708, 0
  %v797 = vsel %vm80, %v709, 0
  %v800 = vsel %vm80, %v710, 0
  %v803 = vsel %vm80, %v711, 0
  %v806 = vsel %vm80, %v712, 0
  %v809 = vsel %vm80, %v713, 0
  %v812 = vsel %vm80, %v714, 0
  %v815 = vsel %vm80, %v715, 0
  %v818 = vsel %vm80, %v716, 0
  %v821 = vsel %vm80, %v717, 0
  %v824 = vsel %vm80, %v718, 0
  %v827 = vsel %vm80, %v719, 0
  %v830 = vsel %vm80, %v720, 0
  %v833 = vsel %vm80, %v721, 0
  %v836 = vsel %vm80, %v722, 0
  %v839 = vsel %vm80, %v723, 0
  %v842 = vsel %vm80, %v724, 0
  %v845 = vsel %vm80, %v725, 0
  %v848 = vsel %vm80, %v726, 0
  %v851 = vsel %vm80, %v727, 0
  %v854 = vsel %vm80, %v728, 0
  %v857 = vsel %vm80, %v729, 0
  %v860 = vsel %vm80, %v730, 0
  %v863 = vsel %vm80, %v731, 0
  %v866 = vsel %vm80, %v732, 0
  %v869 = vsel %vm80, %v733, 0
  %v872 = vsel %vm80, %v734, 0
  %v875 = vsel %vm80, %v735, 0
  %v878 = vsel %vm80, %v736, 0
  %v881 = vsel %vm80, %v737, 0
  %v884 = vsel %vm80, %v738, 0
  %886 = vmatpush.msra.mxu0 0.0
  %887 = vmatpush.msra.mxu0 0.0
  %888 = vmatpush.msra.mxu0 0.0
  %889 = vmatpush.msra.mxu0 0.0
  %890 = vmatpush.msra.mxu0 0.0
  %891 = vmatpush.msra.mxu0 0.0
  %892 = vmatpush.msra.mxu0 0.0
  %893 = vmatpush.msra.mxu0 0.0
  %894 = vmatpush.msra.mxu0 0.0
  %895 = vmatpush.msra.mxu0 0.0
  %896 = vmatpush.msra.mxu0 0.0
  %897 = vmatpush.msra.mxu0 0.0
  %898 = vmatpush.msra.mxu0 %v230
  %899 = vmatpush.msra.mxu0 %v74
  %900 = vmatpush.msra.mxu0 %v73
  %901 = vmatpush.msra.mxu0 %v72
  %902 = vmatmul.f32.gmra.mxu0 %v740
  %v903 = vpop.f32.mrf.mxu0
  %v904 = vadd.f32 %v78, %v903
  %905 = vmatmul.f32.gmra.mxu0 %v743
  %v906 = vpop.f32.mrf.mxu0
  %v907 = vadd.f32 %v78, %v906
  %908 = vmatmul.f32.gmra.mxu0 %v746
  %v909 = vpop.f32.mrf.mxu0
  %v910 = vadd.f32 %v78, %v909
  %911 = vmatmul.f32.gmra.mxu0 %v749
  %v912 = vpop.f32.mrf.mxu0
  %v913 = vadd.f32 %v78, %v912
  %914 = vmatmul.f32.gmra.mxu0 %v752
  %v915 = vpop.f32.mrf.mxu0
  %v916 = vadd.f32 %v78, %v915
  %917 = vmatmul.f32.gmra.mxu0 %v755
  %v918 = vpop.f32.mrf.mxu0
  %v919 = vadd.f32 %v78, %v918
  %920 = vmatmul.f32.gmra.mxu0 %v758
  %v921 = vpop.f32.mrf.mxu0
  %v922 = vadd.f32 %v78, %v921
  %923 = vmatmul.f32.gmra.mxu0 %v761
  %v924 = vpop.f32.mrf.mxu0
  %v925 = vadd.f32 %v78, %v924
  %926 = vmatmul.f32.gmra.mxu0 %v764
  %v927 = vpop.f32.mrf.mxu0
  %v928 = vadd.f32 %v78, %v927
  %929 = vmatmul.f32.gmra.mxu0 %v767
  %v930 = vpop.f32.mrf.mxu0
  %v931 = vadd.f32 %v78, %v930
  %932 = vmatmul.f32.gmra.mxu0 %v770
  %v933 = vpop.f32.mrf.mxu0
  %v934 = vadd.f32 %v78, %v933
  %935 = vmatmul.f32.gmra.mxu0 %v773
  %v936 = vpop.f32.mrf.mxu0
  %v937 = vadd.f32 %v78, %v936
  %938 = vmatmul.f32.gmra.mxu0 %v776
  %v939 = vpop.f32.mrf.mxu0
  %v940 = vadd.f32 %v78, %v939
  %941 = vmatmul.f32.gmra.mxu0 %v779
  %v942 = vpop.f32.mrf.mxu0
  %v943 = vadd.f32 %v78, %v942
  %944 = vmatmul.f32.gmra.mxu0 %v782
  %v945 = vpop.f32.mrf.mxu0
  %v946 = vadd.f32 %v78, %v945
  %947 = vmatmul.f32.gmra.mxu0 %v785
  %v948 = vpop.f32.mrf.mxu0
  %v949 = vadd.f32 %v78, %v948
  %950 = vmatmul.f32.gmra.mxu0 %v788
  %v951 = vpop.f32.mrf.mxu0
  %v952 = vadd.f32 %v78, %v951
  %953 = vmatmul.f32.gmra.mxu0 %v791
  %v954 = vpop.f32.mrf.mxu0
  %v955 = vadd.f32 %v78, %v954
  %956 = vmatmul.f32.gmra.mxu0 %v794
  %v957 = vpop.f32.mrf.mxu0
  %v958 = vadd.f32 %v78, %v957
  %959 = vmatmul.f32.gmra.mxu0 %v797
  %v960 = vpop.f32.mrf.mxu0
  %v961 = vadd.f32 %v78, %v960
  %962 = vmatmul.f32.gmra.mxu0 %v800
  %v963 = vpop.f32.mrf.mxu0
  %v964 = vadd.f32 %v78, %v963
  %965 = vmatmul.f32.gmra.mxu0 %v803
  %v966 = vpop.f32.mrf.mxu0
  %v967 = vadd.f32 %v78, %v966
  %968 = vmatmul.f32.gmra.mxu0 %v806
  %v969 = vpop.f32.mrf.mxu0
  %v970 = vadd.f32 %v78, %v969
  %971 = vmatmul.f32.gmra.mxu0 %v809
  %v972 = vpop.f32.mrf.mxu0
  %v973 = vadd.f32 %v78, %v972
  %974 = vmatmul.f32.gmra.mxu0 %v812
  %v975 = vpop.f32.mrf.mxu0
  %v976 = vadd.f32 %v78, %v975
  %977 = vmatmul.f32.gmra.mxu0 %v815
  %v978 = vpop.f32.mrf.mxu0
  %v979 = vadd.f32 %v78, %v978
  %980 = vmatmul.f32.gmra.mxu0 %v818
  %v981 = vpop.f32.mrf.mxu0
  %v982 = vadd.f32 %v78, %v981
  %983 = vmatmul.f32.gmra.mxu0 %v821
  %v984 = vpop.f32.mrf.mxu0
  %v985 = vadd.f32 %v78, %v984
  %986 = vmatmul.f32.gmra.mxu0 %v824
  %v987 = vpop.f32.mrf.mxu0
  %v988 = vadd.f32 %v78, %v987
  %989 = vmatmul.f32.gmra.mxu0 %v827
  %v990 = vpop.f32.mrf.mxu0
  %v991 = vadd.f32 %v78, %v990
  %992 = vmatmul.f32.gmra.mxu0 %v830
  %v993 = vpop.f32.mrf.mxu0
  %v994 = vadd.f32 %v78, %v993
  %995 = vmatmul.f32.gmra.mxu0 %v833
  %v996 = vpop.f32.mrf.mxu0
  %v997 = vadd.f32 %v78, %v996
  %998 = vmatmul.f32.gmra.mxu0 %v836
  %v999 = vpop.f32.mrf.mxu0
  %v1000 = vadd.f32 %v78, %v999
  %1001 = vmatmul.f32.gmra.mxu0 %v839
  %v1002 = vpop.f32.mrf.mxu0
  %v1003 = vadd.f32 %v78, %v1002
  %1004 = vmatmul.f32.gmra.mxu0 %v842
  %v1005 = vpop.f32.mrf.mxu0
  %v1006 = vadd.f32 %v78, %v1005
  %1007 = vmatmul.f32.gmra.mxu0 %v845
  %v1008 = vpop.f32.mrf.mxu0
  %v1009 = vadd.f32 %v78, %v1008
  %1010 = vmatmul.f32.gmra.mxu0 %v848
  %v1011 = vpop.f32.mrf.mxu0
  %v1012 = vadd.f32 %v78, %v1011
  %1013 = vmatmul.f32.gmra.mxu0 %v851
  %v1014 = vpop.f32.mrf.mxu0
  %v1015 = vadd.f32 %v78, %v1014
  %1016 = vmatmul.f32.gmra.mxu0 %v854
  %v1017 = vpop.f32.mrf.mxu0
  %v1018 = vadd.f32 %v78, %v1017
  %1019 = vmatmul.f32.gmra.mxu0 %v857
  %v1020 = vpop.f32.mrf.mxu0
  %v1021 = vadd.f32 %v78, %v1020
  %1022 = vmatmul.f32.gmra.mxu0 %v860
  %v1023 = vpop.f32.mrf.mxu0
  %v1024 = vadd.f32 %v78, %v1023
  %1025 = vmatmul.f32.gmra.mxu0 %v863
  %v1026 = vpop.f32.mrf.mxu0
  %v1027 = vadd.f32 %v78, %v1026
  %1028 = vmatmul.f32.gmra.mxu0 %v866
  %v1029 = vpop.f32.mrf.mxu0
  %v1030 = vadd.f32 %v78, %v1029
  %1031 = vmatmul.f32.gmra.mxu0 %v869
  %v1032 = vpop.f32.mrf.mxu0
  %v1033 = vadd.f32 %v78, %v1032
  %1034 = vmatmul.f32.gmra.mxu0 %v872
  %v1035 = vpop.f32.mrf.mxu0
  %v1036 = vadd.f32 %v78, %v1035
  %1037 = vmatmul.f32.gmra.mxu0 %v875
  %v1038 = vpop.f32.mrf.mxu0
  %v1039 = vadd.f32 %v78, %v1038
  %1040 = vmatmul.f32.gmra.mxu0 %v878
  %v1041 = vpop.f32.mrf.mxu0
  %v1042 = vadd.f32 %v78, %v1041
  %1043 = vmatmul.f32.gmra.mxu0 %v881
  %v1044 = vpop.f32.mrf.mxu0
  %v1045 = vadd.f32 %v78, %v1044
  %1046 = vmatmul.f32.gmra.mxu0 %v884
  %v1047 = vpop.f32.mrf.mxu0
  %v1048 = vadd.f32 %v78, %v1047
  %1049 = vdwg.mxu0
  %v1050 = vsub.f32 0.0, %v904
  %v1051 = vsub.f32 0.0, %v907
  %v1052 = vsub.f32 0.0, %v910
  %v1053 = vsub.f32 0.0, %v913
  %v1054 = vsub.f32 0.0, %v916
  %v1055 = vsub.f32 0.0, %v919
  %v1056 = vsub.f32 0.0, %v922
  %v1057 = vsub.f32 0.0, %v925
  %v1058 = vsub.f32 0.0, %v928
  %v1059 = vsub.f32 0.0, %v931
  %v1060 = vsub.f32 0.0, %v934
  %v1061 = vsub.f32 0.0, %v937
  %v1062 = vsub.f32 0.0, %v940
  %v1063 = vsub.f32 0.0, %v943
  %v1064 = vsub.f32 0.0, %v946
  %v1065 = vsub.f32 0.0, %v949
  %v1066 = vsub.f32 0.0, %v952
  %v1067 = vsub.f32 0.0, %v955
  %v1068 = vsub.f32 0.0, %v958
  %v1069 = vsub.f32 0.0, %v961
  %v1070 = vsub.f32 0.0, %v964
  %v1071 = vsub.f32 0.0, %v967
  %v1072 = vsub.f32 0.0, %v970
  %v1073 = vsub.f32 0.0, %v973
  %v1074 = vsub.f32 0.0, %v976
  %v1075 = vsub.f32 0.0, %v979
  %v1076 = vsub.f32 0.0, %v982
  %v1077 = vsub.f32 0.0, %v985
  %v1078 = vsub.f32 0.0, %v988
  %v1079 = vsub.f32 0.0, %v991
  %v1080 = vsub.f32 0.0, %v994
  %v1081 = vsub.f32 0.0, %v997
  %v1082 = vsub.f32 0.0, %v1000
  %v1083 = vsub.f32 0.0, %v1003
  %v1084 = vsub.f32 0.0, %v1006
  %v1085 = vsub.f32 0.0, %v1009
  %v1086 = vsub.f32 0.0, %v1012
  %v1087 = vsub.f32 0.0, %v1015
  %v1088 = vsub.f32 0.0, %v1018
  %v1089 = vsub.f32 0.0, %v1021
  %v1090 = vsub.f32 0.0, %v1024
  %v1091 = vsub.f32 0.0, %v1027
  %v1092 = vsub.f32 0.0, %v1030
  %v1093 = vsub.f32 0.0, %v1033
  %v1094 = vsub.f32 0.0, %v1036
  %v1095 = vsub.f32 0.0, %v1039
  %v1096 = vsub.f32 0.0, %v1042
  %v1097 = vsub.f32 0.0, %v1045
  %v1098 = vsub.f32 0.0, %v1048
  %v1099 = vmul.f32 %v1050, 1.442695
  %v1100 = vpow.pop %v1099
  %v1101 = vmul.f32 %v1051, 1.442695
  %v1102 = vpow.pop %v1101
  %v1103 = vmul.f32 %v1052, 1.442695
  %v1104 = vpow.pop %v1103
  %v1105 = vmul.f32 %v1053, 1.442695
  %v1106 = vpow.pop %v1105
  %v1107 = vmul.f32 %v1054, 1.442695
  %v1108 = vpow.pop %v1107
  %v1109 = vmul.f32 %v1055, 1.442695
  %v1110 = vpow.pop %v1109
  %v1111 = vmul.f32 %v1056, 1.442695
  %v1112 = vpow.pop %v1111
  %v1113 = vmul.f32 %v1057, 1.442695
  %v1114 = vpow.pop %v1113
  %v1115 = vmul.f32 %v1058, 1.442695
  %v1116 = vpow.pop %v1115
  %v1117 = vmul.f32 %v1059, 1.442695
  %v1118 = vpow.pop %v1117
  %v1119 = vmul.f32 %v1060, 1.442695
  %v1120 = vpow.pop %v1119
  %v1121 = vmul.f32 %v1061, 1.442695
  %v1122 = vpow.pop %v1121
  %v1123 = vmul.f32 %v1062, 1.442695
  %v1124 = vpow.pop %v1123
  %v1125 = vmul.f32 %v1063, 1.442695
  %v1126 = vpow.pop %v1125
  %v1127 = vmul.f32 %v1064, 1.442695
  %v1128 = vpow.pop %v1127
  %v1129 = vmul.f32 %v1065, 1.442695
  %v1130 = vpow.pop %v1129
  %v1131 = vmul.f32 %v1066, 1.442695
  %v1132 = vpow.pop %v1131
  %v1133 = vmul.f32 %v1067, 1.442695
  %v1134 = vpow.pop %v1133
  %v1135 = vmul.f32 %v1068, 1.442695
  %v1136 = vpow.pop %v1135
  %v1137 = vmul.f32 %v1069, 1.442695
  %v1138 = vpow.pop %v1137
  %v1139 = vmul.f32 %v1070, 1.442695
  %v1140 = vpow.pop %v1139
  %v1141 = vmul.f32 %v1071, 1.442695
  %v1142 = vpow.pop %v1141
  %v1143 = vmul.f32 %v1072, 1.442695
  %v1144 = vpow.pop %v1143
  %v1145 = vmul.f32 %v1073, 1.442695
  %v1146 = vpow.pop %v1145
  %v1147 = vmul.f32 %v1074, 1.442695
  %v1148 = vpow.pop %v1147
  %v1149 = vmul.f32 %v1075, 1.442695
  %v1150 = vpow.pop %v1149
  %v1151 = vmul.f32 %v1076, 1.442695
  %v1152 = vpow.pop %v1151
  %v1153 = vmul.f32 %v1077, 1.442695
  %v1154 = vpow.pop %v1153
  %v1155 = vmul.f32 %v1078, 1.442695
  %v1156 = vpow.pop %v1155
  %v1157 = vmul.f32 %v1079, 1.442695
  %v1158 = vpow.pop %v1157
  %v1159 = vmul.f32 %v1080, 1.442695
  %v1160 = vpow.pop %v1159
  %v1161 = vmul.f32 %v1081, 1.442695
  %v1162 = vpow.pop %v1161
  %v1163 = vmul.f32 %v1082, 1.442695
  %v1164 = vpow.pop %v1163
  %v1165 = vmul.f32 %v1083, 1.442695
  %v1166 = vpow.pop %v1165
  %v1167 = vmul.f32 %v1084, 1.442695
  %v1168 = vpow.pop %v1167
  %v1169 = vmul.f32 %v1085, 1.442695
  %v1170 = vpow.pop %v1169
  %v1171 = vmul.f32 %v1086, 1.442695
  %v1172 = vpow.pop %v1171
  %v1173 = vmul.f32 %v1087, 1.442695
  %v1174 = vpow.pop %v1173
  %v1175 = vmul.f32 %v1088, 1.442695
  %v1176 = vpow.pop %v1175
  %v1177 = vmul.f32 %v1089, 1.442695
  %v1178 = vpow.pop %v1177
  %v1179 = vmul.f32 %v1090, 1.442695
  %v1180 = vpow.pop %v1179
  %v1181 = vmul.f32 %v1091, 1.442695
  %v1182 = vpow.pop %v1181
  %v1183 = vmul.f32 %v1092, 1.442695
  %v1184 = vpow.pop %v1183
  %v1185 = vmul.f32 %v1093, 1.442695
  %v1186 = vpow.pop %v1185
  %v1187 = vmul.f32 %v1094, 1.442695
  %v1188 = vpow.pop %v1187
  %v1189 = vmul.f32 %v1095, 1.442695
  %v1190 = vpow.pop %v1189
  %v1191 = vmul.f32 %v1096, 1.442695
  %v1192 = vpow.pop %v1191
  %v1193 = vmul.f32 %v1097, 1.442695
  %v1194 = vpow.pop %v1193
  %v1195 = vmul.f32 %v1098, 1.442695
  %v1196 = vpow.pop %v1195
  %v1197 = vadd.f32 %v1100, 1.0
  %v1198 = vadd.f32 %v1102, 1.0
  %v1199 = vadd.f32 %v1104, 1.0
  %v1200 = vadd.f32 %v1106, 1.0
  %v1201 = vadd.f32 %v1108, 1.0
  %v1202 = vadd.f32 %v1110, 1.0
  %v1203 = vadd.f32 %v1112, 1.0
  %v1204 = vadd.f32 %v1114, 1.0
  %v1205 = vadd.f32 %v1116, 1.0
  %v1206 = vadd.f32 %v1118, 1.0
  %v1207 = vadd.f32 %v1120, 1.0
  %v1208 = vadd.f32 %v1122, 1.0
  %v1209 = vadd.f32 %v1124, 1.0
  %v1210 = vadd.f32 %v1126, 1.0
  %v1211 = vadd.f32 %v1128, 1.0
  %v1212 = vadd.f32 %v1130, 1.0
  %v1213 = vadd.f32 %v1132, 1.0
  %v1214 = vadd.f32 %v1134, 1.0
  %v1215 = vadd.f32 %v1136, 1.0
  %v1216 = vadd.f32 %v1138, 1.0
  %v1217 = vadd.f32 %v1140, 1.0
  %v1218 = vadd.f32 %v1142, 1.0
  %v1219 = vadd.f32 %v1144, 1.0
  %v1220 = vadd.f32 %v1146, 1.0
  %v1221 = vadd.f32 %v1148, 1.0
  %v1222 = vadd.f32 %v1150, 1.0
  %v1223 = vadd.f32 %v1152, 1.0
  %v1224 = vadd.f32 %v1154, 1.0
  %v1225 = vadd.f32 %v1156, 1.0
  %v1226 = vadd.f32 %v1158, 1.0
  %v1227 = vadd.f32 %v1160, 1.0
  %v1228 = vadd.f32 %v1162, 1.0
  %v1229 = vadd.f32 %v1164, 1.0
  %v1230 = vadd.f32 %v1166, 1.0
  %v1231 = vadd.f32 %v1168, 1.0
  %v1232 = vadd.f32 %v1170, 1.0
  %v1233 = vadd.f32 %v1172, 1.0
  %v1234 = vadd.f32 %v1174, 1.0
  %v1235 = vadd.f32 %v1176, 1.0
  %v1236 = vadd.f32 %v1178, 1.0
  %v1237 = vadd.f32 %v1180, 1.0
  %v1238 = vadd.f32 %v1182, 1.0
  %v1239 = vadd.f32 %v1184, 1.0
  %v1240 = vadd.f32 %v1186, 1.0
  %v1241 = vadd.f32 %v1188, 1.0
  %v1242 = vadd.f32 %v1190, 1.0
  %v1243 = vadd.f32 %v1192, 1.0
  %v1244 = vadd.f32 %v1194, 1.0
  %v1245 = vadd.f32 %v1196, 1.0
  %v1246 = vrcp.pop %v1197
  %v1247 = vrcp.pop %v1198
  %v1248 = vrcp.pop %v1199
  %v1249 = vrcp.pop %v1200
  %v1250 = vrcp.pop %v1201
  %v1251 = vrcp.pop %v1202
  %v1252 = vrcp.pop %v1203
  %v1253 = vrcp.pop %v1204
  %v1254 = vrcp.pop %v1205
  %v1255 = vrcp.pop %v1206
  %v1256 = vrcp.pop %v1207
  %v1257 = vrcp.pop %v1208
  %v1258 = vrcp.pop %v1209
  %v1259 = vrcp.pop %v1210
  %v1260 = vrcp.pop %v1211
  %v1261 = vrcp.pop %v1212
  %v1262 = vrcp.pop %v1213
  %v1263 = vrcp.pop %v1214
  %v1264 = vrcp.pop %v1215
  %v1265 = vrcp.pop %v1216
  %v1266 = vrcp.pop %v1217
  %v1267 = vrcp.pop %v1218
  %v1268 = vrcp.pop %v1219
  %v1269 = vrcp.pop %v1220
  %v1270 = vrcp.pop %v1221
  %v1271 = vrcp.pop %v1222
  %v1272 = vrcp.pop %v1223
  %v1273 = vrcp.pop %v1224
  %v1274 = vrcp.pop %v1225
  %v1275 = vrcp.pop %v1226
  %v1276 = vrcp.pop %v1227
  %v1277 = vrcp.pop %v1228
  %v1278 = vrcp.pop %v1229
  %v1279 = vrcp.pop %v1230
  %v1280 = vrcp.pop %v1231
  %v1281 = vrcp.pop %v1232
  %v1282 = vrcp.pop %v1233
  %v1283 = vrcp.pop %v1234
  %v1284 = vrcp.pop %v1235
  %v1285 = vrcp.pop %v1236
  %v1286 = vrcp.pop %v1237
  %v1287 = vrcp.pop %v1238
  %v1288 = vrcp.pop %v1239
  %v1289 = vrcp.pop %v1240
  %v1290 = vrcp.pop %v1241
  %v1291 = vrcp.pop %v1242
  %v1292 = vrcp.pop %v1243
  %v1293 = vrcp.pop %v1244
  %v1294 = vrcp.pop %v1245
  %v1295 = vmul.f32 %v904, %v1246
  %v1296 = vmul.f32 %v907, %v1247
  %v1297 = vmul.f32 %v910, %v1248
  %v1298 = vmul.f32 %v913, %v1249
  %v1299 = vmul.f32 %v916, %v1250
  %v1300 = vmul.f32 %v919, %v1251
  %v1301 = vmul.f32 %v922, %v1252
  %v1302 = vmul.f32 %v925, %v1253
  %v1303 = vmul.f32 %v928, %v1254
  %v1304 = vmul.f32 %v931, %v1255
  %v1305 = vmul.f32 %v934, %v1256
  %v1306 = vmul.f32 %v937, %v1257
  %v1307 = vmul.f32 %v940, %v1258
  %v1308 = vmul.f32 %v943, %v1259
  %v1309 = vmul.f32 %v946, %v1260
  %v1310 = vmul.f32 %v949, %v1261
  %v1311 = vmul.f32 %v952, %v1262
  %v1312 = vmul.f32 %v955, %v1263
  %v1313 = vmul.f32 %v958, %v1264
  %v1314 = vmul.f32 %v961, %v1265
  %v1315 = vmul.f32 %v964, %v1266
  %v1316 = vmul.f32 %v967, %v1267
  %v1317 = vmul.f32 %v970, %v1268
  %v1318 = vmul.f32 %v973, %v1269
  %v1319 = vmul.f32 %v976, %v1270
  %v1320 = vmul.f32 %v979, %v1271
  %v1321 = vmul.f32 %v982, %v1272
  %v1322 = vmul.f32 %v985, %v1273
  %v1323 = vmul.f32 %v988, %v1274
  %v1324 = vmul.f32 %v991, %v1275
  %v1325 = vmul.f32 %v994, %v1276
  %v1326 = vmul.f32 %v997, %v1277
  %v1327 = vmul.f32 %v1000, %v1278
  %v1328 = vmul.f32 %v1003, %v1279
  %v1329 = vmul.f32 %v1006, %v1280
  %v1330 = vmul.f32 %v1009, %v1281
  %v1331 = vmul.f32 %v1012, %v1282
  %v1332 = vmul.f32 %v1015, %v1283
  %v1333 = vmul.f32 %v1018, %v1284
  %v1334 = vmul.f32 %v1021, %v1285
  %v1335 = vmul.f32 %v1024, %v1286
  %v1336 = vmul.f32 %v1027, %v1287
  %v1337 = vmul.f32 %v1030, %v1288
  %v1338 = vmul.f32 %v1033, %v1289
  %v1339 = vmul.f32 %v1036, %v1290
  %v1340 = vmul.f32 %v1039, %v1291
  %v1341 = vmul.f32 %v1042, %v1292
  %v1342 = vmul.f32 %v1045, %v1293
  %v1343 = vmul.f32 %v1048, %v1294
  %v1344 = vmax.f32 %v641, %v1295
  %v1345 = vmax.f32 %v642, %v1296
  %v1346 = vmax.f32 %v643, %v1297
  %v1347 = vmax.f32 %v644, %v1298
  %v1348 = vmax.f32 %v645, %v1299
  %v1349 = vmax.f32 %v646, %v1300
  %v1350 = vmax.f32 %v647, %v1301
  %v1351 = vmax.f32 %v648, %v1302
  %v1352 = vmax.f32 %v649, %v1303
  %v1353 = vmax.f32 %v650, %v1304
  %v1354 = vmax.f32 %v651, %v1305
  %v1355 = vmax.f32 %v652, %v1306
  %v1356 = vmax.f32 %v653, %v1307
  %v1357 = vmax.f32 %v654, %v1308
  %v1358 = vmax.f32 %v655, %v1309
  %v1359 = vmax.f32 %v656, %v1310
  %v1360 = vmax.f32 %v657, %v1311
  %v1361 = vmax.f32 %v658, %v1312
  %v1362 = vmax.f32 %v659, %v1313
  %v1363 = vmax.f32 %v660, %v1314
  %v1364 = vmax.f32 %v661, %v1315
  %v1365 = vmax.f32 %v662, %v1316
  %v1366 = vmax.f32 %v663, %v1317
  %v1367 = vmax.f32 %v664, %v1318
  %v1368 = vmax.f32 %v665, %v1319
  %v1369 = vmax.f32 %v666, %v1320
  %v1370 = vmax.f32 %v667, %v1321
  %v1371 = vmax.f32 %v668, %v1322
  %v1372 = vmax.f32 %v669, %v1323
  %v1373 = vmax.f32 %v670, %v1324
  %v1374 = vmax.f32 %v671, %v1325
  %v1375 = vmax.f32 %v672, %v1326
  %v1376 = vmax.f32 %v673, %v1327
  %v1377 = vmax.f32 %v674, %v1328
  %v1378 = vmax.f32 %v675, %v1329
  %v1379 = vmax.f32 %v676, %v1330
  %v1380 = vmax.f32 %v677, %v1331
  %v1381 = vmax.f32 %v678, %v1332
  %v1382 = vmax.f32 %v679, %v1333
  %v1383 = vmax.f32 %v680, %v1334
  %v1384 = vmax.f32 %v681, %v1335
  %v1385 = vmax.f32 %v682, %v1336
  %v1386 = vmax.f32 %v683, %v1337
  %v1387 = vmax.f32 %v684, %v1338
  %v1388 = vmax.f32 %v685, %v1339
  %v1389 = vmax.f32 %v686, %v1340
  %v1390 = vmax.f32 %v687, %v1341
  %v1391 = vmax.f32 %v688, %v1342
  %v1392 = vmax.f32 %v689, %v1343
  %v1393 = vld [vmem:[%s2] sm:$0xff]
  %v1394 = vld [vmem:[%s2 + $0x8] sm:$0xff]
  %v1395 = vld [vmem:[%s2 + $0x10] sm:$0xff]
  %v1396 = vld [vmem:[%s2 + $0x18] sm:$0xff]
  %v1397 = vld [vmem:[%s2 + $0x20] sm:$0xff]
  %v1398 = vld [vmem:[%s2 + $0x28] sm:$0xff]
  %v1399 = vld [vmem:[%s2 + $0x30] sm:$0xff]
  %v1400 = vld [vmem:[%s2 + $0x38] sm:$0xff]
  %v1401 = vld [vmem:[%s2 + $0x40] sm:$0xff]
  %v1402 = vld [vmem:[%s2 + $0x48] sm:$0xff]
  %v1403 = vld [vmem:[%s2 + $0x50] sm:$0xff]
  %v1404 = vld [vmem:[%s2 + $0x58] sm:$0xff]
  %v1405 = vld [vmem:[%s2 + $0x60] sm:$0xff]
  %v1406 = vld [vmem:[%s2 + $0x68] sm:$0xff]
  %v1407 = vld [vmem:[%s2 + $0x70] sm:$0xff]
  %v1408 = vld [vmem:[%s2 + $0x78] sm:$0xff]
  %v1409 = vld [vmem:[%s2 + $0x80] sm:$0xff]
  %v1410 = vld [vmem:[%s2 + $0x88] sm:$0xff]
  %v1411 = vld [vmem:[%s2 + $0x90] sm:$0xff]
  %v1412 = vld [vmem:[%s2 + $0x98] sm:$0xff]
  %v1413 = vld [vmem:[%s2 + $0xa0] sm:$0xff]
  %v1414 = vld [vmem:[%s2 + $0xa8] sm:$0xff]
  %v1415 = vld [vmem:[%s2 + $0xb0] sm:$0xff]
  %v1416 = vld [vmem:[%s2 + $0xb8] sm:$0xff]
  %v1417 = vld [vmem:[%s2 + $0xc0] sm:$0xff]
  %v1418 = vld [vmem:[%s2 + $0xc8] sm:$0xff]
  %v1419 = vld [vmem:[%s2 + $0xd0] sm:$0xff]
  %v1420 = vld [vmem:[%s2 + $0xd8] sm:$0xff]
  %v1421 = vld [vmem:[%s2 + $0xe0] sm:$0xff]
  %v1422 = vld [vmem:[%s2 + $0xe8] sm:$0xff]
  %v1423 = vld [vmem:[%s2 + $0xf0] sm:$0xff]
  %v1424 = vld [vmem:[%s2 + $0xf8] sm:$0xff]
  %v1425 = vld [vmem:[%s2 + $0x100] sm:$0xff]
  %v1426 = vld [vmem:[%s2 + $0x108] sm:$0xff]
  %v1427 = vld [vmem:[%s2 + $0x110] sm:$0xff]
  %v1428 = vld [vmem:[%s2 + $0x118] sm:$0xff]
  %v1429 = vld [vmem:[%s2 + $0x120] sm:$0xff]
  %v1430 = vld [vmem:[%s2 + $0x128] sm:$0xff]
  %v1431 = vld [vmem:[%s2 + $0x130] sm:$0xff]
  %v1432 = vld [vmem:[%s2 + $0x138] sm:$0xff]
  %v1433 = vld [vmem:[%s2 + $0x140] sm:$0xff]
  %v1434 = vld [vmem:[%s2 + $0x148] sm:$0xff]
  %v1435 = vld [vmem:[%s2 + $0x150] sm:$0xff]
  %v1436 = vld [vmem:[%s2 + $0x158] sm:$0xff]
  %v1437 = vld [vmem:[%s2 + $0x160] sm:$0xff]
  %v1438 = vld [vmem:[%s2 + $0x168] sm:$0xff]
  %v1439 = vld [vmem:[%s2 + $0x170] sm:$0xff]
  %v1440 = vld [vmem:[%s2 + $0x178] sm:$0xff]
  %v1441 = vld [vmem:[%s2 + $0x180] sm:$0xff]
  %v1443 = vsel %vm80, %v1393, 0
  %v1446 = vsel %vm80, %v1394, 0
  %v1449 = vsel %vm80, %v1395, 0
  %v1452 = vsel %vm80, %v1396, 0
  %v1455 = vsel %vm80, %v1397, 0
  %v1458 = vsel %vm80, %v1398, 0
  %v1461 = vsel %vm80, %v1399, 0
  %v1464 = vsel %vm80, %v1400, 0
  %v1467 = vsel %vm80, %v1401, 0
  %v1470 = vsel %vm80, %v1402, 0
  %v1473 = vsel %vm80, %v1403, 0
  %v1476 = vsel %vm80, %v1404, 0
  %v1479 = vsel %vm80, %v1405, 0
  %v1482 = vsel %vm80, %v1406, 0
  %v1485 = vsel %vm80, %v1407, 0
  %v1488 = vsel %vm80, %v1408, 0
  %v1491 = vsel %vm80, %v1409, 0
  %v1494 = vsel %vm80, %v1410, 0
  %v1497 = vsel %vm80, %v1411, 0
  %v1500 = vsel %vm80, %v1412, 0
  %v1503 = vsel %vm80, %v1413, 0
  %v1506 = vsel %vm80, %v1414, 0
  %v1509 = vsel %vm80, %v1415, 0
  %v1512 = vsel %vm80, %v1416, 0
  %v1515 = vsel %vm80, %v1417, 0
  %v1518 = vsel %vm80, %v1418, 0
  %v1521 = vsel %vm80, %v1419, 0
  %v1524 = vsel %vm80, %v1420, 0
  %v1527 = vsel %vm80, %v1421, 0
  %v1530 = vsel %vm80, %v1422, 0
  %v1533 = vsel %vm80, %v1423, 0
  %v1536 = vsel %vm80, %v1424, 0
  %v1539 = vsel %vm80, %v1425, 0
  %v1542 = vsel %vm80, %v1426, 0
  %v1545 = vsel %vm80, %v1427, 0
  %v1548 = vsel %vm80, %v1428, 0
  %v1551 = vsel %vm80, %v1429, 0
  %v1554 = vsel %vm80, %v1430, 0
  %v1557 = vsel %vm80, %v1431, 0
  %v1560 = vsel %vm80, %v1432, 0
  %v1563 = vsel %vm80, %v1433, 0
  %v1566 = vsel %vm80, %v1434, 0
  %v1569 = vsel %vm80, %v1435, 0
  %v1572 = vsel %vm80, %v1436, 0
  %v1575 = vsel %vm80, %v1437, 0
  %v1578 = vsel %vm80, %v1438, 0
  %v1581 = vsel %vm80, %v1439, 0
  %v1584 = vsel %vm80, %v1440, 0
  %v1587 = vsel %vm80, %v1441, 0
  %1589 = vmatpush.msra.mxu0 0.0
  %1590 = vmatpush.msra.mxu0 0.0
  %1591 = vmatpush.msra.mxu0 0.0
  %1592 = vmatpush.msra.mxu0 0.0
  %1593 = vmatpush.msra.mxu0 0.0
  %1594 = vmatpush.msra.mxu0 0.0
  %1595 = vmatpush.msra.mxu0 0.0
  %1596 = vmatpush.msra.mxu0 0.0
  %1597 = vmatpush.msra.mxu0 0.0
  %1598 = vmatpush.msra.mxu0 0.0
  %1599 = vmatpush.msra.mxu0 0.0
  %1600 = vmatpush.msra.mxu0 0.0
  %1601 = vmatpush.msra.mxu0 %v230
  %1602 = vmatpush.msra.mxu0 %v74
  %1603 = vmatpush.msra.mxu0 %v73
  %1604 = vmatpush.msra.mxu0 %v72
  %1605 = vmatmul.f32.gmra.mxu0 %v1443
  %v1606 = vpop.f32.mrf.mxu0
  %v1607 = vadd.f32 %v78, %v1606
  %1608 = vmatmul.f32.gmra.mxu0 %v1446
  %v1609 = vpop.f32.mrf.mxu0
  %v1610 = vadd.f32 %v78, %v1609
  %1611 = vmatmul.f32.gmra.mxu0 %v1449
  %v1612 = vpop.f32.mrf.mxu0
  %v1613 = vadd.f32 %v78, %v1612
  %1614 = vmatmul.f32.gmra.mxu0 %v1452
  %v1615 = vpop.f32.mrf.mxu0
  %v1616 = vadd.f32 %v78, %v1615
  %1617 = vmatmul.f32.gmra.mxu0 %v1455
  %v1618 = vpop.f32.mrf.mxu0
  %v1619 = vadd.f32 %v78, %v1618
  %1620 = vmatmul.f32.gmra.mxu0 %v1458
  %v1621 = vpop.f32.mrf.mxu0
  %v1622 = vadd.f32 %v78, %v1621
  %1623 = vmatmul.f32.gmra.mxu0 %v1461
  %v1624 = vpop.f32.mrf.mxu0
  %v1625 = vadd.f32 %v78, %v1624
  %1626 = vmatmul.f32.gmra.mxu0 %v1464
  %v1627 = vpop.f32.mrf.mxu0
  %v1628 = vadd.f32 %v78, %v1627
  %1629 = vmatmul.f32.gmra.mxu0 %v1467
  %v1630 = vpop.f32.mrf.mxu0
  %v1631 = vadd.f32 %v78, %v1630
  %1632 = vmatmul.f32.gmra.mxu0 %v1470
  %v1633 = vpop.f32.mrf.mxu0
  %v1634 = vadd.f32 %v78, %v1633
  %1635 = vmatmul.f32.gmra.mxu0 %v1473
  %v1636 = vpop.f32.mrf.mxu0
  %v1637 = vadd.f32 %v78, %v1636
  %1638 = vmatmul.f32.gmra.mxu0 %v1476
  %v1639 = vpop.f32.mrf.mxu0
  %v1640 = vadd.f32 %v78, %v1639
  %1641 = vmatmul.f32.gmra.mxu0 %v1479
  %v1642 = vpop.f32.mrf.mxu0
  %v1643 = vadd.f32 %v78, %v1642
  %1644 = vmatmul.f32.gmra.mxu0 %v1482
  %v1645 = vpop.f32.mrf.mxu0
  %v1646 = vadd.f32 %v78, %v1645
  %1647 = vmatmul.f32.gmra.mxu0 %v1485
  %v1648 = vpop.f32.mrf.mxu0
  %v1649 = vadd.f32 %v78, %v1648
  %1650 = vmatmul.f32.gmra.mxu0 %v1488
  %v1651 = vpop.f32.mrf.mxu0
  %v1652 = vadd.f32 %v78, %v1651
  %1653 = vmatmul.f32.gmra.mxu0 %v1491
  %v1654 = vpop.f32.mrf.mxu0
  %v1655 = vadd.f32 %v78, %v1654
  %1656 = vmatmul.f32.gmra.mxu0 %v1494
  %v1657 = vpop.f32.mrf.mxu0
  %v1658 = vadd.f32 %v78, %v1657
  %1659 = vmatmul.f32.gmra.mxu0 %v1497
  %v1660 = vpop.f32.mrf.mxu0
  %v1661 = vadd.f32 %v78, %v1660
  %1662 = vmatmul.f32.gmra.mxu0 %v1500
  %v1663 = vpop.f32.mrf.mxu0
  %v1664 = vadd.f32 %v78, %v1663
  %1665 = vmatmul.f32.gmra.mxu0 %v1503
  %v1666 = vpop.f32.mrf.mxu0
  %v1667 = vadd.f32 %v78, %v1666
  %1668 = vmatmul.f32.gmra.mxu0 %v1506
  %v1669 = vpop.f32.mrf.mxu0
  %v1670 = vadd.f32 %v78, %v1669
  %1671 = vmatmul.f32.gmra.mxu0 %v1509
  %v1672 = vpop.f32.mrf.mxu0
  %v1673 = vadd.f32 %v78, %v1672
  %1674 = vmatmul.f32.gmra.mxu0 %v1512
  %v1675 = vpop.f32.mrf.mxu0
  %v1676 = vadd.f32 %v78, %v1675
  %1677 = vmatmul.f32.gmra.mxu0 %v1515
  %v1678 = vpop.f32.mrf.mxu0
  %v1679 = vadd.f32 %v78, %v1678
  %1680 = vmatmul.f32.gmra.mxu0 %v1518
  %v1681 = vpop.f32.mrf.mxu0
  %v1682 = vadd.f32 %v78, %v1681
  %1683 = vmatmul.f32.gmra.mxu0 %v1521
  %v1684 = vpop.f32.mrf.mxu0
  %v1685 = vadd.f32 %v78, %v1684
  %1686 = vmatmul.f32.gmra.mxu0 %v1524
  %v1687 = vpop.f32.mrf.mxu0
  %v1688 = vadd.f32 %v78, %v1687
  %1689 = vmatmul.f32.gmra.mxu0 %v1527
  %v1690 = vpop.f32.mrf.mxu0
  %v1691 = vadd.f32 %v78, %v1690
  %1692 = vmatmul.f32.gmra.mxu0 %v1530
  %v1693 = vpop.f32.mrf.mxu0
  %v1694 = vadd.f32 %v78, %v1693
  %1695 = vmatmul.f32.gmra.mxu0 %v1533
  %v1696 = vpop.f32.mrf.mxu0
  %v1697 = vadd.f32 %v78, %v1696
  %1698 = vmatmul.f32.gmra.mxu0 %v1536
  %v1699 = vpop.f32.mrf.mxu0
  %v1700 = vadd.f32 %v78, %v1699
  %1701 = vmatmul.f32.gmra.mxu0 %v1539
  %v1702 = vpop.f32.mrf.mxu0
  %v1703 = vadd.f32 %v78, %v1702
  %1704 = vmatmul.f32.gmra.mxu0 %v1542
  %v1705 = vpop.f32.mrf.mxu0
  %v1706 = vadd.f32 %v78, %v1705
  %1707 = vmatmul.f32.gmra.mxu0 %v1545
  %v1708 = vpop.f32.mrf.mxu0
  %v1709 = vadd.f32 %v78, %v1708
  %1710 = vmatmul.f32.gmra.mxu0 %v1548
  %v1711 = vpop.f32.mrf.mxu0
  %v1712 = vadd.f32 %v78, %v1711
  %1713 = vmatmul.f32.gmra.mxu0 %v1551
  %v1714 = vpop.f32.mrf.mxu0
  %v1715 = vadd.f32 %v78, %v1714
  %1716 = vmatmul.f32.gmra.mxu0 %v1554
  %v1717 = vpop.f32.mrf.mxu0
  %v1718 = vadd.f32 %v78, %v1717
  %1719 = vmatmul.f32.gmra.mxu0 %v1557
  %v1720 = vpop.f32.mrf.mxu0
  %v1721 = vadd.f32 %v78, %v1720
  %1722 = vmatmul.f32.gmra.mxu0 %v1560
  %v1723 = vpop.f32.mrf.mxu0
  %v1724 = vadd.f32 %v78, %v1723
  %1725 = vmatmul.f32.gmra.mxu0 %v1563
  %v1726 = vpop.f32.mrf.mxu0
  %v1727 = vadd.f32 %v78, %v1726
  %1728 = vmatmul.f32.gmra.mxu0 %v1566
  %v1729 = vpop.f32.mrf.mxu0
  %v1730 = vadd.f32 %v78, %v1729
  %1731 = vmatmul.f32.gmra.mxu0 %v1569
  %v1732 = vpop.f32.mrf.mxu0
  %v1733 = vadd.f32 %v78, %v1732
  %1734 = vmatmul.f32.gmra.mxu0 %v1572
  %v1735 = vpop.f32.mrf.mxu0
  %v1736 = vadd.f32 %v78, %v1735
  %1737 = vmatmul.f32.gmra.mxu0 %v1575
  %v1738 = vpop.f32.mrf.mxu0
  %v1739 = vadd.f32 %v78, %v1738
  %1740 = vmatmul.f32.gmra.mxu0 %v1578
  %v1741 = vpop.f32.mrf.mxu0
  %v1742 = vadd.f32 %v78, %v1741
  %1743 = vmatmul.f32.gmra.mxu0 %v1581
  %v1744 = vpop.f32.mrf.mxu0
  %v1745 = vadd.f32 %v78, %v1744
  %1746 = vmatmul.f32.gmra.mxu0 %v1584
  %v1747 = vpop.f32.mrf.mxu0
  %v1748 = vadd.f32 %v78, %v1747
  %1749 = vmatmul.f32.gmra.mxu0 %v1587
  %v1750 = vpop.f32.mrf.mxu0
  %v1751 = vadd.f32 %v78, %v1750
  %1752 = vdwg.mxu0
  %v1753 = vsub.f32 0.0, %v1607
  %v1754 = vsub.f32 0.0, %v1610
  %v1755 = vsub.f32 0.0, %v1613
  %v1756 = vsub.f32 0.0, %v1616
  %v1757 = vsub.f32 0.0, %v1619
  %v1758 = vsub.f32 0.0, %v1622
  %v1759 = vsub.f32 0.0, %v1625
  %v1760 = vsub.f32 0.0, %v1628
  %v1761 = vsub.f32 0.0, %v1631
  %v1762 = vsub.f32 0.0, %v1634
  %v1763 = vsub.f32 0.0, %v1637
  %v1764 = vsub.f32 0.0, %v1640
  %v1765 = vsub.f32 0.0, %v1643
  %v1766 = vsub.f32 0.0, %v1646
  %v1767 = vsub.f32 0.0, %v1649
  %v1768 = vsub.f32 0.0, %v1652
  %v1769 = vsub.f32 0.0, %v1655
  %v1770 = vsub.f32 0.0, %v1658
  %v1771 = vsub.f32 0.0, %v1661
  %v1772 = vsub.f32 0.0, %v1664
  %v1773 = vsub.f32 0.0, %v1667
  %v1774 = vsub.f32 0.0, %v1670
  %v1775 = vsub.f32 0.0, %v1673
  %v1776 = vsub.f32 0.0, %v1676
  %v1777 = vsub.f32 0.0, %v1679
  %v1778 = vsub.f32 0.0, %v1682
  %v1779 = vsub.f32 0.0, %v1685
  %v1780 = vsub.f32 0.0, %v1688
  %v1781 = vsub.f32 0.0, %v1691
  %v1782 = vsub.f32 0.0, %v1694
  %v1783 = vsub.f32 0.0, %v1697
  %v1784 = vsub.f32 0.0, %v1700
  %v1785 = vsub.f32 0.0, %v1703
  %v1786 = vsub.f32 0.0, %v1706
  %v1787 = vsub.f32 0.0, %v1709
  %v1788 = vsub.f32 0.0, %v1712
  %v1789 = vsub.f32 0.0, %v1715
  %v1790 = vsub.f32 0.0, %v1718
  %v1791 = vsub.f32 0.0, %v1721
  %v1792 = vsub.f32 0.0, %v1724
  %v1793 = vsub.f32 0.0, %v1727
  %v1794 = vsub.f32 0.0, %v1730
  %v1795 = vsub.f32 0.0, %v1733
  %v1796 = vsub.f32 0.0, %v1736
  %v1797 = vsub.f32 0.0, %v1739
  %v1798 = vsub.f32 0.0, %v1742
  %v1799 = vsub.f32 0.0, %v1745
  %v1800 = vsub.f32 0.0, %v1748
  %v1801 = vsub.f32 0.0, %v1751
  %v1802 = vmul.f32 %v1753, 1.442695
  %v1803 = vpow.pop %v1802
  %v1804 = vmul.f32 %v1754, 1.442695
  %v1805 = vpow.pop %v1804
  %v1806 = vmul.f32 %v1755, 1.442695
  %v1807 = vpow.pop %v1806
  %v1808 = vmul.f32 %v1756, 1.442695
  %v1809 = vpow.pop %v1808
  %v1810 = vmul.f32 %v1757, 1.442695
  %v1811 = vpow.pop %v1810
  %v1812 = vmul.f32 %v1758, 1.442695
  %v1813 = vpow.pop %v1812
  %v1814 = vmul.f32 %v1759, 1.442695
  %v1815 = vpow.pop %v1814
  %v1816 = vmul.f32 %v1760, 1.442695
  %v1817 = vpow.pop %v1816
  %v1818 = vmul.f32 %v1761, 1.442695
  %v1819 = vpow.pop %v1818
  %v1820 = vmul.f32 %v1762, 1.442695
  %v1821 = vpow.pop %v1820
  %v1822 = vmul.f32 %v1763, 1.442695
  %v1823 = vpow.pop %v1822
  %v1824 = vmul.f32 %v1764, 1.442695
  %v1825 = vpow.pop %v1824
  %v1826 = vmul.f32 %v1765, 1.442695
  %v1827 = vpow.pop %v1826
  %v1828 = vmul.f32 %v1766, 1.442695
  %v1829 = vpow.pop %v1828
  %v1830 = vmul.f32 %v1767, 1.442695
  %v1831 = vpow.pop %v1830
  %v1832 = vmul.f32 %v1768, 1.442695
  %v1833 = vpow.pop %v1832
  %v1834 = vmul.f32 %v1769, 1.442695
  %v1835 = vpow.pop %v1834
  %v1836 = vmul.f32 %v1770, 1.442695
  %v1837 = vpow.pop %v1836
  %v1838 = vmul.f32 %v1771, 1.442695
  %v1839 = vpow.pop %v1838
  %v1840 = vmul.f32 %v1772, 1.442695
  %v1841 = vpow.pop %v1840
  %v1842 = vmul.f32 %v1773, 1.442695
  %v1843 = vpow.pop %v1842
  %v1844 = vmul.f32 %v1774, 1.442695
  %v1845 = vpow.pop %v1844
  %v1846 = vmul.f32 %v1775, 1.442695
  %v1847 = vpow.pop %v1846
  %v1848 = vmul.f32 %v1776, 1.442695
  %v1849 = vpow.pop %v1848
  %v1850 = vmul.f32 %v1777, 1.442695
  %v1851 = vpow.pop %v1850
  %v1852 = vmul.f32 %v1778, 1.442695
  %v1853 = vpow.pop %v1852
  %v1854 = vmul.f32 %v1779, 1.442695
  %v1855 = vpow.pop %v1854
  %v1856 = vmul.f32 %v1780, 1.442695
  %v1857 = vpow.pop %v1856
  %v1858 = vmul.f32 %v1781, 1.442695
  %v1859 = vpow.pop %v1858
  %v1860 = vmul.f32 %v1782, 1.442695
  %v1861 = vpow.pop %v1860
  %v1862 = vmul.f32 %v1783, 1.442695
  %v1863 = vpow.pop %v1862
  %v1864 = vmul.f32 %v1784, 1.442695
  %v1865 = vpow.pop %v1864
  %v1866 = vmul.f32 %v1785, 1.442695
  %v1867 = vpow.pop %v1866
  %v1868 = vmul.f32 %v1786, 1.442695
  %v1869 = vpow.pop %v1868
  %v1870 = vmul.f32 %v1787, 1.442695
  %v1871 = vpow.pop %v1870
  %v1872 = vmul.f32 %v1788, 1.442695
  %v1873 = vpow.pop %v1872
  %v1874 = vmul.f32 %v1789, 1.442695
  %v1875 = vpow.pop %v1874
  %v1876 = vmul.f32 %v1790, 1.442695
  %v1877 = vpow.pop %v1876
  %v1878 = vmul.f32 %v1791, 1.442695
  %v1879 = vpow.pop %v1878
  %v1880 = vmul.f32 %v1792, 1.442695
  %v1881 = vpow.pop %v1880
  %v1882 = vmul.f32 %v1793, 1.442695
  %v1883 = vpow.pop %v1882
  %v1884 = vmul.f32 %v1794, 1.442695
  %v1885 = vpow.pop %v1884
  %v1886 = vmul.f32 %v1795, 1.442695
  %v1887 = vpow.pop %v1886
  %v1888 = vmul.f32 %v1796, 1.442695
  %v1889 = vpow.pop %v1888
  %v1890 = vmul.f32 %v1797, 1.442695
  %v1891 = vpow.pop %v1890
  %v1892 = vmul.f32 %v1798, 1.442695
  %v1893 = vpow.pop %v1892
  %v1894 = vmul.f32 %v1799, 1.442695
  %v1895 = vpow.pop %v1894
  %v1896 = vmul.f32 %v1800, 1.442695
  %v1897 = vpow.pop %v1896
  %v1898 = vmul.f32 %v1801, 1.442695
  %v1899 = vpow.pop %v1898
  %v1900 = vadd.f32 %v1803, 1.0
  %v1901 = vadd.f32 %v1805, 1.0
  %v1902 = vadd.f32 %v1807, 1.0
  %v1903 = vadd.f32 %v1809, 1.0
  %v1904 = vadd.f32 %v1811, 1.0
  %v1905 = vadd.f32 %v1813, 1.0
  %v1906 = vadd.f32 %v1815, 1.0
  %v1907 = vadd.f32 %v1817, 1.0
  %v1908 = vadd.f32 %v1819, 1.0
  %v1909 = vadd.f32 %v1821, 1.0
  %v1910 = vadd.f32 %v1823, 1.0
  %v1911 = vadd.f32 %v1825, 1.0
  %v1912 = vadd.f32 %v1827, 1.0
  %v1913 = vadd.f32 %v1829, 1.0
  %v1914 = vadd.f32 %v1831, 1.0
  %v1915 = vadd.f32 %v1833, 1.0
  %v1916 = vadd.f32 %v1835, 1.0
  %v1917 = vadd.f32 %v1837, 1.0
  %v1918 = vadd.f32 %v1839, 1.0
  %v1919 = vadd.f32 %v1841, 1.0
  %v1920 = vadd.f32 %v1843, 1.0
  %v1921 = vadd.f32 %v1845, 1.0
  %v1922 = vadd.f32 %v1847, 1.0
  %v1923 = vadd.f32 %v1849, 1.0
  %v1924 = vadd.f32 %v1851, 1.0
  %v1925 = vadd.f32 %v1853, 1.0
  %v1926 = vadd.f32 %v1855, 1.0
  %v1927 = vadd.f32 %v1857, 1.0
  %v1928 = vadd.f32 %v1859, 1.0
  %v1929 = vadd.f32 %v1861, 1.0
  %v1930 = vadd.f32 %v1863, 1.0
  %v1931 = vadd.f32 %v1865, 1.0
  %v1932 = vadd.f32 %v1867, 1.0
  %v1933 = vadd.f32 %v1869, 1.0
  %v1934 = vadd.f32 %v1871, 1.0
  %v1935 = vadd.f32 %v1873, 1.0
  %v1936 = vadd.f32 %v1875, 1.0
  %v1937 = vadd.f32 %v1877, 1.0
  %v1938 = vadd.f32 %v1879, 1.0
  %v1939 = vadd.f32 %v1881, 1.0
  %v1940 = vadd.f32 %v1883, 1.0
  %v1941 = vadd.f32 %v1885, 1.0
  %v1942 = vadd.f32 %v1887, 1.0
  %v1943 = vadd.f32 %v1889, 1.0
  %v1944 = vadd.f32 %v1891, 1.0
  %v1945 = vadd.f32 %v1893, 1.0
  %v1946 = vadd.f32 %v1895, 1.0
  %v1947 = vadd.f32 %v1897, 1.0
  %v1948 = vadd.f32 %v1899, 1.0
  %v1949 = vrcp.pop %v1900
  %v1950 = vrcp.pop %v1901
  %v1951 = vrcp.pop %v1902
  %v1952 = vrcp.pop %v1903
  %v1953 = vrcp.pop %v1904
  %v1954 = vrcp.pop %v1905
  %v1955 = vrcp.pop %v1906
  %v1956 = vrcp.pop %v1907
  %v1957 = vrcp.pop %v1908
  %v1958 = vrcp.pop %v1909
  %v1959 = vrcp.pop %v1910
  %v1960 = vrcp.pop %v1911
  %v1961 = vrcp.pop %v1912
  %v1962 = vrcp.pop %v1913
  %v1963 = vrcp.pop %v1914
  %v1964 = vrcp.pop %v1915
  %v1965 = vrcp.pop %v1916
  %v1966 = vrcp.pop %v1917
  %v1967 = vrcp.pop %v1918
  %v1968 = vrcp.pop %v1919
  %v1969 = vrcp.pop %v1920
  %v1970 = vrcp.pop %v1921
  %v1971 = vrcp.pop %v1922
  %v1972 = vrcp.pop %v1923
  %v1973 = vrcp.pop %v1924
  %v1974 = vrcp.pop %v1925
  %v1975 = vrcp.pop %v1926
  %v1976 = vrcp.pop %v1927
  %v1977 = vrcp.pop %v1928
  %v1978 = vrcp.pop %v1929
  %v1979 = vrcp.pop %v1930
  %v1980 = vrcp.pop %v1931
  %v1981 = vrcp.pop %v1932
  %v1982 = vrcp.pop %v1933
  %v1983 = vrcp.pop %v1934
  %v1984 = vrcp.pop %v1935
  %v1985 = vrcp.pop %v1936
  %v1986 = vrcp.pop %v1937
  %v1987 = vrcp.pop %v1938
  %v1988 = vrcp.pop %v1939
  %v1989 = vrcp.pop %v1940
  %v1990 = vrcp.pop %v1941
  %v1991 = vrcp.pop %v1942
  %v1992 = vrcp.pop %v1943
  %v1993 = vrcp.pop %v1944
  %v1994 = vrcp.pop %v1945
  %v1995 = vrcp.pop %v1946
  %v1996 = vrcp.pop %v1947
  %v1997 = vrcp.pop %v1948
  %v1998 = vmul.f32 %v1607, %v1949
  %v1999 = vmul.f32 %v1610, %v1950
  %v2000 = vmul.f32 %v1613, %v1951
  %v2001 = vmul.f32 %v1616, %v1952
  %v2002 = vmul.f32 %v1619, %v1953
  %v2003 = vmul.f32 %v1622, %v1954
  %v2004 = vmul.f32 %v1625, %v1955
  %v2005 = vmul.f32 %v1628, %v1956
  %v2006 = vmul.f32 %v1631, %v1957
  %v2007 = vmul.f32 %v1634, %v1958
  %v2008 = vmul.f32 %v1637, %v1959
  %v2009 = vmul.f32 %v1640, %v1960
  %v2010 = vmul.f32 %v1643, %v1961
  %v2011 = vmul.f32 %v1646, %v1962
  %v2012 = vmul.f32 %v1649, %v1963
  %v2013 = vmul.f32 %v1652, %v1964
  %v2014 = vmul.f32 %v1655, %v1965
  %v2015 = vmul.f32 %v1658, %v1966
  %v2016 = vmul.f32 %v1661, %v1967
  %v2017 = vmul.f32 %v1664, %v1968
  %v2018 = vmul.f32 %v1667, %v1969
  %v2019 = vmul.f32 %v1670, %v1970
  %v2020 = vmul.f32 %v1673, %v1971
  %v2021 = vmul.f32 %v1676, %v1972
  %v2022 = vmul.f32 %v1679, %v1973
  %v2023 = vmul.f32 %v1682, %v1974
  %v2024 = vmul.f32 %v1685, %v1975
  %v2025 = vmul.f32 %v1688, %v1976
  %v2026 = vmul.f32 %v1691, %v1977
  %v2027 = vmul.f32 %v1694, %v1978
  %v2028 = vmul.f32 %v1697, %v1979
  %v2029 = vmul.f32 %v1700, %v1980
  %v2030 = vmul.f32 %v1703, %v1981
  %v2031 = vmul.f32 %v1706, %v1982
  %v2032 = vmul.f32 %v1709, %v1983
  %v2033 = vmul.f32 %v1712, %v1984
  %v2034 = vmul.f32 %v1715, %v1985
  %v2035 = vmul.f32 %v1718, %v1986
  %v2036 = vmul.f32 %v1721, %v1987
  %v2037 = vmul.f32 %v1724, %v1988
  %v2038 = vmul.f32 %v1727, %v1989
  %v2039 = vmul.f32 %v1730, %v1990
  %v2040 = vmul.f32 %v1733, %v1991
  %v2041 = vmul.f32 %v1736, %v1992
  %v2042 = vmul.f32 %v1739, %v1993
  %v2043 = vmul.f32 %v1742, %v1994
  %v2044 = vmul.f32 %v1745, %v1995
  %v2045 = vmul.f32 %v1748, %v1996
  %v2046 = vmul.f32 %v1751, %v1997
  %v2047 = vld [vmem:[%s3] sm:$0xff]
  %v2048 = vld [vmem:[%s3 + $0x8] sm:$0xff]
  %v2049 = vld [vmem:[%s3 + $0x10] sm:$0xff]
  %v2050 = vld [vmem:[%s3 + $0x18] sm:$0xff]
  %v2051 = vld [vmem:[%s3 + $0x20] sm:$0xff]
  %v2052 = vld [vmem:[%s3 + $0x28] sm:$0xff]
  %v2053 = vld [vmem:[%s3 + $0x30] sm:$0xff]
  %v2054 = vld [vmem:[%s3 + $0x38] sm:$0xff]
  %v2055 = vld [vmem:[%s3 + $0x40] sm:$0xff]
  %v2056 = vld [vmem:[%s3 + $0x48] sm:$0xff]
  %v2057 = vld [vmem:[%s3 + $0x50] sm:$0xff]
  %v2058 = vld [vmem:[%s3 + $0x58] sm:$0xff]
  %v2059 = vld [vmem:[%s3 + $0x60] sm:$0xff]
  %v2060 = vld [vmem:[%s3 + $0x68] sm:$0xff]
  %v2061 = vld [vmem:[%s3 + $0x70] sm:$0xff]
  %v2062 = vld [vmem:[%s3 + $0x78] sm:$0xff]
  %v2063 = vld [vmem:[%s3 + $0x80] sm:$0xff]
  %v2064 = vld [vmem:[%s3 + $0x88] sm:$0xff]
  %v2065 = vld [vmem:[%s3 + $0x90] sm:$0xff]
  %v2066 = vld [vmem:[%s3 + $0x98] sm:$0xff]
  %v2067 = vld [vmem:[%s3 + $0xa0] sm:$0xff]
  %v2068 = vld [vmem:[%s3 + $0xa8] sm:$0xff]
  %v2069 = vld [vmem:[%s3 + $0xb0] sm:$0xff]
  %v2070 = vld [vmem:[%s3 + $0xb8] sm:$0xff]
  %v2071 = vld [vmem:[%s3 + $0xc0] sm:$0xff]
  %v2072 = vld [vmem:[%s3 + $0xc8] sm:$0xff]
  %v2073 = vld [vmem:[%s3 + $0xd0] sm:$0xff]
  %v2074 = vld [vmem:[%s3 + $0xd8] sm:$0xff]
  %v2075 = vld [vmem:[%s3 + $0xe0] sm:$0xff]
  %v2076 = vld [vmem:[%s3 + $0xe8] sm:$0xff]
  %v2077 = vld [vmem:[%s3 + $0xf0] sm:$0xff]
  %v2078 = vld [vmem:[%s3 + $0xf8] sm:$0xff]
  %v2079 = vld [vmem:[%s3 + $0x100] sm:$0xff]
  %v2080 = vld [vmem:[%s3 + $0x108] sm:$0xff]
  %v2081 = vld [vmem:[%s3 + $0x110] sm:$0xff]
  %v2082 = vld [vmem:[%s3 + $0x118] sm:$0xff]
  %v2083 = vld [vmem:[%s3 + $0x120] sm:$0xff]
  %v2084 = vld [vmem:[%s3 + $0x128] sm:$0xff]
  %v2085 = vld [vmem:[%s3 + $0x130] sm:$0xff]
  %v2086 = vld [vmem:[%s3 + $0x138] sm:$0xff]
  %v2087 = vld [vmem:[%s3 + $0x140] sm:$0xff]
  %v2088 = vld [vmem:[%s3 + $0x148] sm:$0xff]
  %v2089 = vld [vmem:[%s3 + $0x150] sm:$0xff]
  %v2090 = vld [vmem:[%s3 + $0x158] sm:$0xff]
  %v2091 = vld [vmem:[%s3 + $0x160] sm:$0xff]
  %v2092 = vld [vmem:[%s3 + $0x168] sm:$0xff]
  %v2093 = vld [vmem:[%s3 + $0x170] sm:$0xff]
  %v2094 = vld [vmem:[%s3 + $0x178] sm:$0xff]
  %v2095 = vld [vmem:[%s3 + $0x180] sm:$0xff]
  %v2097 = vsel %vm80, %v2047, 0
  %v2100 = vsel %vm80, %v2048, 0
  %v2103 = vsel %vm80, %v2049, 0
  %v2106 = vsel %vm80, %v2050, 0
  %v2109 = vsel %vm80, %v2051, 0
  %v2112 = vsel %vm80, %v2052, 0
  %v2115 = vsel %vm80, %v2053, 0
  %v2118 = vsel %vm80, %v2054, 0
  %v2121 = vsel %vm80, %v2055, 0
  %v2124 = vsel %vm80, %v2056, 0
  %v2127 = vsel %vm80, %v2057, 0
  %v2130 = vsel %vm80, %v2058, 0
  %v2133 = vsel %vm80, %v2059, 0
  %v2136 = vsel %vm80, %v2060, 0
  %v2139 = vsel %vm80, %v2061, 0
  %v2142 = vsel %vm80, %v2062, 0
  %v2145 = vsel %vm80, %v2063, 0
  %v2148 = vsel %vm80, %v2064, 0
  %v2151 = vsel %vm80, %v2065, 0
  %v2154 = vsel %vm80, %v2066, 0
  %v2157 = vsel %vm80, %v2067, 0
  %v2160 = vsel %vm80, %v2068, 0
  %v2163 = vsel %vm80, %v2069, 0
  %v2166 = vsel %vm80, %v2070, 0
  %v2169 = vsel %vm80, %v2071, 0
  %v2172 = vsel %vm80, %v2072, 0
  %v2175 = vsel %vm80, %v2073, 0
  %v2178 = vsel %vm80, %v2074, 0
  %v2181 = vsel %vm80, %v2075, 0
  %v2184 = vsel %vm80, %v2076, 0
  %v2187 = vsel %vm80, %v2077, 0
  %v2190 = vsel %vm80, %v2078, 0
  %v2193 = vsel %vm80, %v2079, 0
  %v2196 = vsel %vm80, %v2080, 0
  %v2199 = vsel %vm80, %v2081, 0
  %v2202 = vsel %vm80, %v2082, 0
  %v2205 = vsel %vm80, %v2083, 0
  %v2208 = vsel %vm80, %v2084, 0
  %v2211 = vsel %vm80, %v2085, 0
  %v2214 = vsel %vm80, %v2086, 0
  %v2217 = vsel %vm80, %v2087, 0
  %v2220 = vsel %vm80, %v2088, 0
  %v2223 = vsel %vm80, %v2089, 0
  %v2226 = vsel %vm80, %v2090, 0
  %v2229 = vsel %vm80, %v2091, 0
  %v2232 = vsel %vm80, %v2092, 0
  %v2235 = vsel %vm80, %v2093, 0
  %v2238 = vsel %vm80, %v2094, 0
  %v2241 = vsel %vm80, %v2095, 0
  %2243 = vmatpush.msra.mxu0 0.0
  %2244 = vmatpush.msra.mxu0 0.0
  %2245 = vmatpush.msra.mxu0 0.0
  %2246 = vmatpush.msra.mxu0 0.0
  %2247 = vmatpush.msra.mxu0 0.0
  %2248 = vmatpush.msra.mxu0 0.0
  %2249 = vmatpush.msra.mxu0 0.0
  %2250 = vmatpush.msra.mxu0 0.0
  %2251 = vmatpush.msra.mxu0 0.0
  %2252 = vmatpush.msra.mxu0 0.0
  %2253 = vmatpush.msra.mxu0 0.0
  %2254 = vmatpush.msra.mxu0 0.0
  %2255 = vmatpush.msra.mxu0 %v230
  %2256 = vmatpush.msra.mxu0 %v74
  %2257 = vmatpush.msra.mxu0 %v73
  %2258 = vmatpush.msra.mxu0 %v72
  %2259 = vmatmul.f32.gmra.mxu0 %v2097
  %v2260 = vpop.f32.mrf.mxu0
  %v2261 = vadd.f32 %v78, %v2260
  %2262 = vmatmul.f32.gmra.mxu0 %v2100
  %v2263 = vpop.f32.mrf.mxu0
  %v2264 = vadd.f32 %v78, %v2263
  %2265 = vmatmul.f32.gmra.mxu0 %v2103
  %v2266 = vpop.f32.mrf.mxu0
  %v2267 = vadd.f32 %v78, %v2266
  %2268 = vmatmul.f32.gmra.mxu0 %v2106
  %v2269 = vpop.f32.mrf.mxu0
  %v2270 = vadd.f32 %v78, %v2269
  %2271 = vmatmul.f32.gmra.mxu0 %v2109
  %v2272 = vpop.f32.mrf.mxu0
  %v2273 = vadd.f32 %v78, %v2272
  %2274 = vmatmul.f32.gmra.mxu0 %v2112
  %v2275 = vpop.f32.mrf.mxu0
  %v2276 = vadd.f32 %v78, %v2275
  %2277 = vmatmul.f32.gmra.mxu0 %v2115
  %v2278 = vpop.f32.mrf.mxu0
  %v2279 = vadd.f32 %v78, %v2278
  %2280 = vmatmul.f32.gmra.mxu0 %v2118
  %v2281 = vpop.f32.mrf.mxu0
  %v2282 = vadd.f32 %v78, %v2281
  %2283 = vmatmul.f32.gmra.mxu0 %v2121
  %v2284 = vpop.f32.mrf.mxu0
  %v2285 = vadd.f32 %v78, %v2284
  %2286 = vmatmul.f32.gmra.mxu0 %v2124
  %v2287 = vpop.f32.mrf.mxu0
  %v2288 = vadd.f32 %v78, %v2287
  %2289 = vmatmul.f32.gmra.mxu0 %v2127
  %v2290 = vpop.f32.mrf.mxu0
  %v2291 = vadd.f32 %v78, %v2290
  %2292 = vmatmul.f32.gmra.mxu0 %v2130
  %v2293 = vpop.f32.mrf.mxu0
  %v2294 = vadd.f32 %v78, %v2293
  %2295 = vmatmul.f32.gmra.mxu0 %v2133
  %v2296 = vpop.f32.mrf.mxu0
  %v2297 = vadd.f32 %v78, %v2296
  %2298 = vmatmul.f32.gmra.mxu0 %v2136
  %v2299 = vpop.f32.mrf.mxu0
  %v2300 = vadd.f32 %v78, %v2299
  %2301 = vmatmul.f32.gmra.mxu0 %v2139
  %v2302 = vpop.f32.mrf.mxu0
  %v2303 = vadd.f32 %v78, %v2302
  %2304 = vmatmul.f32.gmra.mxu0 %v2142
  %v2305 = vpop.f32.mrf.mxu0
  %v2306 = vadd.f32 %v78, %v2305
  %2307 = vmatmul.f32.gmra.mxu0 %v2145
  %v2308 = vpop.f32.mrf.mxu0
  %v2309 = vadd.f32 %v78, %v2308
  %2310 = vmatmul.f32.gmra.mxu0 %v2148
  %v2311 = vpop.f32.mrf.mxu0
  %v2312 = vadd.f32 %v78, %v2311
  %2313 = vmatmul.f32.gmra.mxu0 %v2151
  %v2314 = vpop.f32.mrf.mxu0
  %v2315 = vadd.f32 %v78, %v2314
  %2316 = vmatmul.f32.gmra.mxu0 %v2154
  %v2317 = vpop.f32.mrf.mxu0
  %v2318 = vadd.f32 %v78, %v2317
  %2319 = vmatmul.f32.gmra.mxu0 %v2157
  %v2320 = vpop.f32.mrf.mxu0
  %v2321 = vadd.f32 %v78, %v2320
  %2322 = vmatmul.f32.gmra.mxu0 %v2160
  %v2323 = vpop.f32.mrf.mxu0
  %v2324 = vadd.f32 %v78, %v2323
  %2325 = vmatmul.f32.gmra.mxu0 %v2163
  %v2326 = vpop.f32.mrf.mxu0
  %v2327 = vadd.f32 %v78, %v2326
  %2328 = vmatmul.f32.gmra.mxu0 %v2166
  %v2329 = vpop.f32.mrf.mxu0
  %v2330 = vadd.f32 %v78, %v2329
  %2331 = vmatmul.f32.gmra.mxu0 %v2169
  %v2332 = vpop.f32.mrf.mxu0
  %v2333 = vadd.f32 %v78, %v2332
  %2334 = vmatmul.f32.gmra.mxu0 %v2172
  %v2335 = vpop.f32.mrf.mxu0
  %v2336 = vadd.f32 %v78, %v2335
  %2337 = vmatmul.f32.gmra.mxu0 %v2175
  %v2338 = vpop.f32.mrf.mxu0
  %v2339 = vadd.f32 %v78, %v2338
  %2340 = vmatmul.f32.gmra.mxu0 %v2178
  %v2341 = vpop.f32.mrf.mxu0
  %v2342 = vadd.f32 %v78, %v2341
  %2343 = vmatmul.f32.gmra.mxu0 %v2181
  %v2344 = vpop.f32.mrf.mxu0
  %v2345 = vadd.f32 %v78, %v2344
  %2346 = vmatmul.f32.gmra.mxu0 %v2184
  %v2347 = vpop.f32.mrf.mxu0
  %v2348 = vadd.f32 %v78, %v2347
  %2349 = vmatmul.f32.gmra.mxu0 %v2187
  %v2350 = vpop.f32.mrf.mxu0
  %v2351 = vadd.f32 %v78, %v2350
  %2352 = vmatmul.f32.gmra.mxu0 %v2190
  %v2353 = vpop.f32.mrf.mxu0
  %v2354 = vadd.f32 %v78, %v2353
  %2355 = vmatmul.f32.gmra.mxu0 %v2193
  %v2356 = vpop.f32.mrf.mxu0
  %v2357 = vadd.f32 %v78, %v2356
  %2358 = vmatmul.f32.gmra.mxu0 %v2196
  %v2359 = vpop.f32.mrf.mxu0
  %v2360 = vadd.f32 %v78, %v2359
  %2361 = vmatmul.f32.gmra.mxu0 %v2199
  %v2362 = vpop.f32.mrf.mxu0
  %v2363 = vadd.f32 %v78, %v2362
  %2364 = vmatmul.f32.gmra.mxu0 %v2202
  %v2365 = vpop.f32.mrf.mxu0
  %v2366 = vadd.f32 %v78, %v2365
  %2367 = vmatmul.f32.gmra.mxu0 %v2205
  %v2368 = vpop.f32.mrf.mxu0
  %v2369 = vadd.f32 %v78, %v2368
  %2370 = vmatmul.f32.gmra.mxu0 %v2208
  %v2371 = vpop.f32.mrf.mxu0
  %v2372 = vadd.f32 %v78, %v2371
  %2373 = vmatmul.f32.gmra.mxu0 %v2211
  %v2374 = vpop.f32.mrf.mxu0
  %v2375 = vadd.f32 %v78, %v2374
  %2376 = vmatmul.f32.gmra.mxu0 %v2214
  %v2377 = vpop.f32.mrf.mxu0
  %v2378 = vadd.f32 %v78, %v2377
  %2379 = vmatmul.f32.gmra.mxu0 %v2217
  %v2380 = vpop.f32.mrf.mxu0
  %v2381 = vadd.f32 %v78, %v2380
  %2382 = vmatmul.f32.gmra.mxu0 %v2220
  %v2383 = vpop.f32.mrf.mxu0
  %v2384 = vadd.f32 %v78, %v2383
  %2385 = vmatmul.f32.gmra.mxu0 %v2223
  %v2386 = vpop.f32.mrf.mxu0
  %v2387 = vadd.f32 %v78, %v2386
  %2388 = vmatmul.f32.gmra.mxu0 %v2226
  %v2389 = vpop.f32.mrf.mxu0
  %v2390 = vadd.f32 %v78, %v2389
  %2391 = vmatmul.f32.gmra.mxu0 %v2229
  %v2392 = vpop.f32.mrf.mxu0
  %v2393 = vadd.f32 %v78, %v2392
  %2394 = vmatmul.f32.gmra.mxu0 %v2232
  %v2395 = vpop.f32.mrf.mxu0
  %v2396 = vadd.f32 %v78, %v2395
  %2397 = vmatmul.f32.gmra.mxu0 %v2235
  %v2398 = vpop.f32.mrf.mxu0
  %v2399 = vadd.f32 %v78, %v2398
  %2400 = vmatmul.f32.gmra.mxu0 %v2238
  %v2401 = vpop.f32.mrf.mxu0
  %v2402 = vadd.f32 %v78, %v2401
  %2403 = vmatmul.f32.gmra.mxu0 %v2241
  %v2404 = vpop.f32.mrf.mxu0
  %v2405 = vadd.f32 %v78, %v2404
  %2406 = vdwg.mxu0
  %v2407 = vsub.f32 0.0, %v2261
  %v2408 = vsub.f32 0.0, %v2264
  %v2409 = vsub.f32 0.0, %v2267
  %v2410 = vsub.f32 0.0, %v2270
  %v2411 = vsub.f32 0.0, %v2273
  %v2412 = vsub.f32 0.0, %v2276
  %v2413 = vsub.f32 0.0, %v2279
  %v2414 = vsub.f32 0.0, %v2282
  %v2415 = vsub.f32 0.0, %v2285
  %v2416 = vsub.f32 0.0, %v2288
  %v2417 = vsub.f32 0.0, %v2291
  %v2418 = vsub.f32 0.0, %v2294
  %v2419 = vsub.f32 0.0, %v2297
  %v2420 = vsub.f32 0.0, %v2300
  %v2421 = vsub.f32 0.0, %v2303
  %v2422 = vsub.f32 0.0, %v2306
  %v2423 = vsub.f32 0.0, %v2309
  %v2424 = vsub.f32 0.0, %v2312
  %v2425 = vsub.f32 0.0, %v2315
  %v2426 = vsub.f32 0.0, %v2318
  %v2427 = vsub.f32 0.0, %v2321
  %v2428 = vsub.f32 0.0, %v2324
  %v2429 = vsub.f32 0.0, %v2327
  %v2430 = vsub.f32 0.0, %v2330
  %v2431 = vsub.f32 0.0, %v2333
  %v2432 = vsub.f32 0.0, %v2336
  %v2433 = vsub.f32 0.0, %v2339
  %v2434 = vsub.f32 0.0, %v2342
  %v2435 = vsub.f32 0.0, %v2345
  %v2436 = vsub.f32 0.0, %v2348
  %v2437 = vsub.f32 0.0, %v2351
  %v2438 = vsub.f32 0.0, %v2354
  %v2439 = vsub.f32 0.0, %v2357
  %v2440 = vsub.f32 0.0, %v2360
  %v2441 = vsub.f32 0.0, %v2363
  %v2442 = vsub.f32 0.0, %v2366
  %v2443 = vsub.f32 0.0, %v2369
  %v2444 = vsub.f32 0.0, %v2372
  %v2445 = vsub.f32 0.0, %v2375
  %v2446 = vsub.f32 0.0, %v2378
  %v2447 = vsub.f32 0.0, %v2381
  %v2448 = vsub.f32 0.0, %v2384
  %v2449 = vsub.f32 0.0, %v2387
  %v2450 = vsub.f32 0.0, %v2390
  %v2451 = vsub.f32 0.0, %v2393
  %v2452 = vsub.f32 0.0, %v2396
  %v2453 = vsub.f32 0.0, %v2399
  %v2454 = vsub.f32 0.0, %v2402
  %v2455 = vsub.f32 0.0, %v2405
  %v2456 = vmul.f32 %v2407, 1.442695
  %v2457 = vpow.pop %v2456
  %v2458 = vmul.f32 %v2408, 1.442695
  %v2459 = vpow.pop %v2458
  %v2460 = vmul.f32 %v2409, 1.442695
  %v2461 = vpow.pop %v2460
  %v2462 = vmul.f32 %v2410, 1.442695
  %v2463 = vpow.pop %v2462
  %v2464 = vmul.f32 %v2411, 1.442695
  %v2465 = vpow.pop %v2464
  %v2466 = vmul.f32 %v2412, 1.442695
  %v2467 = vpow.pop %v2466
  %v2468 = vmul.f32 %v2413, 1.442695
  %v2469 = vpow.pop %v2468
  %v2470 = vmul.f32 %v2414, 1.442695
  %v2471 = vpow.pop %v2470
  %v2472 = vmul.f32 %v2415, 1.442695
  %v2473 = vpow.pop %v2472
  %v2474 = vmul.f32 %v2416, 1.442695
  %v2475 = vpow.pop %v2474
  %v2476 = vmul.f32 %v2417, 1.442695
  %v2477 = vpow.pop %v2476
  %v2478 = vmul.f32 %v2418, 1.442695
  %v2479 = vpow.pop %v2478
  %v2480 = vmul.f32 %v2419, 1.442695
  %v2481 = vpow.pop %v2480
  %v2482 = vmul.f32 %v2420, 1.442695
  %v2483 = vpow.pop %v2482
  %v2484 = vmul.f32 %v2421, 1.442695
  %v2485 = vpow.pop %v2484
  %v2486 = vmul.f32 %v2422, 1.442695
  %v2487 = vpow.pop %v2486
  %v2488 = vmul.f32 %v2423, 1.442695
  %v2489 = vpow.pop %v2488
  %v2490 = vmul.f32 %v2424, 1.442695
  %v2491 = vpow.pop %v2490
  %v2492 = vmul.f32 %v2425, 1.442695
  %v2493 = vpow.pop %v2492
  %v2494 = vmul.f32 %v2426, 1.442695
  %v2495 = vpow.pop %v2494
  %v2496 = vmul.f32 %v2427, 1.442695
  %v2497 = vpow.pop %v2496
  %v2498 = vmul.f32 %v2428, 1.442695
  %v2499 = vpow.pop %v2498
  %v2500 = vmul.f32 %v2429, 1.442695
  %v2501 = vpow.pop %v2500
  %v2502 = vmul.f32 %v2430, 1.442695
  %v2503 = vpow.pop %v2502
  %v2504 = vmul.f32 %v2431, 1.442695
  %v2505 = vpow.pop %v2504
  %v2506 = vmul.f32 %v2432, 1.442695
  %v2507 = vpow.pop %v2506
  %v2508 = vmul.f32 %v2433, 1.442695
  %v2509 = vpow.pop %v2508
  %v2510 = vmul.f32 %v2434, 1.442695
  %v2511 = vpow.pop %v2510
  %v2512 = vmul.f32 %v2435, 1.442695
  %v2513 = vpow.pop %v2512
  %v2514 = vmul.f32 %v2436, 1.442695
  %v2515 = vpow.pop %v2514
  %v2516 = vmul.f32 %v2437, 1.442695
  %v2517 = vpow.pop %v2516
  %v2518 = vmul.f32 %v2438, 1.442695
  %v2519 = vpow.pop %v2518
  %v2520 = vmul.f32 %v2439, 1.442695
  %v2521 = vpow.pop %v2520
  %v2522 = vmul.f32 %v2440, 1.442695
  %v2523 = vpow.pop %v2522
  %v2524 = vmul.f32 %v2441, 1.442695
  %v2525 = vpow.pop %v2524
  %v2526 = vmul.f32 %v2442, 1.442695
  %v2527 = vpow.pop %v2526
  %v2528 = vmul.f32 %v2443, 1.442695
  %v2529 = vpow.pop %v2528
  %v2530 = vmul.f32 %v2444, 1.442695
  %v2531 = vpow.pop %v2530
  %v2532 = vmul.f32 %v2445, 1.442695
  %v2533 = vpow.pop %v2532
  %v2534 = vmul.f32 %v2446, 1.442695
  %v2535 = vpow.pop %v2534
  %v2536 = vmul.f32 %v2447, 1.442695
  %v2537 = vpow.pop %v2536
  %v2538 = vmul.f32 %v2448, 1.442695
  %v2539 = vpow.pop %v2538
  %v2540 = vmul.f32 %v2449, 1.442695
  %v2541 = vpow.pop %v2540
  %v2542 = vmul.f32 %v2450, 1.442695
  %v2543 = vpow.pop %v2542
  %v2544 = vmul.f32 %v2451, 1.442695
  %v2545 = vpow.pop %v2544
  %v2546 = vmul.f32 %v2452, 1.442695
  %v2547 = vpow.pop %v2546
  %v2548 = vmul.f32 %v2453, 1.442695
  %v2549 = vpow.pop %v2548
  %v2550 = vmul.f32 %v2454, 1.442695
  %v2551 = vpow.pop %v2550
  %v2552 = vmul.f32 %v2455, 1.442695
  %v2553 = vpow.pop %v2552
  %v2554 = vadd.f32 %v2457, 1.0
  %v2555 = vadd.f32 %v2459, 1.0
  %v2556 = vadd.f32 %v2461, 1.0
  %v2557 = vadd.f32 %v2463, 1.0
  %v2558 = vadd.f32 %v2465, 1.0
  %v2559 = vadd.f32 %v2467, 1.0
  %v2560 = vadd.f32 %v2469, 1.0
  %v2561 = vadd.f32 %v2471, 1.0
  %v2562 = vadd.f32 %v2473, 1.0
  %v2563 = vadd.f32 %v2475, 1.0
  %v2564 = vadd.f32 %v2477, 1.0
  %v2565 = vadd.f32 %v2479, 1.0
  %v2566 = vadd.f32 %v2481, 1.0
  %v2567 = vadd.f32 %v2483, 1.0
  %v2568 = vadd.f32 %v2485, 1.0
  %v2569 = vadd.f32 %v2487, 1.0
  %v2570 = vadd.f32 %v2489, 1.0
  %v2571 = vadd.f32 %v2491, 1.0
  %v2572 = vadd.f32 %v2493, 1.0
  %v2573 = vadd.f32 %v2495, 1.0
  %v2574 = vadd.f32 %v2497, 1.0
  %v2575 = vadd.f32 %v2499, 1.0
  %v2576 = vadd.f32 %v2501, 1.0
  %v2577 = vadd.f32 %v2503, 1.0
  %v2578 = vadd.f32 %v2505, 1.0
  %v2579 = vadd.f32 %v2507, 1.0
  %v2580 = vadd.f32 %v2509, 1.0
  %v2581 = vadd.f32 %v2511, 1.0
  %v2582 = vadd.f32 %v2513, 1.0
  %v2583 = vadd.f32 %v2515, 1.0
  %v2584 = vadd.f32 %v2517, 1.0
  %v2585 = vadd.f32 %v2519, 1.0
  %v2586 = vadd.f32 %v2521, 1.0
  %v2587 = vadd.f32 %v2523, 1.0
  %v2588 = vadd.f32 %v2525, 1.0
  %v2589 = vadd.f32 %v2527, 1.0
  %v2590 = vadd.f32 %v2529, 1.0
  %v2591 = vadd.f32 %v2531, 1.0
  %v2592 = vadd.f32 %v2533, 1.0
  %v2593 = vadd.f32 %v2535, 1.0
  %v2594 = vadd.f32 %v2537, 1.0
  %v2595 = vadd.f32 %v2539, 1.0
  %v2596 = vadd.f32 %v2541, 1.0
  %v2597 = vadd.f32 %v2543, 1.0
  %v2598 = vadd.f32 %v2545, 1.0
  %v2599 = vadd.f32 %v2547, 1.0
  %v2600 = vadd.f32 %v2549, 1.0
  %v2601 = vadd.f32 %v2551, 1.0
  %v2602 = vadd.f32 %v2553, 1.0
  %v2603 = vrcp.pop %v2554
  %v2604 = vrcp.pop %v2555
  %v2605 = vrcp.pop %v2556
  %v2606 = vrcp.pop %v2557
  %v2607 = vrcp.pop %v2558
  %v2608 = vrcp.pop %v2559
  %v2609 = vrcp.pop %v2560
  %v2610 = vrcp.pop %v2561
  %v2611 = vrcp.pop %v2562
  %v2612 = vrcp.pop %v2563
  %v2613 = vrcp.pop %v2564
  %v2614 = vrcp.pop %v2565
  %v2615 = vrcp.pop %v2566
  %v2616 = vrcp.pop %v2567
  %v2617 = vrcp.pop %v2568
  %v2618 = vrcp.pop %v2569
  %v2619 = vrcp.pop %v2570
  %v2620 = vrcp.pop %v2571
  %v2621 = vrcp.pop %v2572
  %v2622 = vrcp.pop %v2573
  %v2623 = vrcp.pop %v2574
  %v2624 = vrcp.pop %v2575
  %v2625 = vrcp.pop %v2576
  %v2626 = vrcp.pop %v2577
  %v2627 = vrcp.pop %v2578
  %v2628 = vrcp.pop %v2579
  %v2629 = vrcp.pop %v2580
  %v2630 = vrcp.pop %v2581
  %v2631 = vrcp.pop %v2582
  %v2632 = vrcp.pop %v2583
  %v2633 = vrcp.pop %v2584
  %v2634 = vrcp.pop %v2585
  %v2635 = vrcp.pop %v2586
  %v2636 = vrcp.pop %v2587
  %v2637 = vrcp.pop %v2588
  %v2638 = vrcp.pop %v2589
  %v2639 = vrcp.pop %v2590
  %v2640 = vrcp.pop %v2591
  %v2641 = vrcp.pop %v2592
  %v2642 = vrcp.pop %v2593
  %v2643 = vrcp.pop %v2594
  %v2644 = vrcp.pop %v2595
  %v2645 = vrcp.pop %v2596
  %v2646 = vrcp.pop %v2597
  %v2647 = vrcp.pop %v2598
  %v2648 = vrcp.pop %v2599
  %v2649 = vrcp.pop %v2600
  %v2650 = vrcp.pop %v2601
  %v2651 = vrcp.pop %v2602
  %v2652 = vmul.f32 %v2261, %v2603
  %v2653 = vmul.f32 %v2264, %v2604
  %v2654 = vmul.f32 %v2267, %v2605
  %v2655 = vmul.f32 %v2270, %v2606
  %v2656 = vmul.f32 %v2273, %v2607
  %v2657 = vmul.f32 %v2276, %v2608
  %v2658 = vmul.f32 %v2279, %v2609
  %v2659 = vmul.f32 %v2282, %v2610
  %v2660 = vmul.f32 %v2285, %v2611
  %v2661 = vmul.f32 %v2288, %v2612
  %v2662 = vmul.f32 %v2291, %v2613
  %v2663 = vmul.f32 %v2294, %v2614
  %v2664 = vmul.f32 %v2297, %v2615
  %v2665 = vmul.f32 %v2300, %v2616
  %v2666 = vmul.f32 %v2303, %v2617
  %v2667 = vmul.f32 %v2306, %v2618
  %v2668 = vmul.f32 %v2309, %v2619
  %v2669 = vmul.f32 %v2312, %v2620
  %v2670 = vmul.f32 %v2315, %v2621
  %v2671 = vmul.f32 %v2318, %v2622
  %v2672 = vmul.f32 %v2321, %v2623
  %v2673 = vmul.f32 %v2324, %v2624
  %v2674 = vmul.f32 %v2327, %v2625
  %v2675 = vmul.f32 %v2330, %v2626
  %v2676 = vmul.f32 %v2333, %v2627
  %v2677 = vmul.f32 %v2336, %v2628
  %v2678 = vmul.f32 %v2339, %v2629
  %v2679 = vmul.f32 %v2342, %v2630
  %v2680 = vmul.f32 %v2345, %v2631
  %v2681 = vmul.f32 %v2348, %v2632
  %v2682 = vmul.f32 %v2351, %v2633
  %v2683 = vmul.f32 %v2354, %v2634
  %v2684 = vmul.f32 %v2357, %v2635
  %v2685 = vmul.f32 %v2360, %v2636
  %v2686 = vmul.f32 %v2363, %v2637
  %v2687 = vmul.f32 %v2366, %v2638
  %v2688 = vmul.f32 %v2369, %v2639
  %v2689 = vmul.f32 %v2372, %v2640
  %v2690 = vmul.f32 %v2375, %v2641
  %v2691 = vmul.f32 %v2378, %v2642
  %v2692 = vmul.f32 %v2381, %v2643
  %v2693 = vmul.f32 %v2384, %v2644
  %v2694 = vmul.f32 %v2387, %v2645
  %v2695 = vmul.f32 %v2390, %v2646
  %v2696 = vmul.f32 %v2393, %v2647
  %v2697 = vmul.f32 %v2396, %v2648
  %v2698 = vmul.f32 %v2399, %v2649
  %v2699 = vmul.f32 %v2402, %v2650
  %v2700 = vmul.f32 %v2405, %v2651
  %v2701 = vmax.f32 %v1998, %v2652
  %v2702 = vmax.f32 %v1999, %v2653
  %v2703 = vmax.f32 %v2000, %v2654
  %v2704 = vmax.f32 %v2001, %v2655
  %v2705 = vmax.f32 %v2002, %v2656
  %v2706 = vmax.f32 %v2003, %v2657
  %v2707 = vmax.f32 %v2004, %v2658
  %v2708 = vmax.f32 %v2005, %v2659
  %v2709 = vmax.f32 %v2006, %v2660
  %v2710 = vmax.f32 %v2007, %v2661
  %v2711 = vmax.f32 %v2008, %v2662
  %v2712 = vmax.f32 %v2009, %v2663
  %v2713 = vmax.f32 %v2010, %v2664
  %v2714 = vmax.f32 %v2011, %v2665
  %v2715 = vmax.f32 %v2012, %v2666
  %v2716 = vmax.f32 %v2013, %v2667
  %v2717 = vmax.f32 %v2014, %v2668
  %v2718 = vmax.f32 %v2015, %v2669
  %v2719 = vmax.f32 %v2016, %v2670
  %v2720 = vmax.f32 %v2017, %v2671
  %v2721 = vmax.f32 %v2018, %v2672
  %v2722 = vmax.f32 %v2019, %v2673
  %v2723 = vmax.f32 %v2020, %v2674
  %v2724 = vmax.f32 %v2021, %v2675
  %v2725 = vmax.f32 %v2022, %v2676
  %v2726 = vmax.f32 %v2023, %v2677
  %v2727 = vmax.f32 %v2024, %v2678
  %v2728 = vmax.f32 %v2025, %v2679
  %v2729 = vmax.f32 %v2026, %v2680
  %v2730 = vmax.f32 %v2027, %v2681
  %v2731 = vmax.f32 %v2028, %v2682
  %v2732 = vmax.f32 %v2029, %v2683
  %v2733 = vmax.f32 %v2030, %v2684
  %v2734 = vmax.f32 %v2031, %v2685
  %v2735 = vmax.f32 %v2032, %v2686
  %v2736 = vmax.f32 %v2033, %v2687
  %v2737 = vmax.f32 %v2034, %v2688
  %v2738 = vmax.f32 %v2035, %v2689
  %v2739 = vmax.f32 %v2036, %v2690
  %v2740 = vmax.f32 %v2037, %v2691
  %v2741 = vmax.f32 %v2038, %v2692
  %v2742 = vmax.f32 %v2039, %v2693
  %v2743 = vmax.f32 %v2040, %v2694
  %v2744 = vmax.f32 %v2041, %v2695
  %v2745 = vmax.f32 %v2042, %v2696
  %v2746 = vmax.f32 %v2043, %v2697
  %v2747 = vmax.f32 %v2044, %v2698
  %v2748 = vmax.f32 %v2045, %v2699
  %v2749 = vmax.f32 %v2046, %v2700
  %v2750 = vmax.f32 %v1344, %v2701
  %v2751 = vmax.f32 %v1345, %v2702
  %v2752 = vmax.f32 %v1346, %v2703
  %v2753 = vmax.f32 %v1347, %v2704
  %v2754 = vmax.f32 %v1348, %v2705
  %v2755 = vmax.f32 %v1349, %v2706
  %v2756 = vmax.f32 %v1350, %v2707
  %v2757 = vmax.f32 %v1351, %v2708
  %v2758 = vmax.f32 %v1352, %v2709
  %v2759 = vmax.f32 %v1353, %v2710
  %v2760 = vmax.f32 %v1354, %v2711
  %v2761 = vmax.f32 %v1355, %v2712
  %v2762 = vmax.f32 %v1356, %v2713
  %v2763 = vmax.f32 %v1357, %v2714
  %v2764 = vmax.f32 %v1358, %v2715
  %v2765 = vmax.f32 %v1359, %v2716
  %v2766 = vmax.f32 %v1360, %v2717
  %v2767 = vmax.f32 %v1361, %v2718
  %v2768 = vmax.f32 %v1362, %v2719
  %v2769 = vmax.f32 %v1363, %v2720
  %v2770 = vmax.f32 %v1364, %v2721
  %v2771 = vmax.f32 %v1365, %v2722
  %v2772 = vmax.f32 %v1366, %v2723
  %v2773 = vmax.f32 %v1367, %v2724
  %v2774 = vmax.f32 %v1368, %v2725
  %v2775 = vmax.f32 %v1369, %v2726
  %v2776 = vmax.f32 %v1370, %v2727
  %v2777 = vmax.f32 %v1371, %v2728
  %v2778 = vmax.f32 %v1372, %v2729
  %v2779 = vmax.f32 %v1373, %v2730
  %v2780 = vmax.f32 %v1374, %v2731
  %v2781 = vmax.f32 %v1375, %v2732
  %v2782 = vmax.f32 %v1376, %v2733
  %v2783 = vmax.f32 %v1377, %v2734
  %v2784 = vmax.f32 %v1378, %v2735
  %v2785 = vmax.f32 %v1379, %v2736
  %v2786 = vmax.f32 %v1380, %v2737
  %v2787 = vmax.f32 %v1381, %v2738
  %v2788 = vmax.f32 %v1382, %v2739
  %v2789 = vmax.f32 %v1383, %v2740
  %v2790 = vmax.f32 %v1384, %v2741
  %v2791 = vmax.f32 %v1385, %v2742
  %v2792 = vmax.f32 %v1386, %v2743
  %v2793 = vmax.f32 %v1387, %v2744
  %v2794 = vmax.f32 %v1388, %v2745
  %v2795 = vmax.f32 %v1389, %v2746
  %v2796 = vmax.f32 %v1390, %v2747
  %v2797 = vmax.f32 %v1391, %v2748
  %v2798 = vmax.f32 %v1392, %v2749
  %vm2799 = vcmask 48128
  %2800 = vst.msk [vmem:[%s6] sm:$0xff] %vm2799, %v2750
  %2801 = vst.msk [vmem:[%s6 + $0x8] sm:$0xff] %vm2799, %v2751
  %2802 = vst.msk [vmem:[%s6 + $0x10] sm:$0xff] %vm2799, %v2752
  %2803 = vst.msk [vmem:[%s6 + $0x18] sm:$0xff] %vm2799, %v2753
  %2804 = vst.msk [vmem:[%s6 + $0x20] sm:$0xff] %vm2799, %v2754
  %2805 = vst.msk [vmem:[%s6 + $0x28] sm:$0xff] %vm2799, %v2755
  %2806 = vst.msk [vmem:[%s6 + $0x30] sm:$0xff] %vm2799, %v2756
  %2807 = vst.msk [vmem:[%s6 + $0x38] sm:$0xff] %vm2799, %v2757
  %2808 = vst.msk [vmem:[%s6 + $0x40] sm:$0xff] %vm2799, %v2758
  %2809 = vst.msk [vmem:[%s6 + $0x48] sm:$0xff] %vm2799, %v2759
  %2810 = vst.msk [vmem:[%s6 + $0x50] sm:$0xff] %vm2799, %v2760
  %2811 = vst.msk [vmem:[%s6 + $0x58] sm:$0xff] %vm2799, %v2761
  %2812 = vst.msk [vmem:[%s6 + $0x60] sm:$0xff] %vm2799, %v2762
  %2813 = vst.msk [vmem:[%s6 + $0x68] sm:$0xff] %vm2799, %v2763
  %2814 = vst.msk [vmem:[%s6 + $0x70] sm:$0xff] %vm2799, %v2764
  %2815 = vst.msk [vmem:[%s6 + $0x78] sm:$0xff] %vm2799, %v2765
  %2816 = vst.msk [vmem:[%s6 + $0x80] sm:$0xff] %vm2799, %v2766
  %2817 = vst.msk [vmem:[%s6 + $0x88] sm:$0xff] %vm2799, %v2767
  %2818 = vst.msk [vmem:[%s6 + $0x90] sm:$0xff] %vm2799, %v2768
  %2819 = vst.msk [vmem:[%s6 + $0x98] sm:$0xff] %vm2799, %v2769
  %2820 = vst.msk [vmem:[%s6 + $0xa0] sm:$0xff] %vm2799, %v2770
  %2821 = vst.msk [vmem:[%s6 + $0xa8] sm:$0xff] %vm2799, %v2771
  %2822 = vst.msk [vmem:[%s6 + $0xb0] sm:$0xff] %vm2799, %v2772
  %2823 = vst.msk [vmem:[%s6 + $0xb8] sm:$0xff] %vm2799, %v2773
  %2824 = vst.msk [vmem:[%s6 + $0xc0] sm:$0xff] %vm2799, %v2774
  %2825 = vst.msk [vmem:[%s6 + $0xc8] sm:$0xff] %vm2799, %v2775
  %2826 = vst.msk [vmem:[%s6 + $0xd0] sm:$0xff] %vm2799, %v2776
  %2827 = vst.msk [vmem:[%s6 + $0xd8] sm:$0xff] %vm2799, %v2777
  %2828 = vst.msk [vmem:[%s6 + $0xe0] sm:$0xff] %vm2799, %v2778
  %2829 = vst.msk [vmem:[%s6 + $0xe8] sm:$0xff] %vm2799, %v2779
  %2830 = vst.msk [vmem:[%s6 + $0xf0] sm:$0xff] %vm2799, %v2780
  %2831 = vst.msk [vmem:[%s6 + $0xf8] sm:$0xff] %vm2799, %v2781
  %2832 = vst.msk [vmem:[%s6 + $0x100] sm:$0xff] %vm2799, %v2782
  %2833 = vst.msk [vmem:[%s6 + $0x108] sm:$0xff] %vm2799, %v2783
  %2834 = vst.msk [vmem:[%s6 + $0x110] sm:$0xff] %vm2799, %v2784
  %2835 = vst.msk [vmem:[%s6 + $0x118] sm:$0xff] %vm2799, %v2785
  %2836 = vst.msk [vmem:[%s6 + $0x120] sm:$0xff] %vm2799, %v2786
  %2837 = vst.msk [vmem:[%s6 + $0x128] sm:$0xff] %vm2799, %v2787
  %2838 = vst.msk [vmem:[%s6 + $0x130] sm:$0xff] %vm2799, %v2788
  %2839 = vst.msk [vmem:[%s6 + $0x138] sm:$0xff] %vm2799, %v2789
  %2840 = vst.msk [vmem:[%s6 + $0x140] sm:$0xff] %vm2799, %v2790
  %2841 = vst.msk [vmem:[%s6 + $0x148] sm:$0xff] %vm2799, %v2791
  %2842 = vst.msk [vmem:[%s6 + $0x150] sm:$0xff] %vm2799, %v2792
  %2843 = vst.msk [vmem:[%s6 + $0x158] sm:$0xff] %vm2799, %v2793
  %2844 = vst.msk [vmem:[%s6 + $0x160] sm:$0xff] %vm2799, %v2794
  %2845 = vst.msk [vmem:[%s6 + $0x168] sm:$0xff] %vm2799, %v2795
  %2846 = vst.msk [vmem:[%s6 + $0x170] sm:$0xff] %vm2799, %v2796
  %2847 = vst.msk [vmem:[%s6 + $0x178] sm:$0xff] %vm2799, %v2797
  %2848 = vst.msk [vmem:[%s6 + $0x180] sm:$0xff] %vm2799, %v2798
  // Predicated region
  $region26: #{lenet5_forward.3} parent=0 // pred_check
    _
  $region27: #{lenet5_forward.3} parent=0 // pred_check_branch
    %2850 = sbr.rel (0) target = $region29
  $region28: #{lenet5_forward.3} parent=0 // pred_region
    _
  $region29: #{lenet5_forward.3} parent=0 // pred_fallthru
    _
  // Predicated region
  $region30: #{lenet5_forward.3} parent=0 // pred_check
    _
  $region31: #{lenet5_forward.3} parent=0 // pred_check_branch
    %2852 = sbr.rel (0) target = $region33
  $region32: #{lenet5_forward.3} parent=0 // pred_region
    _
  $region33: #{lenet5_forward.3} parent=0 // pred_fallthru
    _

// kernel: lenet5_forward.4
$region0: #{lenet5_forward.4}
  #allocation0 [shape = 'u32[]', space=smem, size = 0x4, offset = 0x4, fixed_abs, tag = 'smem constant byte address 0x4 - core index']
  #allocation1 [shape = 'u32[72,128]{1,0:T(1,128)}', space=vmem, size = 0x9000, scoped, tag = 'internal scratch']
  %s0 = inlined_call_operand.vmem [shape: f32[50,150], index: 0, kind: input, shape index: {}]
  %s1 = inlined_call_operand.vmem [shape: f32[50,150], index: 1, kind: input, shape index: {}]
  %s2 = inlined_call_operand.vmem [shape: f32[50,150], index: 2, kind: input, shape index: {}]
  %s3 = inlined_call_operand.vmem [shape: f32[50,150], index: 3, kind: input, shape index: {}]
  %s4 = inlined_call_operand.vmem [shape: f32[150,32], index: 4, kind: input, shape index: {}]
  %s5 = inlined_call_operand.vmem [shape: f32[1,32], index: 5, kind: input, shape index: {}]
  %s6 = inlined_call_operand.vmem [shape: f32[50,16], index: 6, kind: output, shape index: {}]
  %s7 = sld [smem:[#allocation0]]
  $region34: #{lenet5_forward.4} parent=0
    _
  %s9 = ssub.s32 1, %s7
  %s10 = scalar_select 0, %s9, %s7
  // Predicated region
  $region2: #{lenet5_forward.4} parent=0 // pred_check
    _
  $region3: #{lenet5_forward.4} parent=0 // pred_check_branch
    %12 = sbr.rel (0) target = $region5
  $region4: #{lenet5_forward.4} parent=0 // pred_region
    _
  $region5: #{lenet5_forward.4} parent=0 // pred_fallthru
    _
  // Predicated region
  $region6: #{lenet5_forward.4} parent=0 // pred_check
    _
  $region7: #{lenet5_forward.4} parent=0 // pred_check_branch
    %14 = sbr.rel (0) target = $region9
  $region8: #{lenet5_forward.4} parent=0 // pred_region
    _
  $region9: #{lenet5_forward.4} parent=0 // pred_fallthru
    _
  // Predicated region
  $region10: #{lenet5_forward.4} parent=0 // pred_check
    _
  $region11: #{lenet5_forward.4} parent=0 // pred_check_branch
    %16 = sbr.rel (0) target = $region13
  $region12: #{lenet5_forward.4} parent=0 // pred_region
    _
  $region13: #{lenet5_forward.4} parent=0 // pred_fallthru
    _
  // Predicated region
  $region14: #{lenet5_forward.4} parent=0 // pred_check
    _
  $region15: #{lenet5_forward.4} parent=0 // pred_check_branch
    %18 = sbr.rel (0) target = $region17
  $region16: #{lenet5_forward.4} parent=0 // pred_region
    _
  $region17: #{lenet5_forward.4} parent=0 // pred_fallthru
    _
  // Predicated region
  $region18: #{lenet5_forward.4} parent=0 // pred_check
    _
  $region19: #{lenet5_forward.4} parent=0 // pred_check_branch
    %20 = sbr.rel (0) target = $region21
  $region20: #{lenet5_forward.4} parent=0 // pred_region
    _
  $region21: #{lenet5_forward.4} parent=0 // pred_fallthru
    _
  // Predicated region
  $region22: #{lenet5_forward.4} parent=0 // pred_check
    _
  $region23: #{lenet5_forward.4} parent=0 // pred_check_branch
    %22 = sbr.rel (0) target = $region25
  $region24: #{lenet5_forward.4} parent=0 // pred_region
    _
  $region25: #{lenet5_forward.4} parent=0 // pred_fallthru
    _
  %v23 = vld [vmem:[%s0] sm:$0xff]
  %v24 = vld [vmem:[%s0 + $0x8] sm:$0xff]
  %v25 = vld [vmem:[%s0 + $0x10] sm:$0xff]
  %v26 = vld [vmem:[%s0 + $0x18] sm:$0xff]
  %v27 = vld [vmem:[%s0 + $0x20] sm:$0xff]
  %v28 = vld [vmem:[%s0 + $0x28] sm:$0xff]
  %v29 = vld [vmem:[%s0 + $0x30] sm:$0xff]
  %v30 = vld [vmem:[%s0 + $0x38] sm:$0xff]
  %v31 = vld [vmem:[%s0 + $0x40] sm:$0xff]
  %v32 = vld [vmem:[%s0 + $0x48] sm:$0xff]
  %v33 = vld [vmem:[%s0 + $0x50] sm:$0xff]
  %v34 = vld [vmem:[%s0 + $0x58] sm:$0xff]
  %v35 = vld [vmem:[%s0 + $0x60] sm:$0x3]
  %v36 = vld [vmem:[%s0 + $0x68] sm:$0x3]
  %v37 = vld [vmem:[%s4] sm:$0xff]
  %v38 = vld [vmem:[%s4 + $0x8] sm:$0xff]
  %v39 = vld [vmem:[%s4 + $0x10] sm:$0xff]
  %v40 = vld [vmem:[%s4 + $0x18] sm:$0xff]
  %v41 = vld [vmem:[%s4 + $0x20] sm:$0xff]
  %v42 = vld [vmem:[%s4 + $0x28] sm:$0xff]
  %v43 = vld [vmem:[%s4 + $0x30] sm:$0xff]
  %v44 = vld [vmem:[%s4 + $0x38] sm:$0xff]
  %v45 = vld [vmem:[%s4 + $0x40] sm:$0xff]
  %v46 = vld [vmem:[%s4 + $0x48] sm:$0xff]
  %v47 = vld [vmem:[%s4 + $0x50] sm:$0xff]
  %v48 = vld [vmem:[%s4 + $0x58] sm:$0xff]
  %v49 = vld [vmem:[%s4 + $0x60] sm:$0xff]
  %v50 = vld [vmem:[%s4 + $0x68] sm:$0xff]
  %v51 = vld [vmem:[%s4 + $0x70] sm:$0xff]
  %v52 = vld [vmem:[%s4 + $0x78] sm:$0xff]
  %v53 = vld [vmem:[%s4 + $0x80] sm:$0xff]
  %v54 = vld [vmem:[%s4 + $0x88] sm:$0xff]
  %v55 = vld [vmem:[%s4 + $0x90] sm:$0x3f]
  %v56 = vld [vmem:[%s5] sm:$0x1]
  %v58 = vperm.slane %v56, 0
  %vm60 = vcmask 179200
  %v62 = vsel %vm60, %v24, 0
  %v65 = vsel %vm60, %v26, 0
  %v68 = vsel %vm60, %v28, 0
  %v71 = vsel %vm60, %v30, 0
  %v74 = vsel %vm60, %v32, 0
  %v77 = vsel %vm60, %v34, 0
  %v80 = vsel %vm60, %v36, 0
  %vm82 = vcmask 1045504
  %v84 = vsel %vm82, %v55, 0
  %86 = vmatpush.msra.mxu0 %v52
  %87 = vmatpush.msra.mxu0 %v51
  %88 = vmatpush.msra.mxu0 %v50
  %89 = vmatpush.msra.mxu0 %v49
  %90 = vmatpush.msra.mxu0 %v48
  %91 = vmatpush.msra.mxu0 %v47
  %92 = vmatpush.msra.mxu0 %v46
  %93 = vmatpush.msra.mxu0 %v45
  %94 = vmatpush.msra.mxu0 %v44
  %95 = vmatpush.msra.mxu0 %v43
  %96 = vmatpush.msra.mxu0 %v42
  %97 = vmatpush.msra.mxu0 %v41
  %98 = vmatpush.msra.mxu0 %v40
  %99 = vmatpush.msra.mxu0 %v39
  %100 = vmatpush.msra.mxu0 %v38
  %101 = vmatpush.msra.mxu0 %v37
  %102 = vmatmul.f32.gmra.mxu0 %v23
  %v103 = vpop.f32.mrf.mxu0
  %v104 = vadd.f32 %v58, %v103
  %105 = vmatmul.f32.gmra.mxu0 %v25
  %v106 = vpop.f32.mrf.mxu0
  %v107 = vadd.f32 %v58, %v106
  %108 = vmatmul.f32.gmra.mxu0 %v27
  %v109 = vpop.f32.mrf.mxu0
  %v110 = vadd.f32 %v58, %v109
  %111 = vmatmul.f32.gmra.mxu0 %v29
  %v112 = vpop.f32.mrf.mxu0
  %v113 = vadd.f32 %v58, %v112
  %114 = vmatmul.f32.gmra.mxu0 %v31
  %v115 = vpop.f32.mrf.mxu0
  %v116 = vadd.f32 %v58, %v115
  %117 = vmatmul.f32.gmra.mxu0 %v33
  %v118 = vpop.f32.mrf.mxu0
  %v119 = vadd.f32 %v58, %v118
  %120 = vmatmul.f32.gmra.mxu0 %v35
  %v121 = vpop.f32.mrf.mxu0
  %v122 = vadd.f32 %v58, %v121
  %123 = vdwg.mxu0
  %124 = vmatpush.msra.mxu0 0.0
  %125 = vmatpush.msra.mxu0 0.0
  %126 = vmatpush.msra.mxu0 0.0
  %127 = vmatpush.msra.mxu0 0.0
  %128 = vmatpush.msra.mxu0 0.0
  %129 = vmatpush.msra.mxu0 0.0
  %130 = vmatpush.msra.mxu0 0.0
  %131 = vmatpush.msra.mxu0 0.0
  %132 = vmatpush.msra.mxu0 0.0
  %133 = vmatpush.msra.mxu0 0.0
  %134 = vmatpush.msra.mxu0 0.0
  %135 = vmatpush.msra.mxu0 0.0
  %136 = vmatpush.msra.mxu0 0.0
  %137 = vmatpush.msra.mxu0 %v84
  %138 = vmatpush.msra.mxu0 %v54
  %139 = vmatpush.msra.mxu0 %v53
  %140 = vmatmul.f32.gmra.mxu0 %v62
  %v141 = vpop.f32.mrf.mxu0
  %v142 = vadd.f32 %v104, %v141
  %143 = vmatmul.f32.gmra.mxu0 %v65
  %v144 = vpop.f32.mrf.mxu0
  %v145 = vadd.f32 %v107, %v144
  %146 = vmatmul.f32.gmra.mxu0 %v68
  %v147 = vpop.f32.mrf.mxu0
  %v148 = vadd.f32 %v110, %v147
  %149 = vmatmul.f32.gmra.mxu0 %v71
  %v150 = vpop.f32.mrf.mxu0
  %v151 = vadd.f32 %v113, %v150
  %152 = vmatmul.f32.gmra.mxu0 %v74
  %v153 = vpop.f32.mrf.mxu0
  %v154 = vadd.f32 %v116, %v153
  %155 = vmatmul.f32.gmra.mxu0 %v77
  %v156 = vpop.f32.mrf.mxu0
  %v157 = vadd.f32 %v119, %v156
  %158 = vmatmul.f32.gmra.mxu0 %v80
  %v159 = vpop.f32.mrf.mxu0
  %v160 = vadd.f32 %v122, %v159
  %161 = vdwg.mxu0
  %v162 = vsub.f32 0.0, %v142
  %v163 = vsub.f32 0.0, %v145
  %v164 = vsub.f32 0.0, %v148
  %v165 = vsub.f32 0.0, %v151
  %v166 = vsub.f32 0.0, %v154
  %v167 = vsub.f32 0.0, %v157
  %v168 = vsub.f32 0.0, %v160
  %v169 = vmul.f32 %v162, 1.442695
  %v170 = vpow.pop %v169
  %v171 = vmul.f32 %v163, 1.442695
  %v172 = vpow.pop %v171
  %v173 = vmul.f32 %v164, 1.442695
  %v174 = vpow.pop %v173
  %v175 = vmul.f32 %v165, 1.442695
  %v176 = vpow.pop %v175
  %v177 = vmul.f32 %v166, 1.442695
  %v178 = vpow.pop %v177
  %v179 = vmul.f32 %v167, 1.442695
  %v180 = vpow.pop %v179
  %v181 = vmul.f32 %v168, 1.442695
  %v182 = vpow.pop %v181
  %v183 = vadd.f32 %v170, 1.0
  %v184 = vadd.f32 %v172, 1.0
  %v185 = vadd.f32 %v174, 1.0
  %v186 = vadd.f32 %v176, 1.0
  %v187 = vadd.f32 %v178, 1.0
  %v188 = vadd.f32 %v180, 1.0
  %v189 = vadd.f32 %v182, 1.0
  %v190 = vrcp.pop %v183
  %v191 = vrcp.pop %v184
  %v192 = vrcp.pop %v185
  %v193 = vrcp.pop %v186
  %v194 = vrcp.pop %v187
  %v195 = vrcp.pop %v188
  %v196 = vrcp.pop %v189
  %v197 = vmul.f32 %v142, %v190
  %v198 = vmul.f32 %v145, %v191
  %v199 = vmul.f32 %v148, %v192
  %v200 = vmul.f32 %v151, %v193
  %v201 = vmul.f32 %v154, %v194
  %v202 = vmul.f32 %v157, %v195
  %v203 = vmul.f32 %v160, %v196
  %v204 = vld [vmem:[%s1] sm:$0xff]
  %v205 = vld [vmem:[%s1 + $0x8] sm:$0xff]
  %v206 = vld [vmem:[%s1 + $0x10] sm:$0xff]
  %v207 = vld [vmem:[%s1 + $0x18] sm:$0xff]
  %v208 = vld [vmem:[%s1 + $0x20] sm:$0xff]
  %v209 = vld [vmem:[%s1 + $0x28] sm:$0xff]
  %v210 = vld [vmem:[%s1 + $0x30] sm:$0xff]
  %v211 = vld [vmem:[%s1 + $0x38] sm:$0xff]
  %v212 = vld [vmem:[%s1 + $0x40] sm:$0xff]
  %v213 = vld [vmem:[%s1 + $0x48] sm:$0xff]
  %v214 = vld [vmem:[%s1 + $0x50] sm:$0xff]
  %v215 = vld [vmem:[%s1 + $0x58] sm:$0xff]
  %v216 = vld [vmem:[%s1 + $0x60] sm:$0x3]
  %v217 = vld [vmem:[%s1 + $0x68] sm:$0x3]
  %v219 = vsel %vm60, %v205, 0
  %v222 = vsel %vm60, %v207, 0
  %v225 = vsel %vm60, %v209, 0
  %v228 = vsel %vm60, %v211, 0
  %v231 = vsel %vm60, %v213, 0
  %v234 = vsel %vm60, %v215, 0
  %v237 = vsel %vm60, %v217, 0
  %239 = vmatpush.msra.mxu0 %v52
  %240 = vmatpush.msra.mxu0 %v51
  %241 = vmatpush.msra.mxu0 %v50
  %242 = vmatpush.msra.mxu0 %v49
  %243 = vmatpush.msra.mxu0 %v48
  %244 = vmatpush.msra.mxu0 %v47
  %245 = vmatpush.msra.mxu0 %v46
  %246 = vmatpush.msra.mxu0 %v45
  %247 = vmatpush.msra.mxu0 %v44
  %248 = vmatpush.msra.mxu0 %v43
  %249 = vmatpush.msra.mxu0 %v42
  %250 = vmatpush.msra.mxu0 %v41
  %251 = vmatpush.msra.mxu0 %v40
  %252 = vmatpush.msra.mxu0 %v39
  %253 = vmatpush.msra.mxu0 %v38
  %254 = vmatpush.msra.mxu0 %v37
  %255 = vmatmul.f32.gmra.mxu0 %v204
  %v256 = vpop.f32.mrf.mxu0
  %v257 = vadd.f32 %v58, %v256
  %258 = vmatmul.f32.gmra.mxu0 %v206
  %v259 = vpop.f32.mrf.mxu0
  %v260 = vadd.f32 %v58, %v259
  %261 = vmatmul.f32.gmra.mxu0 %v208
  %v262 = vpop.f32.mrf.mxu0
  %v263 = vadd.f32 %v58, %v262
  %264 = vmatmul.f32.gmra.mxu0 %v210
  %v265 = vpop.f32.mrf.mxu0
  %v266 = vadd.f32 %v58, %v265
  %267 = vmatmul.f32.gmra.mxu0 %v212
  %v268 = vpop.f32.mrf.mxu0
  %v269 = vadd.f32 %v58, %v268
  %270 = vmatmul.f32.gmra.mxu0 %v214
  %v271 = vpop.f32.mrf.mxu0
  %v272 = vadd.f32 %v58, %v271
  %273 = vmatmul.f32.gmra.mxu0 %v216
  %v274 = vpop.f32.mrf.mxu0
  %v275 = vadd.f32 %v58, %v274
  %276 = vdwg.mxu0
  %277 = vmatpush.msra.mxu0 0.0
  %278 = vmatpush.msra.mxu0 0.0
  %279 = vmatpush.msra.mxu0 0.0
  %280 = vmatpush.msra.mxu0 0.0
  %281 = vmatpush.msra.mxu0 0.0
  %282 = vmatpush.msra.mxu0 0.0
  %283 = vmatpush.msra.mxu0 0.0
  %284 = vmatpush.msra.mxu0 0.0
  %285 = vmatpush.msra.mxu0 0.0
  %286 = vmatpush.msra.mxu0 0.0
  %287 = vmatpush.msra.mxu0 0.0
  %288 = vmatpush.msra.mxu0 0.0
  %289 = vmatpush.msra.mxu0 0.0
  %290 = vmatpush.msra.mxu0 %v84
  %291 = vmatpush.msra.mxu0 %v54
  %292 = vmatpush.msra.mxu0 %v53
  %293 = vmatmul.f32.gmra.mxu0 %v219
  %v294 = vpop.f32.mrf.mxu0
  %v295 = vadd.f32 %v257, %v294
  %296 = vmatmul.f32.gmra.mxu0 %v222
  %v297 = vpop.f32.mrf.mxu0
  %v298 = vadd.f32 %v260, %v297
  %299 = vmatmul.f32.gmra.mxu0 %v225
  %v300 = vpop.f32.mrf.mxu0
  %v301 = vadd.f32 %v263, %v300
  %302 = vmatmul.f32.gmra.mxu0 %v228
  %v303 = vpop.f32.mrf.mxu0
  %v304 = vadd.f32 %v266, %v303
  %305 = vmatmul.f32.gmra.mxu0 %v231
  %v306 = vpop.f32.mrf.mxu0
  %v307 = vadd.f32 %v269, %v306
  %308 = vmatmul.f32.gmra.mxu0 %v234
  %v309 = vpop.f32.mrf.mxu0
  %v310 = vadd.f32 %v272, %v309
  %311 = vmatmul.f32.gmra.mxu0 %v237
  %v312 = vpop.f32.mrf.mxu0
  %v313 = vadd.f32 %v275, %v312
  %314 = vdwg.mxu0
  %v315 = vsub.f32 0.0, %v295
  %v316 = vsub.f32 0.0, %v298
  %v317 = vsub.f32 0.0, %v301
  %v318 = vsub.f32 0.0, %v304
  %v319 = vsub.f32 0.0, %v307
  %v320 = vsub.f32 0.0, %v310
  %v321 = vsub.f32 0.0, %v313
  %v322 = vmul.f32 %v315, 1.442695
  %v323 = vpow.pop %v322
  %v324 = vmul.f32 %v316, 1.442695
  %v325 = vpow.pop %v324
  %v326 = vmul.f32 %v317, 1.442695
  %v327 = vpow.pop %v326
  %v328 = vmul.f32 %v318, 1.442695
  %v329 = vpow.pop %v328
  %v330 = vmul.f32 %v319, 1.442695
  %v331 = vpow.pop %v330
  %v332 = vmul.f32 %v320, 1.442695
  %v333 = vpow.pop %v332
  %v334 = vmul.f32 %v321, 1.442695
  %v335 = vpow.pop %v334
  %v336 = vadd.f32 %v323, 1.0
  %v337 = vadd.f32 %v325, 1.0
  %v338 = vadd.f32 %v327, 1.0
  %v339 = vadd.f32 %v329, 1.0
  %v340 = vadd.f32 %v331, 1.0
  %v341 = vadd.f32 %v333, 1.0
  %v342 = vadd.f32 %v335, 1.0
  %v343 = vrcp.pop %v336
  %v344 = vrcp.pop %v337
  %v345 = vrcp.pop %v338
  %v346 = vrcp.pop %v339
  %v347 = vrcp.pop %v340
  %v348 = vrcp.pop %v341
  %v349 = vrcp.pop %v342
  %v350 = vmul.f32 %v295, %v343
  %v351 = vmul.f32 %v298, %v344
  %v352 = vmul.f32 %v301, %v345
  %v353 = vmul.f32 %v304, %v346
  %v354 = vmul.f32 %v307, %v347
  %v355 = vmul.f32 %v310, %v348
  %v356 = vmul.f32 %v313, %v349
  %v357 = vmax.f32 %v197, %v350
  %v358 = vmax.f32 %v198, %v351
  %v359 = vmax.f32 %v199, %v352
  %v360 = vmax.f32 %v200, %v353
  %v361 = vmax.f32 %v201, %v354
  %v362 = vmax.f32 %v202, %v355
  %v363 = vmax.f32 %v203, %v356
  %v364 = vld [vmem:[%s2] sm:$0xff]
  %v365 = vld [vmem:[%s2 + $0x8] sm:$0xff]
  %v366 = vld [vmem:[%s2 + $0x10] sm:$0xff]
  %v367 = vld [vmem:[%s2 + $0x18] sm:$0xff]
  %v368 = vld [vmem:[%s2 + $0x20] sm:$0xff]
  %v369 = vld [vmem:[%s2 + $0x28] sm:$0xff]
  %v370 = vld [vmem:[%s2 + $0x30] sm:$0xff]
  %v371 = vld [vmem:[%s2 + $0x38] sm:$0xff]
  %v372 = vld [vmem:[%s2 + $0x40] sm:$0xff]
  %v373 = vld [vmem:[%s2 + $0x48] sm:$0xff]
  %v374 = vld [vmem:[%s2 + $0x50] sm:$0xff]
  %v375 = vld [vmem:[%s2 + $0x58] sm:$0xff]
  %v376 = vld [vmem:[%s2 + $0x60] sm:$0x3]
  %v377 = vld [vmem:[%s2 + $0x68] sm:$0x3]
  %v379 = vsel %vm60, %v365, 0
  %v382 = vsel %vm60, %v367, 0
  %v385 = vsel %vm60, %v369, 0
  %v388 = vsel %vm60, %v371, 0
  %v391 = vsel %vm60, %v373, 0
  %v394 = vsel %vm60, %v375, 0
  %v397 = vsel %vm60, %v377, 0
  %399 = vmatpush.msra.mxu0 %v52
  %400 = vmatpush.msra.mxu0 %v51
  %401 = vmatpush.msra.mxu0 %v50
  %402 = vmatpush.msra.mxu0 %v49
  %403 = vmatpush.msra.mxu0 %v48
  %404 = vmatpush.msra.mxu0 %v47
  %405 = vmatpush.msra.mxu0 %v46
  %406 = vmatpush.msra.mxu0 %v45
  %407 = vmatpush.msra.mxu0 %v44
  %408 = vmatpush.msra.mxu0 %v43
  %409 = vmatpush.msra.mxu0 %v42
  %410 = vmatpush.msra.mxu0 %v41
  %411 = vmatpush.msra.mxu0 %v40
  %412 = vmatpush.msra.mxu0 %v39
  %413 = vmatpush.msra.mxu0 %v38
  %414 = vmatpush.msra.mxu0 %v37
  %415 = vmatmul.f32.gmra.mxu0 %v364
  %v416 = vpop.f32.mrf.mxu0
  %v417 = vadd.f32 %v58, %v416
  %418 = vmatmul.f32.gmra.mxu0 %v366
  %v419 = vpop.f32.mrf.mxu0
  %v420 = vadd.f32 %v58, %v419
  %421 = vmatmul.f32.gmra.mxu0 %v368
  %v422 = vpop.f32.mrf.mxu0
  %v423 = vadd.f32 %v58, %v422
  %424 = vmatmul.f32.gmra.mxu0 %v370
  %v425 = vpop.f32.mrf.mxu0
  %v426 = vadd.f32 %v58, %v425
  %427 = vmatmul.f32.gmra.mxu0 %v372
  %v428 = vpop.f32.mrf.mxu0
  %v429 = vadd.f32 %v58, %v428
  %430 = vmatmul.f32.gmra.mxu0 %v374
  %v431 = vpop.f32.mrf.mxu0
  %v432 = vadd.f32 %v58, %v431
  %433 = vmatmul.f32.gmra.mxu0 %v376
  %v434 = vpop.f32.mrf.mxu0
  %v435 = vadd.f32 %v58, %v434
  %436 = vdwg.mxu0
  %437 = vmatpush.msra.mxu0 0.0
  %438 = vmatpush.msra.mxu0 0.0
  %439 = vmatpush.msra.mxu0 0.0
  %440 = vmatpush.msra.mxu0 0.0
  %441 = vmatpush.msra.mxu0 0.0
  %442 = vmatpush.msra.mxu0 0.0
  %443 = vmatpush.msra.mxu0 0.0
  %444 = vmatpush.msra.mxu0 0.0
  %445 = vmatpush.msra.mxu0 0.0
  %446 = vmatpush.msra.mxu0 0.0
  %447 = vmatpush.msra.mxu0 0.0
  %448 = vmatpush.msra.mxu0 0.0
  %449 = vmatpush.msra.mxu0 0.0
  %450 = vmatpush.msra.mxu0 %v84
  %451 = vmatpush.msra.mxu0 %v54
  %452 = vmatpush.msra.mxu0 %v53
  %453 = vmatmul.f32.gmra.mxu0 %v379
  %v454 = vpop.f32.mrf.mxu0
  %v455 = vadd.f32 %v417, %v454
  %456 = vmatmul.f32.gmra.mxu0 %v382
  %v457 = vpop.f32.mrf.mxu0
  %v458 = vadd.f32 %v420, %v457
  %459 = vmatmul.f32.gmra.mxu0 %v385
  %v460 = vpop.f32.mrf.mxu0
  %v461 = vadd.f32 %v423, %v460
  %462 = vmatmul.f32.gmra.mxu0 %v388
  %v463 = vpop.f32.mrf.mxu0
  %v464 = vadd.f32 %v426, %v463
  %465 = vmatmul.f32.gmra.mxu0 %v391
  %v466 = vpop.f32.mrf.mxu0
  %v467 = vadd.f32 %v429, %v466
  %468 = vmatmul.f32.gmra.mxu0 %v394
  %v469 = vpop.f32.mrf.mxu0
  %v470 = vadd.f32 %v432, %v469
  %471 = vmatmul.f32.gmra.mxu0 %v397
  %v472 = vpop.f32.mrf.mxu0
  %v473 = vadd.f32 %v435, %v472
  %474 = vdwg.mxu0
  %v475 = vsub.f32 0.0, %v455
  %v476 = vsub.f32 0.0, %v458
  %v477 = vsub.f32 0.0, %v461
  %v478 = vsub.f32 0.0, %v464
  %v479 = vsub.f32 0.0, %v467
  %v480 = vsub.f32 0.0, %v470
  %v481 = vsub.f32 0.0, %v473
  %v482 = vmul.f32 %v475, 1.442695
  %v483 = vpow.pop %v482
  %v484 = vmul.f32 %v476, 1.442695
  %v485 = vpow.pop %v484
  %v486 = vmul.f32 %v477, 1.442695
  %v487 = vpow.pop %v486
  %v488 = vmul.f32 %v478, 1.442695
  %v489 = vpow.pop %v488
  %v490 = vmul.f32 %v479, 1.442695
  %v491 = vpow.pop %v490
  %v492 = vmul.f32 %v480, 1.442695
  %v493 = vpow.pop %v492
  %v494 = vmul.f32 %v481, 1.442695
  %v495 = vpow.pop %v494
  %v496 = vadd.f32 %v483, 1.0
  %v497 = vadd.f32 %v485, 1.0
  %v498 = vadd.f32 %v487, 1.0
  %v499 = vadd.f32 %v489, 1.0
  %v500 = vadd.f32 %v491, 1.0
  %v501 = vadd.f32 %v493, 1.0
  %v502 = vadd.f32 %v495, 1.0
  %v503 = vrcp.pop %v496
  %v504 = vrcp.pop %v497
  %v505 = vrcp.pop %v498
  %v506 = vrcp.pop %v499
  %v507 = vrcp.pop %v500
  %v508 = vrcp.pop %v501
  %v509 = vrcp.pop %v502
  %v510 = vmul.f32 %v455, %v503
  %v511 = vmul.f32 %v458, %v504
  %v512 = vmul.f32 %v461, %v505
  %v513 = vmul.f32 %v464, %v506
  %v514 = vmul.f32 %v467, %v507
  %v515 = vmul.f32 %v470, %v508
  %v516 = vmul.f32 %v473, %v509
  %v517 = vld [vmem:[%s3] sm:$0xff]
  %v518 = vld [vmem:[%s3 + $0x8] sm:$0xff]
  %v519 = vld [vmem:[%s3 + $0x10] sm:$0xff]
  %v520 = vld [vmem:[%s3 + $0x18] sm:$0xff]
  %v521 = vld [vmem:[%s3 + $0x20] sm:$0xff]
  %v522 = vld [vmem:[%s3 + $0x28] sm:$0xff]
  %v523 = vld [vmem:[%s3 + $0x30] sm:$0xff]
  %v524 = vld [vmem:[%s3 + $0x38] sm:$0xff]
  %v525 = vld [vmem:[%s3 + $0x40] sm:$0xff]
  %v526 = vld [vmem:[%s3 + $0x48] sm:$0xff]
  %v527 = vld [vmem:[%s3 + $0x50] sm:$0xff]
  %v528 = vld [vmem:[%s3 + $0x58] sm:$0xff]
  %v529 = vld [vmem:[%s3 + $0x60] sm:$0x3]
  %v530 = vld [vmem:[%s3 + $0x68] sm:$0x3]
  %v532 = vsel %vm60, %v518, 0
  %v535 = vsel %vm60, %v520, 0
  %v538 = vsel %vm60, %v522, 0
  %v541 = vsel %vm60, %v524, 0
  %v544 = vsel %vm60, %v526, 0
  %v547 = vsel %vm60, %v528, 0
  %v550 = vsel %vm60, %v530, 0
  %552 = vmatpush.msra.mxu0 %v52
  %553 = vmatpush.msra.mxu0 %v51
  %554 = vmatpush.msra.mxu0 %v50
  %555 = vmatpush.msra.mxu0 %v49
  %556 = vmatpush.msra.mxu0 %v48
  %557 = vmatpush.msra.mxu0 %v47
  %558 = vmatpush.msra.mxu0 %v46
  %559 = vmatpush.msra.mxu0 %v45
  %560 = vmatpush.msra.mxu0 %v44
  %561 = vmatpush.msra.mxu0 %v43
  %562 = vmatpush.msra.mxu0 %v42
  %563 = vmatpush.msra.mxu0 %v41
  %564 = vmatpush.msra.mxu0 %v40
  %565 = vmatpush.msra.mxu0 %v39
  %566 = vmatpush.msra.mxu0 %v38
  %567 = vmatpush.msra.mxu0 %v37
  %568 = vmatmul.f32.gmra.mxu0 %v517
  %v569 = vpop.f32.mrf.mxu0
  %v570 = vadd.f32 %v58, %v569
  %571 = vmatmul.f32.gmra.mxu0 %v519
  %v572 = vpop.f32.mrf.mxu0
  %v573 = vadd.f32 %v58, %v572
  %574 = vmatmul.f32.gmra.mxu0 %v521
  %v575 = vpop.f32.mrf.mxu0
  %v576 = vadd.f32 %v58, %v575
  %577 = vmatmul.f32.gmra.mxu0 %v523
  %v578 = vpop.f32.mrf.mxu0
  %v579 = vadd.f32 %v58, %v578
  %580 = vmatmul.f32.gmra.mxu0 %v525
  %v581 = vpop.f32.mrf.mxu0
  %v582 = vadd.f32 %v58, %v581
  %583 = vmatmul.f32.gmra.mxu0 %v527
  %v584 = vpop.f32.mrf.mxu0
  %v585 = vadd.f32 %v58, %v584
  %586 = vmatmul.f32.gmra.mxu0 %v529
  %v587 = vpop.f32.mrf.mxu0
  %v588 = vadd.f32 %v58, %v587
  %589 = vdwg.mxu0
  %590 = vmatpush.msra.mxu0 0.0
  %591 = vmatpush.msra.mxu0 0.0
  %592 = vmatpush.msra.mxu0 0.0
  %593 = vmatpush.msra.mxu0 0.0
  %594 = vmatpush.msra.mxu0 0.0
  %595 = vmatpush.msra.mxu0 0.0
  %596 = vmatpush.msra.mxu0 0.0
  %597 = vmatpush.msra.mxu0 0.0
  %598 = vmatpush.msra.mxu0 0.0
  %599 = vmatpush.msra.mxu0 0.0
  %600 = vmatpush.msra.mxu0 0.0
  %601 = vmatpush.msra.mxu0 0.0
  %602 = vmatpush.msra.mxu0 0.0
  %603 = vmatpush.msra.mxu0 %v84
  %604 = vmatpush.msra.mxu0 %v54
  %605 = vmatpush.msra.mxu0 %v53
  %606 = vmatmul.f32.gmra.mxu0 %v532
  %v607 = vpop.f32.mrf.mxu0
  %v608 = vadd.f32 %v570, %v607
  %609 = vmatmul.f32.gmra.mxu0 %v535
  %v610 = vpop.f32.mrf.mxu0
  %v611 = vadd.f32 %v573, %v610
  %612 = vmatmul.f32.gmra.mxu0 %v538
  %v613 = vpop.f32.mrf.mxu0
  %v614 = vadd.f32 %v576, %v613
  %615 = vmatmul.f32.gmra.mxu0 %v541
  %v616 = vpop.f32.mrf.mxu0
  %v617 = vadd.f32 %v579, %v616
  %618 = vmatmul.f32.gmra.mxu0 %v544
  %v619 = vpop.f32.mrf.mxu0
  %v620 = vadd.f32 %v582, %v619
  %621 = vmatmul.f32.gmra.mxu0 %v547
  %v622 = vpop.f32.mrf.mxu0
  %v623 = vadd.f32 %v585, %v622
  %624 = vmatmul.f32.gmra.mxu0 %v550
  %v625 = vpop.f32.mrf.mxu0
  %v626 = vadd.f32 %v588, %v625
  %627 = vdwg.mxu0
  %v628 = vsub.f32 0.0, %v608
  %v629 = vsub.f32 0.0, %v611
  %v630 = vsub.f32 0.0, %v614
  %v631 = vsub.f32 0.0, %v617
  %v632 = vsub.f32 0.0, %v620
  %v633 = vsub.f32 0.0, %v623
  %v634 = vsub.f32 0.0, %v626
  %v635 = vmul.f32 %v628, 1.442695
  %v636 = vpow.pop %v635
  %v637 = vmul.f32 %v629, 1.442695
  %v638 = vpow.pop %v637
  %v639 = vmul.f32 %v630, 1.442695
  %v640 = vpow.pop %v639
  %v641 = vmul.f32 %v631, 1.442695
  %v642 = vpow.pop %v641
  %v643 = vmul.f32 %v632, 1.442695
  %v644 = vpow.pop %v643
  %v645 = vmul.f32 %v633, 1.442695
  %v646 = vpow.pop %v645
  %v647 = vmul.f32 %v634, 1.442695
  %v648 = vpow.pop %v647
  %v649 = vadd.f32 %v636, 1.0
  %v650 = vadd.f32 %v638, 1.0
  %v651 = vadd.f32 %v640, 1.0
  %v652 = vadd.f32 %v642, 1.0
  %v653 = vadd.f32 %v644, 1.0
  %v654 = vadd.f32 %v646, 1.0
  %v655 = vadd.f32 %v648, 1.0
  %v656 = vrcp.pop %v649
  %v657 = vrcp.pop %v650
  %v658 = vrcp.pop %v651
  %v659 = vrcp.pop %v652
  %v660 = vrcp.pop %v653
  %v661 = vrcp.pop %v654
  %v662 = vrcp.pop %v655
  %v663 = vmul.f32 %v608, %v656
  %v664 = vmul.f32 %v611, %v657
  %v665 = vmul.f32 %v614, %v658
  %v666 = vmul.f32 %v617, %v659
  %v667 = vmul.f32 %v620, %v660
  %v668 = vmul.f32 %v623, %v661
  %v669 = vmul.f32 %v626, %v662
  %v670 = vmax.f32 %v510, %v663
  %v671 = vmax.f32 %v511, %v664
  %v672 = vmax.f32 %v512, %v665
  %v673 = vmax.f32 %v513, %v666
  %v674 = vmax.f32 %v514, %v667
  %v675 = vmax.f32 %v515, %v668
  %v676 = vmax.f32 %v516, %v669
  %v677 = vmax.f32 %v357, %v670
  %v678 = vmax.f32 %v358, %v671
  %v679 = vmax.f32 %v359, %v672
  %v680 = vmax.f32 %v360, %v673
  %v681 = vmax.f32 %v361, %v674
  %v682 = vmax.f32 %v362, %v675
  %v683 = vmax.f32 %v363, %v676
  %691 = vrot.lane.b32.xlu0 %v677, 112
  %v692 = vpop.permute.xlu0 %691
  %693 = vrot.lane.b32.xlu0 %v678, 112
  %v694 = vpop.permute.xlu0 %693
  %695 = vrot.lane.b32.xlu0 %v679, 112
  %v696 = vpop.permute.xlu0 %695
  %697 = vrot.lane.b32.xlu0 %v680, 112
  %v698 = vpop.permute.xlu0 %697
  %699 = vrot.lane.b32.xlu0 %v681, 112
  %v700 = vpop.permute.xlu0 %699
  %701 = vrot.lane.b32.xlu0 %v682, 112
  %v702 = vpop.permute.xlu0 %701
  %703 = vrot.lane.b32.xlu0 %v683, 112
  %v704 = vpop.permute.xlu0 %703
  %v712 = vadd.f32 %v677, %v692
  %v713 = vadd.f32 %v678, %v694
  %v714 = vadd.f32 %v679, %v696
  %v715 = vadd.f32 %v680, %v698
  %v716 = vadd.f32 %v681, %v700
  %v717 = vadd.f32 %v682, %v702
  %v718 = vadd.f32 %v683, %v704
  %vm719 = vcmask 130048
  %720 = vst.msk [vmem:[%s6] sm:$0xff] %vm719, %v712
  %721 = vst.msk [vmem:[%s6 + $0x8] sm:$0xff] %vm719, %v713
  %722 = vst.msk [vmem:[%s6 + $0x10] sm:$0xff] %vm719, %v714
  %723 = vst.msk [vmem:[%s6 + $0x18] sm:$0xff] %vm719, %v715
  %724 = vst.msk [vmem:[%s6 + $0x20] sm:$0xff] %vm719, %v716
  %725 = vst.msk [vmem:[%s6 + $0x28] sm:$0xff] %vm719, %v717
  %vm726 = vcmask 123904
  %727 = vst.msk [vmem:[%s6 + $0x30] sm:$0x3] %vm726, %v718
  // Predicated region
  $region26: #{lenet5_forward.4} parent=0 // pred_check
    _
  $region27: #{lenet5_forward.4} parent=0 // pred_check_branch
    %729 = sbr.rel (0) target = $region29
  $region28: #{lenet5_forward.4} parent=0 // pred_region
    _
  $region29: #{lenet5_forward.4} parent=0 // pred_fallthru
    _
  // Predicated region
  $region30: #{lenet5_forward.4} parent=0 // pred_check
    _
  $region31: #{lenet5_forward.4} parent=0 // pred_check_branch
    %731 = sbr.rel (0) target = $region33
  $region32: #{lenet5_forward.4} parent=0 // pred_region
    _
  $region33: #{lenet5_forward.4} parent=0 // pred_fallthru
    _

// kernel: lenet5_forward.5
$region0: #{lenet5_forward.5}
  #allocation0 [shape = 'u32[]', space=smem, size = 0x4, offset = 0x4, fixed_abs, tag = 'smem constant byte address 0x4 - core index']
  #allocation1 [shape = 'u32[72,128]{1,0:T(1,128)}', space=vmem, size = 0x9000, scoped, tag = 'internal scratch']
  %s0 = inlined_call_operand.vmem [shape: f32[2,400], index: 0, kind: input, shape index: {}]
  %s1 = inlined_call_operand.vmem [shape: f32[400,120], index: 1, kind: input, shape index: {}]
  %s2 = inlined_call_operand.vmem [shape: f32[1,120], index: 2, kind: input, shape index: {}]
  %s3 = inlined_call_operand.vmem [shape: f32[120,84], index: 3, kind: input, shape index: {}]
  %s4 = inlined_call_operand.vmem [shape: f32[1,84], index: 4, kind: input, shape index: {}]
  %s5 = inlined_call_operand.vmem [shape: f32[84,10], index: 5, kind: input, shape index: {}]
  %s6 = inlined_call_operand.vmem [shape: f32[1,10], index: 6, kind: input, shape index: {}]
  %s7 = inlined_call_operand.hbm [shape: f32[2,10], index: 7, kind: output, shape index: {}]
  %s8 = sld [smem:[#allocation0]]
  $region38: #{lenet5_forward.5} parent=0
    _
  %s10 = ssub.s32 1, %s8
  %s11 = scalar_select 0, %s10, %s8
  $region1: #{lenet5_forward.5} parent=0
    #allocation2 [shape = 'u8[1024]{0}', space=vmem, size = 0x400, scoped, tag = 'output window, operand 0, single buffered']
    #allocation3 [shape = 's32[1]{0}', space=sflag, size = 0x4, scoped, tag = 'scoped memory for lenet5_forward.5']
    %12 = vsyncpa [#allocation3], 0
    // Predicated region
    $region2: #{lenet5_forward.5} parent=1 // pred_check
      _
    $region3: #{lenet5_forward.5} parent=1 // pred_check_branch
      %14 = sbr.rel (0) target = $region5
    $region4: #{lenet5_forward.5} parent=1 // pred_region
      _
    $region5: #{lenet5_forward.5} parent=1 // pred_fallthru
      _
    // Predicated region
    $region6: #{lenet5_forward.5} parent=1 // pred_check
      _
    $region7: #{lenet5_forward.5} parent=1 // pred_check_branch
      %16 = sbr.rel (0) target = $region9
    $region8: #{lenet5_forward.5} parent=1 // pred_region
      _
    $region9: #{lenet5_forward.5} parent=1 // pred_fallthru
      _
    // Predicated region
    $region10: #{lenet5_forward.5} parent=1 // pred_check
      _
    $region11: #{lenet5_forward.5} parent=1 // pred_check_branch
      %18 = sbr.rel (0) target = $region13
    $region12: #{lenet5_forward.5} parent=1 // pred_region
      _
    $region13: #{lenet5_forward.5} parent=1 // pred_fallthru
      _
    // Predicated region
    $region14: #{lenet5_forward.5} parent=1 // pred_check
      _
    $region15: #{lenet5_forward.5} parent=1 // pred_check_branch
      %20 = sbr.rel (0) target = $region17
    $region16: #{lenet5_forward.5} parent=1 // pred_region
      _
    $region17: #{lenet5_forward.5} parent=1 // pred_fallthru
      _
    // Predicated region
    $region18: #{lenet5_forward.5} parent=1 // pred_check
      _
    $region19: #{lenet5_forward.5} parent=1 // pred_check_branch
      %22 = sbr.rel (0) target = $region21
    $region20: #{lenet5_forward.5} parent=1 // pred_region
      _
    $region21: #{lenet5_forward.5} parent=1 // pred_fallthru
      _
    // Predicated region
    $region22: #{lenet5_forward.5} parent=1 // pred_check
      _
    $region23: #{lenet5_forward.5} parent=1 // pred_check_branch
      %24 = sbr.rel (0) target = $region25
    $region24: #{lenet5_forward.5} parent=1 // pred_region
      _
    $region25: #{lenet5_forward.5} parent=1 // pred_fallthru
      _
    // Predicated region
    $region26: #{lenet5_forward.5} parent=1 // pred_check
      _
    $region27: #{lenet5_forward.5} parent=1 // pred_check_branch
      %26 = sbr.rel (0) target = $region29
    $region28: #{lenet5_forward.5} parent=1 // pred_region
      _
    $region29: #{lenet5_forward.5} parent=1 // pred_fallthru
      _
    %v27 = vld [vmem:[%s0] sm:$0xff]
    %v28 = vld [vmem:[%s1] sm:$0xff]
    %v29 = vld [vmem:[%s1 + $0x8] sm:$0xff]
    %v30 = vld [vmem:[%s1 + $0x10] sm:$0xff]
    %v31 = vld [vmem:[%s1 + $0x18] sm:$0xff]
    %v32 = vld [vmem:[%s1 + $0x20] sm:$0xff]
    %v33 = vld [vmem:[%s1 + $0x28] sm:$0xff]
    %v34 = vld [vmem:[%s1 + $0x30] sm:$0xff]
    %v35 = vld [vmem:[%s1 + $0x38] sm:$0xff]
    %v36 = vld [vmem:[%s1 + $0x40] sm:$0xff]
    %v37 = vld [vmem:[%s1 + $0x48] sm:$0xff]
    %v38 = vld [vmem:[%s1 + $0x50] sm:$0xff]
    %v39 = vld [vmem:[%s1 + $0x58] sm:$0xff]
    %v40 = vld [vmem:[%s1 + $0x60] sm:$0xff]
    %v41 = vld [vmem:[%s1 + $0x68] sm:$0xff]
    %v42 = vld [vmem:[%s1 + $0x70] sm:$0xff]
    %v43 = vld [vmem:[%s1 + $0x78] sm:$0xff]
    %v44 = vld [vmem:[%s1 + $0x80] sm:$0xff]
    %v45 = vld [vmem:[%s1 + $0x88] sm:$0xff]
    %v46 = vld [vmem:[%s1 + $0x90] sm:$0xff]
    %v47 = vld [vmem:[%s1 + $0x98] sm:$0xff]
    %v48 = vld [vmem:[%s1 + $0xa0] sm:$0xff]
    %v49 = vld [vmem:[%s1 + $0xa8] sm:$0xff]
    %v50 = vld [vmem:[%s1 + $0xb0] sm:$0xff]
    %v51 = vld [vmem:[%s1 + $0xb8] sm:$0xff]
    %v52 = vld [vmem:[%s1 + $0xc0] sm:$0xff]
    %v53 = vld [vmem:[%s1 + $0xc8] sm:$0xff]
    %v54 = vld [vmem:[%s1 + $0xd0] sm:$0xff]
    %v55 = vld [vmem:[%s1 + $0xd8] sm:$0xff]
    %v56 = vld [vmem:[%s1 + $0xe0] sm:$0xff]
    %v57 = vld [vmem:[%s1 + $0xe8] sm:$0xff]
    %v58 = vld [vmem:[%s1 + $0xf0] sm:$0xff]
    %v59 = vld [vmem:[%s1 + $0xf8] sm:$0xff]
    %v60 = vld [vmem:[%s1 + $0x100] sm:$0xff]
    %v61 = vld [vmem:[%s1 + $0x108] sm:$0xff]
    %v62 = vld [vmem:[%s1 + $0x110] sm:$0xff]
    %v63 = vld [vmem:[%s1 + $0x118] sm:$0xff]
    %v64 = vld [vmem:[%s1 + $0x120] sm:$0xff]
    %v65 = vld [vmem:[%s1 + $0x128] sm:$0xff]
    %v66 = vld [vmem:[%s1 + $0x130] sm:$0xff]
    %v67 = vld [vmem:[%s1 + $0x138] sm:$0xff]
    %v68 = vld [vmem:[%s1 + $0x140] sm:$0xff]
    %v69 = vld [vmem:[%s1 + $0x148] sm:$0xff]
    %v70 = vld [vmem:[%s1 + $0x150] sm:$0xff]
    %v71 = vld [vmem:[%s1 + $0x158] sm:$0xff]
    %v72 = vld [vmem:[%s1 + $0x160] sm:$0xff]
    %v73 = vld [vmem:[%s1 + $0x168] sm:$0xff]
    %v74 = vld [vmem:[%s1 + $0x170] sm:$0xff]
    %v75 = vld [vmem:[%s1 + $0x178] sm:$0xff]
    %v76 = vld [vmem:[%s1 + $0x180] sm:$0xff]
    %v77 = vld [vmem:[%s1 + $0x188] sm:$0xff]
    %v78 = vld [vmem:[%s2] sm:$0x1]
    %v80 = vperm.slane %v78, 0
    %83 = vst [vmem:[#allocation1] ss:$4 sm:$0xff] %v27
    %v84 = vld.sshfl [vmem:[#allocation1] sm:$0xff pattern:$0x73625140]
    %v85 = vld.sshfl [vmem:[#allocation1 + $0x8] sm:$0xff pattern:$0x73625140]
    %v86 = vld.sshfl [vmem:[#allocation1 + $0x10] sm:$0xff pattern:$0x73625140]
    %v87 = vld.sshfl [vmem:[#allocation1 + $0x18] sm:$0xff pattern:$0x73625140]
    %vm91 = vcmask 130048
    %v92 = vsel %vm91, %v87, 0
    %94 = vmatpush.msra.mxu0 %v43
    %95 = vmatpush.msra.mxu0 %v42
    %96 = vmatpush.msra.mxu0 %v41
    %97 = vmatpush.msra.mxu0 %v40
    %98 = vmatpush.msra.mxu0 %v39
    %99 = vmatpush.msra.mxu0 %v38
    %100 = vmatpush.msra.mxu0 %v37
    %101 = vmatpush.msra.mxu0 %v36
    %102 = vmatpush.msra.mxu0 %v35
    %103 = vmatpush.msra.mxu0 %v34
    %104 = vmatpush.msra.mxu0 %v33
    %105 = vmatpush.msra.mxu0 %v32
    %106 = vmatpush.msra.mxu0 %v31
    %107 = vmatpush.msra.mxu0 %v30
    %108 = vmatpush.msra.mxu0 %v29
    %109 = vmatpush.msra.mxu0 %v28
    %110 = vmatmul.f32.gmra.mxu0 %v84
    %v111 = vpop.f32.mrf.mxu0
    %v112 = vadd.f32 %v80, %v111
    %113 = vdwg.mxu0
    %114 = vmatpush.msra.mxu0 %v59
    %115 = vmatpush.msra.mxu0 %v58
    %116 = vmatpush.msra.mxu0 %v57
    %117 = vmatpush.msra.mxu0 %v56
    %118 = vmatpush.msra.mxu0 %v55
    %119 = vmatpush.msra.mxu0 %v54
    %120 = vmatpush.msra.mxu0 %v53
    %121 = vmatpush.msra.mxu0 %v52
    %122 = vmatpush.msra.mxu0 %v51
    %123 = vmatpush.msra.mxu0 %v50
    %124 = vmatpush.msra.mxu0 %v49
    %125 = vmatpush.msra.mxu0 %v48
    %126 = vmatpush.msra.mxu0 %v47
    %127 = vmatpush.msra.mxu0 %v46
    %128 = vmatpush.msra.mxu0 %v45
    %129 = vmatpush.msra.mxu0 %v44
    %130 = vmatmul.f32.gmra.mxu0 %v85
    %v131 = vpop.f32.mrf.mxu0
    %v132 = vadd.f32 %v112, %v131
    %133 = vdwg.mxu0
    %134 = vmatpush.msra.mxu0 %v75
    %135 = vmatpush.msra.mxu0 %v74
    %136 = vmatpush.msra.mxu0 %v73
    %137 = vmatpush.msra.mxu0 %v72
    %138 = vmatpush.msra.mxu0 %v71
    %139 = vmatpush.msra.mxu0 %v70
    %140 = vmatpush.msra.mxu0 %v69
    %141 = vmatpush.msra.mxu0 %v68
    %142 = vmatpush.msra.mxu0 %v67
    %143 = vmatpush.msra.mxu0 %v66
    %144 = vmatpush.msra.mxu0 %v65
    %145 = vmatpush.msra.mxu0 %v64
    %146 = vmatpush.msra.mxu0 %v63
    %147 = vmatpush.msra.mxu0 %v62
    %148 = vmatpush.msra.mxu0 %v61
    %149 = vmatpush.msra.mxu0 %v60
    %150 = vmatmul.f32.gmra.mxu0 %v86
    %v151 = vpop.f32.mrf.mxu0
    %v152 = vadd.f32 %v132, %v151
    %153 = vdwg.mxu0
    %154 = vmatpush.msra.mxu0 0.0
    %155 = vmatpush.msra.mxu0 0.0
    %156 = vmatpush.msra.mxu0 0.0
    %157 = vmatpush.msra.mxu0 0.0
    %158 = vmatpush.msra.mxu0 0.0
    %159 = vmatpush.msra.mxu0 0.0
    %160 = vmatpush.msra.mxu0 0.0
    %161 = vmatpush.msra.mxu0 0.0
    %162 = vmatpush.msra.mxu0 0.0
    %163 = vmatpush.msra.mxu0 0.0
    %164 = vmatpush.msra.mxu0 0.0
    %165 = vmatpush.msra.mxu0 0.0
    %166 = vmatpush.msra.mxu0 0.0
    %167 = vmatpush.msra.mxu0 0.0
    %168 = vmatpush.msra.mxu0 %v77
    %169 = vmatpush.msra.mxu0 %v76
    %170 = vmatmul.f32.gmra.mxu0 %v92
    %v171 = vpop.f32.mrf.mxu0
    %v172 = vadd.f32 %v152, %v171
    %173 = vdwg.mxu0
    %v174 = vsub.f32 0.0, %v172
    %v175 = vmul.f32 %v174, 1.442695
    %v176 = vpow.pop %v175
    %v177 = vadd.f32 %v176, 1.0
    %v178 = vrcp.pop %v177
    %v179 = vmul.f32 %v172, %v178
    %v180 = vld [vmem:[%s3] sm:$0xff]
    %v181 = vld [vmem:[%s3 + $0x8] sm:$0xff]
    %v182 = vld [vmem:[%s3 + $0x10] sm:$0xff]
    %v183 = vld [vmem:[%s3 + $0x18] sm:$0xff]
    %v184 = vld [vmem:[%s3 + $0x20] sm:$0xff]
    %v185 = vld [vmem:[%s3 + $0x28] sm:$0xff]
    %v186 = vld [vmem:[%s3 + $0x30] sm:$0xff]
    %v187 = vld [vmem:[%s3 + $0x38] sm:$0xff]
    %v188 = vld [vmem:[%s3 + $0x40] sm:$0xff]
    %v189 = vld [vmem:[%s3 + $0x48] sm:$0xff]
    %v190 = vld [vmem:[%s3 + $0x50] sm:$0xff]
    %v191 = vld [vmem:[%s3 + $0x58] sm:$0xff]
    %v192 = vld [vmem:[%s3 + $0x60] sm:$0xff]
    %v193 = vld [vmem:[%s3 + $0x68] sm:$0xff]
    %v194 = vld [vmem:[%s3 + $0x70] sm:$0xff]
    %v195 = vld [vmem:[%s4] sm:$0x1]
    %v197 = vperm.slane %v195, 0
    %vm199 = vcmask 982016
    %v201 = vsel %vm199, %v179, 0
    %203 = vmatpush.msra.mxu0 0.0
    %204 = vmatpush.msra.mxu0 %v194
    %205 = vmatpush.msra.mxu0 %v193
    %206 = vmatpush.msra.mxu0 %v192
    %207 = vmatpush.msra.mxu0 %v191
    %208 = vmatpush.msra.mxu0 %v190
    %209 = vmatpush.msra.mxu0 %v189
    %210 = vmatpush.msra.mxu0 %v188
    %211 = vmatpush.msra.mxu0 %v187
    %212 = vmatpush.msra.mxu0 %v186
    %213 = vmatpush.msra.mxu0 %v185
    %214 = vmatpush.msra.mxu0 %v184
    %215 = vmatpush.msra.mxu0 %v183
    %216 = vmatpush.msra.mxu0 %v182
    %217 = vmatpush.msra.mxu0 %v181
    %218 = vmatpush.msra.mxu0 %v180
    %219 = vmatmul.f32.gmra.mxu0 %v201
    %v220 = vpop.f32.mrf.mxu0
    %v221 = vadd.f32 %v197, %v220
    %222 = vdwg.mxu0
    %v223 = vsub.f32 0.0, %v221
    %v224 = vmul.f32 %v223, 1.442695
    %v225 = vpow.pop %v224
    %v226 = vadd.f32 %v225, 1.0
    %v227 = vrcp.pop %v226
    %v228 = vmul.f32 %v221, %v227
    %v229 = vld [vmem:[%s5] sm:$0xff]
    %v230 = vld [vmem:[%s5 + $0x8] sm:$0xff]
    %v231 = vld [vmem:[%s5 + $0x10] sm:$0xff]
    %v232 = vld [vmem:[%s5 + $0x18] sm:$0xff]
    %v233 = vld [vmem:[%s5 + $0x20] sm:$0xff]
    %v234 = vld [vmem:[%s5 + $0x28] sm:$0xff]
    %v235 = vld [vmem:[%s5 + $0x30] sm:$0xff]
    %v236 = vld [vmem:[%s5 + $0x38] sm:$0xff]
    %v237 = vld [vmem:[%s5 + $0x40] sm:$0xff]
    %v238 = vld [vmem:[%s5 + $0x48] sm:$0xff]
    %v239 = vld [vmem:[%s5 + $0x50] sm:$0xf]
    %v240 = vld [vmem:[%s6] sm:$0x1]
    %v242 = vperm.slane %v240, 0
    %vm244 = vcmask 687104
    %v246 = vsel %vm244, %v228, 0
    %vm248 = vcmask 1043456
    %v250 = vsel %vm248, %v239, 0
    %252 = vmatpush.msra.mxu0 0.0
    %253 = vmatpush.msra.mxu0 0.0
    %254 = vmatpush.msra.mxu0 0.0
    %255 = vmatpush.msra.mxu0 0.0
    %256 = vmatpush.msra.mxu0 0.0
    %257 = vmatpush.msra.mxu0 %v250
    %258 = vmatpush.msra.mxu0 %v238
    %259 = vmatpush.msra.mxu0 %v237
    %260 = vmatpush.msra.mxu0 %v236
    %261 = vmatpush.msra.mxu0 %v235
    %262 = vmatpush.msra.mxu0 %v234
    %263 = vmatpush.msra.mxu0 %v233
    %264 = vmatpush.msra.mxu0 %v232
    %265 = vmatpush.msra.mxu0 %v231
    %266 = vmatpush.msra.mxu0 %v230
    %267 = vmatpush.msra.mxu0 %v229
    %268 = vmatmul.f32.gmra.mxu0 %v246
    %v269 = vpop.f32.mrf.mxu0
    %v270 = vadd.f32 %v242, %v269
    %271 = vdwg.mxu0
    %vm272 = vcmask 74752
    %v273 = vsel %vm272, %v270, -inf
    %274 = vmax.xlane.f32.xlu0 %v273
    %v275 = vpop.xlane.xlu0 %274
    %v276 = vsub.f32 %v270, %v275
    %v277 = vmul.f32 %v276, 1.442695
    %v278 = vpow.pop %v277
    %v279 = vsel %vm272, %v278, 0.0
    %280 = vadd.xlane.f32.xlu0 %v279
    %v281 = vpop.xlane.xlu0 %280
    %v282 = vlog2.pop %v281
    %v283 = vmul.f32 %v282, 0.6931472
    %v284 = vsub.f32 %v276, %v283
    %285 = vst.msk [vmem:[#allocation2] sm:$0x3] %vm272, %v284
    // Predicated region
    $region30: #{lenet5_forward.5} parent=1 // pred_check
      _
    $region31: #{lenet5_forward.5} parent=1 // pred_check_branch
      %287 = sbr.rel (0) target = $region33
    $region32: #{lenet5_forward.5} parent=1 // pred_region
      %289 = vsyncadd [#allocation3], 0
      %s291 = sshll.u32 [#allocation2], 4
      %s292 = int_to_ptr.vmem [resolvable:$true] %s291
      %s293 = sshll.u32 %s7, 4
      %s294 = int_to_ptr.hbm [resolvable:$true] %s293
      %296 = dma.vmem_to_hbm [thread:$0]  %s292, 32, %s294, [#allocation3]
    $region33: #{lenet5_forward.5} parent=1 // pred_fallthru
      _
    // Predicated region
    $region34: #{lenet5_forward.5} parent=1 // pred_check
      _
    $region35: #{lenet5_forward.5} parent=1 // pred_check_branch
      %298 = sbr.rel (0) target = $region37
    $region36: #{lenet5_forward.5} parent=1 // pred_region
      %300 = dma.done [#allocation3], 32
    $region37: #{lenet5_forward.5} parent=1 // pred_fallthru
      _
    %301 = vsyncpa [#allocation3], 1

</llo_original>
